<compile_context>
chip_gen: v5e
topology: v5e:2x2
jax: 0.10.0
libtpu: 0.0.40
codegen_flags: <defaults>
</compile_context>

<pallas_src>
import functools
import math

import jax
import jax.numpy as jnp
from jax.experimental import pallas as pl
from jax.experimental.pallas import tpu as pltpu


# ------------------------------ Pallas kernel -------------------------------

def _optimized_block_kernel(x_ref, s1_ref, w1_ref, b1_ref, pr2_ref, w2p_ref,
                            pr_ref, ws_ref, bo_ref, o_ref, *, negative_slope):
    """Fused OptimizedBlock for one batch tile (row-major "rows x width*chan").

      x_ref   : (Bt*H,  W*Cin)        input activations (f32)
      s1_ref  : (3, Bt*H,  Bt*H)      conv1 row-shift (+ zero pad) per tap, bf16
      w1_ref  : (3, W*Cin, W*Cout)    conv1 banded weights (width taps + width
                                      zero-pad folded in), bf16
      b1_ref  : (1, W*Cout)           conv1 bias, tiled W times along lanes
      pr2_ref : (3, Bt*Ho, Bt*H)      conv2 row taps + 2x row avg-pool, bf16
      w2p_ref : (3, W*Cout, Wo*Cout)  conv2 banded weights with the 2x width
                                      avg-pool folded in, bf16
      pr_ref  : (Bt*Ho, Bt*H)         plain 2x row avg-pool (shortcut), bf16
      ws_ref  : (W*Cin, Wo*Cout)      shortcut: 2x width pool + 1x1 conv, bf16
      bo_ref  : (1, Wo*Cout)          conv2 bias + shortcut bias (tiled)
      o_ref   : (Bt*Ho, Wo*Cout)      output
    """
    f32 = jnp.float32
    bf16 = jnp.bfloat16

    xb = x_ref[...].astype(bf16)                            # (BtH, W*Cin)

    def tap(left_ref, act_b, right_ref, kh):
        # Row tap: small left matmul (shift / shift+pool, handles zero pad at
        # every image boundary) followed by one lane-dense banded MXU matmul.
        shifted = jnp.dot(left_ref[kh], act_b,
                          preferred_element_type=f32).astype(bf16)
        return jnp.dot(shifted, right_ref[kh], preferred_element_type=f32)

    # conv1: 3x3, padding=1.
    y1 = tap(s1_ref, xb, w1_ref, 0)
    for kh in (1, 2):
        y1 = y1 + tap(s1_ref, xb, w1_ref, kh)
    y1 = y1 + b1_ref[...]
    y1 = jnp.where(y1 >= 0.0, y1, negative_slope * y1)      # ActLayer
    y1b = y1.astype(bf16)                                   # (BtH, W*Cout)

    # conv2: 3x3, padding=1, with AvgPool2d(2) fully folded in
    # (rows via pr2 on the left, width via w2p on the right).
    main = tap(pr2_ref, y1b, w2p_ref, 0)
    for kh in (1, 2):
        main = main + tap(pr2_ref, y1b, w2p_ref, kh)        # (BtHo, Wo*Cout)

    # shortcut: 2x row pool (left), then 2x width pool + 1x1 conv (right).
    xp = jnp.dot(pr_ref[...], xb, preferred_element_type=f32).astype(bf16)
    sc = jnp.dot(xp, ws_ref[...], preferred_element_type=f32)

    o_ref[...] = (main + sc + bo_ref[...]).astype(o_ref.dtype)


# ------------------------- host-side weight folding -------------------------

def _fold_conv3x3_to_bands(w, width):
    """PyTorch (Cout, Cin, 3, 3) -> (3, width*Cin, width*Cout) band matrices.

    bands[kh, wp*Cin + ci, wo*Cout + co] = w[co, ci, kh, wp - wo + 1] when
    |wp - wo| <= 1, else 0, so a padding=1 3x3 conv over a row-major
    (H, width*Cin) activation is  sum_kh  rows[h+kh-1] @ bands[kh]; the zero
    band entries reproduce the width zero-padding.
    """
    cout, cin = w.shape[0], w.shape[1]
    wt = jnp.transpose(w, (2, 3, 1, 0))                  # (kh, kw, Cin, Cout)
    wp = jnp.arange(width)[:, None]
    wo = jnp.arange(width)[None, :]
    kw = wp - wo + 1                                     # (W, W)
    valid = ((kw >= 0) & (kw <= 2)).astype(w.dtype)
    g = wt[:, jnp.clip(kw, 0, 2)]                        # (3, W, W, Cin, Cout)
    g = g * valid[None, :, :, None, None]
    g = jnp.transpose(g, (0, 1, 3, 2, 4))                # (3, W, Cin, W, Cout)
    return g.reshape(3, width * cin, width * cout)


def _pair_pool_matrix(n):
    """(n, n//2) matrix averaging adjacent pairs: M[i, i//2] = 0.5."""
    return ((jnp.arange(n)[:, None] // 2) ==
            jnp.arange(n // 2)[None, :]).astype(jnp.float32) * 0.5


def _row_matrices(bt, h):
    """Block-diagonal (over the batch tile) row-tap / row-pool matrices.

    Returns
      s1  : (3, bt*h,  bt*h )  conv1 row shift + zero pad, per row tap kh
      pr2 : (3, bt*ho, bt*h )  conv2 row shift + zero pad + 2x row avg-pool
      pr  : (bt*ho, bt*h)      plain 2x row avg-pool (shortcut path)
    """
    ho = h // 2
    hh = jnp.arange(h)
    hho = jnp.arange(ho)
    s1 = jnp.stack([
        (hh[None, :] == (hh[:, None] + kh - 1)).astype(jnp.float32)
        for kh in range(3)])                              # (3, h, h)
    pr2 = jnp.stack([
        0.5 * ((hh[None, :] == (2 * hho[:, None] + kh - 1)) |
               (hh[None, :] == (2 * hho[:, None] + kh))).astype(jnp.float32)
        for kh in range(3)])                              # (3, ho, h)
    pr = 0.5 * ((hh[None, :] // 2) == hho[:, None]).astype(jnp.float32)

    eye_b = jnp.eye(bt, dtype=jnp.float32)

    def block_diag(m):                                    # (k, r, c) -> bd
        k, r, c = m.shape
        out = jnp.einsum("bB,krc->kbrBc", eye_b, m)
        return out.reshape(k, bt * r, bt * c)

    return (block_diag(s1).astype(jnp.bfloat16),
            block_diag(pr2).astype(jnp.bfloat16),
            block_diag(pr[None])[0].astype(jnp.bfloat16))


def _pick_batch_tile(b, max_tile=8):
    bt = min(b, max_tile)
    while b % bt:
        bt -= 1
    return bt


# ---------------------------------- forward ---------------------------------

def optimized_block_forward(x_nchw, params, act_type="leakyrelu",
                            negative_slope=0.2):
    """OptimizedBlock forward: (B, Cin, H, W) -> (B, Cout, H/2, W/2)."""
    B, Cin, H, W = x_nchw.shape
    Cout = params["w1"].shape[0]
    assert H % 2 == 0 and W % 2 == 0, "AvgPool2d(2) expects even spatial dims"
    Ho, Wo = H // 2, W // 2
    slope = 0.0 if act_type == "relu" else float(negative_slope)
    Bt = _pick_batch_tile(B)
    nb = B // Bt

    hi = jax.lax.Precision.HIGHEST

    # Weight-side glue (tiny, batch-independent): fold taps / padding /
    # pooling / 1x1 shortcut into dense matrices the kernel can matmul.
    w1b = _fold_conv3x3_to_bands(params["w1"], W).astype(jnp.bfloat16)
    w2b = _fold_conv3x3_to_bands(params["w2"], W)             # (3,W*Cout,W*Cout)
    pc = jnp.kron(_pair_pool_matrix(W), jnp.eye(Cout, dtype=jnp.float32))
    w2p = jnp.einsum("kab,bc->kac", w2b, pc,
                     precision=hi).astype(jnp.bfloat16)       # (3,W*Cout,Wo*Cout)
    ws_mat = jnp.transpose(params["ws"][:, :, 0, 0], (1, 0))  # (Cin, Cout)
    s_fold = jnp.kron(_pair_pool_matrix(W),
                      ws_mat).astype(jnp.bfloat16)            # (W*Cin, Wo*Cout)
    b1t = jnp.tile(params["b1"], W).reshape(1, W * Cout)
    bot = jnp.tile(params["b2"] + params["bs"], Wo).reshape(1, Wo * Cout)

    # Row-tap / row-pool matrices (handle zero padding at every image
    # boundary inside a batch tile; block-diagonal over the tile).
    s1, pr2, pr = _row_matrices(Bt, H)

    # Activations: NCHW -> lane-dense row-major (B*H, W*Cin).
    # (Kept for interface parity; a surrounding NHWC model could skip this.)
    x_rows = jnp.transpose(x_nchw, (0, 2, 3, 1)).reshape(B * H, W * Cin)

    kern = functools.partial(_optimized_block_kernel, negative_slope=slope)
    out_rows = pl.pallas_call(
        kern,
        grid=(nb,),
        out_shape=jax.ShapeDtypeStruct((B * Ho, Wo * Cout), x_nchw.dtype),
        in_specs=[
            pl.BlockSpec((Bt * H, W * Cin), lambda g: (g, 0)),          # x
            pl.BlockSpec((3, Bt * H, Bt * H), lambda g: (0, 0, 0)),     # s1
            pl.BlockSpec((3, W * Cin, W * Cout), lambda g: (0, 0, 0)),  # w1b
            pl.BlockSpec((1, W * Cout), lambda g: (0, 0)),              # b1
            pl.BlockSpec((3, Bt * Ho, Bt * H), lambda g: (0, 0, 0)),    # pr2
            pl.BlockSpec((3, W * Cout, Wo * Cout), lambda g: (0, 0, 0)),# w2p
            pl.BlockSpec((Bt * Ho, Bt * H), lambda g: (0, 0)),          # pr
            pl.BlockSpec((W * Cin, Wo * Cout), lambda g: (0, 0)),       # s_fold
            pl.BlockSpec((1, Wo * Cout), lambda g: (0, 0)),             # bo
        ],
        out_specs=pl.BlockSpec((Bt * Ho, Wo * Cout), lambda g: (g, 0)),
        compiler_params=pltpu.CompilerParams(
            dimension_semantics=("parallel",)),
    )(x_rows, s1, w1b, b1t, pr2, w2p, pr, s_fold, bot)

    return jnp.transpose(out_rows.reshape(B, Ho, Wo, Cout), (0, 3, 1, 2))


# ----------------------- pure-JAX reference (for check) ---------------------

def _avgpool2_nchw(x):
    B, C, H, W = x.shape
    return x.reshape(B, C, H // 2, 2, W // 2, 2).mean(axis=(3, 5))


def reference_forward(x, params, act_type="leakyrelu", negative_slope=0.2):
    slope = 0.0 if act_type == "relu" else negative_slope
    dn = ("NCHW", "OIHW", "NCHW")
    hi = jax.lax.Precision.HIGHEST
    y = jax.lax.conv_general_dilated(x, params["w1"], (1, 1), ((1, 1), (1, 1)),
                                     dimension_numbers=dn, precision=hi)
    y = y + params["b1"][None, :, None, None]
    y = jnp.where(y >= 0.0, y, slope * y)
    y = jax.lax.conv_general_dilated(y, params["w2"], (1, 1), ((1, 1), (1, 1)),
                                     dimension_numbers=dn, precision=hi)
    y = y + params["b2"][None, :, None, None]
    y = _avgpool2_nchw(y)
    s = _avgpool2_nchw(x)
    s = jax.lax.conv_general_dilated(s, params["ws"], (1, 1), ((0, 0), (0, 0)),
                                     dimension_numbers=dn, precision=hi)
    s = s + params["bs"][None, :, None, None]
    return y + s


# ----------------------------------- main ------------------------------------

def init_params(key, cin, cout):
    ks = jax.random.split(key, 6)

    def nrm(k, shape, scale):
        return scale * jax.random.normal(k, shape, jnp.float32)

    return dict(
        w1=nrm(ks[0], (cout, cin, 3, 3), 1.0 / math.sqrt(9 * cin)),
        b1=nrm(ks[1], (cout,), 0.02),
        w2=nrm(ks[2], (cout, cout, 3, 3), 1.0 / math.sqrt(9 * cout)),
        b2=nrm(ks[3], (cout,), 0.02),
        ws=nrm(ks[4], (cout, cin, 1, 1), 1.0 / math.sqrt(cin)),
        bs=nrm(ks[5], (cout,), 0.02),
    )


if __name__ == "__main__":
    B, Cin, Cout, H, W = 2, 16, 32, 16, 16
    key = jax.random.PRNGKey(0)
    kx, kp = jax.random.split(key)
    x = jax.random.normal(kx, (B, Cin, H, W), jnp.float32)
    params = init_params(kp, Cin, Cout)

    fwd = jax.jit(optimized_block_forward)
    out = jax.block_until_ready(fwd(x, params))

    assert out.shape == (B, Cout, H // 2, W // 2), out.shape
    assert out.dtype == jnp.float32
    assert bool(jnp.all(jnp.isfinite(out)))

    ref = reference_forward(x, params)
    max_err = float(jnp.max(jnp.abs(out - ref)))
    assert max_err < 1e-1, f"kernel deviates from reference: {max_err}"
    print("KERNEL_OK")
</pallas_src>

<mosaic_0001>
module attributes {stable_mosaic.version = 11 : i64} {
  func.func @_optimized_block_kernel(%arg0: i32, %arg1: memref<32x256xf32, #tpu.memory_space<vmem>>, %arg2: memref<3x32x32xbf16, #tpu.memory_space<vmem>>, %arg3: memref<3x256x512xbf16, #tpu.memory_space<vmem>>, %arg4: memref<1x512xf32, #tpu.memory_space<vmem>>, %arg5: memref<3x16x32xbf16, #tpu.memory_space<vmem>>, %arg6: memref<3x512x256xbf16, #tpu.memory_space<vmem>>, %arg7: memref<16x32xbf16, #tpu.memory_space<vmem>>, %arg8: memref<256x256xbf16, #tpu.memory_space<vmem>>, %arg9: memref<1x256xf32, #tpu.memory_space<vmem>>, %arg10: memref<16x256xf32, #tpu.memory_space<vmem>>) attributes {dimension_semantics = [#tpu.dimension_semantics<parallel>], iteration_bounds = array<i64: 1>, scalar_prefetch = 0 : i64, scratch_operands = 0 : i64, tpu.core_type = #tpu.core_type<tc>, window_params = [{transform_indices = @transform_0, window_bounds = array<i64: 32, 256>}, {pipeline_mode = #tpu.pipeline_mode<synchronous>, transform_indices = @transform_1, window_bounds = array<i64: 3, 32, 32>}, {pipeline_mode = #tpu.pipeline_mode<synchronous>, transform_indices = @transform_2, window_bounds = array<i64: 3, 256, 512>}, {pipeline_mode = #tpu.pipeline_mode<synchronous>, transform_indices = @transform_3, window_bounds = array<i64: 1, 512>}, {pipeline_mode = #tpu.pipeline_mode<synchronous>, transform_indices = @transform_4, window_bounds = array<i64: 3, 16, 32>}, {pipeline_mode = #tpu.pipeline_mode<synchronous>, transform_indices = @transform_5, window_bounds = array<i64: 3, 512, 256>}, {pipeline_mode = #tpu.pipeline_mode<synchronous>, transform_indices = @transform_6, window_bounds = array<i64: 16, 32>}, {pipeline_mode = #tpu.pipeline_mode<synchronous>, transform_indices = @transform_7, window_bounds = array<i64: 256, 256>}, {pipeline_mode = #tpu.pipeline_mode<synchronous>, transform_indices = @transform_8, window_bounds = array<i64: 1, 256>}, {transform_indices = @transform_9, window_bounds = array<i64: 16, 256>}]} {
    %c0 = arith.constant 0 : index
    %c0_0 = arith.constant 0 : index
    %0 = vector.load %arg1[%c0, %c0_0] : memref<32x256xf32, #tpu.memory_space<vmem>>, vector<32x256xf32>
    %1 = arith.truncf %0 : vector<32x256xf32> to vector<32x256xbf16>
    %c0_1 = arith.constant 0 : index
    %c0_2 = arith.constant 0 : index
    %c0_3 = arith.constant 0 : index
    %2 = vector.load %arg2[%c0_1, %c0_2, %c0_3] : memref<3x32x32xbf16, #tpu.memory_space<vmem>>, vector<1x32x32xbf16>
    %3 = vector.shape_cast %2 : vector<1x32x32xbf16> to vector<32x32xbf16>
    %cst = arith.constant dense<0.000000e+00> : vector<32x256xf32>
    %4 = tpu.matmul %3, %1, %cst {dimension_numbers = #tpu.dot_dimension_numbers<[1], [0], [0], [1], [0, 0, 1, 1], [], []>} : vector<32x32xbf16>, vector<32x256xbf16>, vector<32x256xf32> -> vector<32x256xf32>
    %5 = arith.truncf %4 : vector<32x256xf32> to vector<32x256xbf16>
    %c0_4 = arith.constant 0 : index
    %c0_5 = arith.constant 0 : index
    %c0_6 = arith.constant 0 : index
    %6 = vector.load %arg3[%c0_4, %c0_5, %c0_6] : memref<3x256x512xbf16, #tpu.memory_space<vmem>>, vector<1x256x512xbf16>
    %7 = vector.shape_cast %6 : vector<1x256x512xbf16> to vector<256x512xbf16>
    %cst_7 = arith.constant dense<0.000000e+00> : vector<32x512xf32>
    %8 = tpu.matmul %5, %7, %cst_7 {dimension_numbers = #tpu.dot_dimension_numbers<[1], [0], [0], [1], [0, 0, 1, 1], [], []>} : vector<32x256xbf16>, vector<256x512xbf16>, vector<32x512xf32> -> vector<32x512xf32>
    %c1 = arith.constant 1 : index
    %c0_8 = arith.constant 0 : index
    %c0_9 = arith.constant 0 : index
    %9 = vector.load %arg2[%c1, %c0_8, %c0_9] : memref<3x32x32xbf16, #tpu.memory_space<vmem>>, vector<1x32x32xbf16>
    %10 = vector.shape_cast %9 : vector<1x32x32xbf16> to vector<32x32xbf16>
    %cst_10 = arith.constant dense<0.000000e+00> : vector<32x256xf32>
    %11 = tpu.matmul %10, %1, %cst_10 {dimension_numbers = #tpu.dot_dimension_numbers<[1], [0], [0], [1], [0, 0, 1, 1], [], []>} : vector<32x32xbf16>, vector<32x256xbf16>, vector<32x256xf32> -> vector<32x256xf32>
    %12 = arith.truncf %11 : vector<32x256xf32> to vector<32x256xbf16>
    %c1_11 = arith.constant 1 : index
    %c0_12 = arith.constant 0 : index
    %c0_13 = arith.constant 0 : index
    %13 = vector.load %arg3[%c1_11, %c0_12, %c0_13] : memref<3x256x512xbf16, #tpu.memory_space<vmem>>, vector<1x256x512xbf16>
    %14 = vector.shape_cast %13 : vector<1x256x512xbf16> to vector<256x512xbf16>
    %cst_14 = arith.constant dense<0.000000e+00> : vector<32x512xf32>
    %15 = tpu.matmul %12, %14, %cst_14 {dimension_numbers = #tpu.dot_dimension_numbers<[1], [0], [0], [1], [0, 0, 1, 1], [], []>} : vector<32x256xbf16>, vector<256x512xbf16>, vector<32x512xf32> -> vector<32x512xf32>
    %16 = arith.addf %8, %15 : vector<32x512xf32>
    %c2 = arith.constant 2 : index
    %c0_15 = arith.constant 0 : index
    %c0_16 = arith.constant 0 : index
    %17 = vector.load %arg2[%c2, %c0_15, %c0_16] : memref<3x32x32xbf16, #tpu.memory_space<vmem>>, vector<1x32x32xbf16>
    %18 = vector.shape_cast %17 : vector<1x32x32xbf16> to vector<32x32xbf16>
    %cst_17 = arith.constant dense<0.000000e+00> : vector<32x256xf32>
    %19 = tpu.matmul %18, %1, %cst_17 {dimension_numbers = #tpu.dot_dimension_numbers<[1], [0], [0], [1], [0, 0, 1, 1], [], []>} : vector<32x32xbf16>, vector<32x256xbf16>, vector<32x256xf32> -> vector<32x256xf32>
    %20 = arith.truncf %19 : vector<32x256xf32> to vector<32x256xbf16>
    %c2_18 = arith.constant 2 : index
    %c0_19 = arith.constant 0 : index
    %c0_20 = arith.constant 0 : index
    %21 = vector.load %arg3[%c2_18, %c0_19, %c0_20] : memref<3x256x512xbf16, #tpu.memory_space<vmem>>, vector<1x256x512xbf16>
    %22 = vector.shape_cast %21 : vector<1x256x512xbf16> to vector<256x512xbf16>
    %cst_21 = arith.constant dense<0.000000e+00> : vector<32x512xf32>
    %23 = tpu.matmul %20, %22, %cst_21 {dimension_numbers = #tpu.dot_dimension_numbers<[1], [0], [0], [1], [0, 0, 1, 1], [], []>} : vector<32x256xbf16>, vector<256x512xbf16>, vector<32x512xf32> -> vector<32x512xf32>
    %24 = arith.addf %16, %23 : vector<32x512xf32>
    %c0_22 = arith.constant 0 : index
    %c0_23 = arith.constant 0 : index
    %25 = vector.load %arg4[%c0_22, %c0_23] : memref<1x512xf32, #tpu.memory_space<vmem>>, vector<1x512xf32>
    %26 = vector.broadcast %25 : vector<1x512xf32> to vector<32x512xf32>
    %27 = arith.addf %24, %26 : vector<32x512xf32>
    %cst_24 = arith.constant 0.000000e+00 : f32
    %28 = vector.broadcast %cst_24 : f32 to vector<32x512xf32>
    %29 = arith.cmpf oge, %27, %28 : vector<32x512xf32>
    %cst_25 = arith.constant 2.000000e-01 : f32
    %30 = vector.broadcast %cst_25 : f32 to vector<32x512xf32>
    %31 = arith.mulf %30, %27 : vector<32x512xf32>
    %32 = arith.select %29, %27, %31 : vector<32x512xi1>, vector<32x512xf32>
    %33 = arith.truncf %32 : vector<32x512xf32> to vector<32x512xbf16>
    %c0_26 = arith.constant 0 : index
    %c0_27 = arith.constant 0 : index
    %c0_28 = arith.constant 0 : index
    %34 = vector.load %arg5[%c0_26, %c0_27, %c0_28] : memref<3x16x32xbf16, #tpu.memory_space<vmem>>, vector<1x16x32xbf16>
    %35 = vector.shape_cast %34 : vector<1x16x32xbf16> to vector<16x32xbf16>
    %cst_29 = arith.constant dense<0.000000e+00> : vector<16x512xf32>
    %36 = tpu.matmul %35, %33, %cst_29 {dimension_numbers = #tpu.dot_dimension_numbers<[1], [0], [0], [1], [0, 0, 1, 1], [], []>} : vector<16x32xbf16>, vector<32x512xbf16>, vector<16x512xf32> -> vector<16x512xf32>
    %37 = arith.truncf %36 : vector<16x512xf32> to vector<16x512xbf16>
    %c0_30 = arith.constant 0 : index
    %c0_31 = arith.constant 0 : index
    %c0_32 = arith.constant 0 : index
    %38 = vector.load %arg6[%c0_30, %c0_31, %c0_32] : memref<3x512x256xbf16, #tpu.memory_space<vmem>>, vector<1x512x256xbf16>
    %39 = vector.shape_cast %38 : vector<1x512x256xbf16> to vector<512x256xbf16>
    %cst_33 = arith.constant dense<0.000000e+00> : vector<16x256xf32>
    %40 = tpu.matmul %37, %39, %cst_33 {dimension_numbers = #tpu.dot_dimension_numbers<[1], [0], [0], [1], [0, 0, 1, 1], [], []>} : vector<16x512xbf16>, vector<512x256xbf16>, vector<16x256xf32> -> vector<16x256xf32>
    %c1_34 = arith.constant 1 : index
    %c0_35 = arith.constant 0 : index
    %c0_36 = arith.constant 0 : index
    %41 = vector.load %arg5[%c1_34, %c0_35, %c0_36] : memref<3x16x32xbf16, #tpu.memory_space<vmem>>, vector<1x16x32xbf16>
    %42 = vector.shape_cast %41 : vector<1x16x32xbf16> to vector<16x32xbf16>
    %cst_37 = arith.constant dense<0.000000e+00> : vector<16x512xf32>
    %43 = tpu.matmul %42, %33, %cst_37 {dimension_numbers = #tpu.dot_dimension_numbers<[1], [0], [0], [1], [0, 0, 1, 1], [], []>} : vector<16x32xbf16>, vector<32x512xbf16>, vector<16x512xf32> -> vector<16x512xf32>
    %44 = arith.truncf %43 : vector<16x512xf32> to vector<16x512xbf16>
    %c1_38 = arith.constant 1 : index
    %c0_39 = arith.constant 0 : index
    %c0_40 = arith.constant 0 : index
    %45 = vector.load %arg6[%c1_38, %c0_39, %c0_40] : memref<3x512x256xbf16, #tpu.memory_space<vmem>>, vector<1x512x256xbf16>
    %46 = vector.shape_cast %45 : vector<1x512x256xbf16> to vector<512x256xbf16>
    %cst_41 = arith.constant dense<0.000000e+00> : vector<16x256xf32>
    %47 = tpu.matmul %44, %46, %cst_41 {dimension_numbers = #tpu.dot_dimension_numbers<[1], [0], [0], [1], [0, 0, 1, 1], [], []>} : vector<16x512xbf16>, vector<512x256xbf16>, vector<16x256xf32> -> vector<16x256xf32>
    %48 = arith.addf %40, %47 : vector<16x256xf32>
    %c2_42 = arith.constant 2 : index
    %c0_43 = arith.constant 0 : index
    %c0_44 = arith.constant 0 : index
    %49 = vector.load %arg5[%c2_42, %c0_43, %c0_44] : memref<3x16x32xbf16, #tpu.memory_space<vmem>>, vector<1x16x32xbf16>
    %50 = vector.shape_cast %49 : vector<1x16x32xbf16> to vector<16x32xbf16>
    %cst_45 = arith.constant dense<0.000000e+00> : vector<16x512xf32>
    %51 = tpu.matmul %50, %33, %cst_45 {dimension_numbers = #tpu.dot_dimension_numbers<[1], [0], [0], [1], [0, 0, 1, 1], [], []>} : vector<16x32xbf16>, vector<32x512xbf16>, vector<16x512xf32> -> vector<16x512xf32>
    %52 = arith.truncf %51 : vector<16x512xf32> to vector<16x512xbf16>
    %c2_46 = arith.constant 2 : index
    %c0_47 = arith.constant 0 : index
    %c0_48 = arith.constant 0 : index
    %53 = vector.load %arg6[%c2_46, %c0_47, %c0_48] : memref<3x512x256xbf16, #tpu.memory_space<vmem>>, vector<1x512x256xbf16>
    %54 = vector.shape_cast %53 : vector<1x512x256xbf16> to vector<512x256xbf16>
    %cst_49 = arith.constant dense<0.000000e+00> : vector<16x256xf32>
    %55 = tpu.matmul %52, %54, %cst_49 {dimension_numbers = #tpu.dot_dimension_numbers<[1], [0], [0], [1], [0, 0, 1, 1], [], []>} : vector<16x512xbf16>, vector<512x256xbf16>, vector<16x256xf32> -> vector<16x256xf32>
    %56 = arith.addf %48, %55 : vector<16x256xf32>
    %c0_50 = arith.constant 0 : index
    %c0_51 = arith.constant 0 : index
    %57 = vector.load %arg7[%c0_50, %c0_51] : memref<16x32xbf16, #tpu.memory_space<vmem>>, vector<16x32xbf16>
    %cst_52 = arith.constant dense<0.000000e+00> : vector<16x256xf32>
    %58 = tpu.matmul %57, %1, %cst_52 {dimension_numbers = #tpu.dot_dimension_numbers<[1], [0], [0], [1], [0, 0, 1, 1], [], []>} : vector<16x32xbf16>, vector<32x256xbf16>, vector<16x256xf32> -> vector<16x256xf32>
    %59 = arith.truncf %58 : vector<16x256xf32> to vector<16x256xbf16>
    %c0_53 = arith.constant 0 : index
    %c0_54 = arith.constant 0 : index
    %60 = vector.load %arg8[%c0_53, %c0_54] : memref<256x256xbf16, #tpu.memory_space<vmem>>, vector<256x256xbf16>
    %cst_55 = arith.constant dense<0.000000e+00> : vector<16x256xf32>
    %61 = tpu.matmul %59, %60, %cst_55 {dimension_numbers = #tpu.dot_dimension_numbers<[1], [0], [0], [1], [0, 0, 1, 1], [], []>} : vector<16x256xbf16>, vector<256x256xbf16>, vector<16x256xf32> -> vector<16x256xf32>
    %62 = arith.addf %56, %61 : vector<16x256xf32>
    %c0_56 = arith.constant 0 : index
    %c0_57 = arith.constant 0 : index
    %63 = vector.load %arg9[%c0_56, %c0_57] : memref<1x256xf32, #tpu.memory_space<vmem>>, vector<1x256xf32>
    %64 = vector.broadcast %63 : vector<1x256xf32> to vector<16x256xf32>
    %65 = arith.addf %62, %64 : vector<16x256xf32>
    %c0_58 = arith.constant 0 : index
    %c0_59 = arith.constant 0 : index
    %66 = vector.load %arg10[%c0_58, %c0_59] : memref<16x256xf32, #tpu.memory_space<vmem>>, vector<16x256xf32>
    tpu.vector_store %arg10[%c0_58, %c0_59], %65 {strides = array<i32>} : memref<16x256xf32, #tpu.memory_space<vmem>>, vector<16x256xf32>,
    return
  }
  func.func @transform_0(%arg0: i32) -> (i32, i32) {
    %c0_i32 = arith.constant 0 : i32
    %c0_i32_0 = arith.constant 0 : i32
    return %arg0, %c0_i32 : i32, i32
  }
  func.func @transform_1(%arg0: i32) -> (i32, i32, i32) {
    %c0_i32 = arith.constant 0 : i32
    %c0_i32_0 = arith.constant 0 : i32
    %c0_i32_1 = arith.constant 0 : i32
    %c0_i32_2 = arith.constant 0 : i32
    return %c0_i32, %c0_i32_0, %c0_i32_1 : i32, i32, i32
  }
  func.func @transform_2(%arg0: i32) -> (i32, i32, i32) {
    %c0_i32 = arith.constant 0 : i32
    %c0_i32_0 = arith.constant 0 : i32
    %c0_i32_1 = arith.constant 0 : i32
    %c0_i32_2 = arith.constant 0 : i32
    return %c0_i32, %c0_i32_0, %c0_i32_1 : i32, i32, i32
  }
  func.func @transform_3(%arg0: i32) -> (i32, i32) {
    %c0_i32 = arith.constant 0 : i32
    %c0_i32_0 = arith.constant 0 : i32
    %c0_i32_1 = arith.constant 0 : i32
    return %c0_i32, %c0_i32_0 : i32, i32
  }
  func.func @transform_4(%arg0: i32) -> (i32, i32, i32) {
    %c0_i32 = arith.constant 0 : i32
    %c0_i32_0 = arith.constant 0 : i32
    %c0_i32_1 = arith.constant 0 : i32
    %c0_i32_2 = arith.constant 0 : i32
    return %c0_i32, %c0_i32_0, %c0_i32_1 : i32, i32, i32
  }
  func.func @transform_5(%arg0: i32) -> (i32, i32, i32) {
    %c0_i32 = arith.constant 0 : i32
    %c0_i32_0 = arith.constant 0 : i32
    %c0_i32_1 = arith.constant 0 : i32
    %c0_i32_2 = arith.constant 0 : i32
    return %c0_i32, %c0_i32_0, %c0_i32_1 : i32, i32, i32
  }
  func.func @transform_6(%arg0: i32) -> (i32, i32) {
    %c0_i32 = arith.constant 0 : i32
    %c0_i32_0 = arith.constant 0 : i32
    %c0_i32_1 = arith.constant 0 : i32
    return %c0_i32, %c0_i32_0 : i32, i32
  }
  func.func @transform_7(%arg0: i32) -> (i32, i32) {
    %c0_i32 = arith.constant 0 : i32
    %c0_i32_0 = arith.constant 0 : i32
    %c0_i32_1 = arith.constant 0 : i32
    return %c0_i32, %c0_i32_0 : i32, i32
  }
  func.func @transform_8(%arg0: i32) -> (i32, i32) {
    %c0_i32 = arith.constant 0 : i32
    %c0_i32_0 = arith.constant 0 : i32
    %c0_i32_1 = arith.constant 0 : i32
    return %c0_i32, %c0_i32_0 : i32, i32
  }
  func.func @transform_9(%arg0: i32) -> (i32, i32) {
    %c0_i32 = arith.constant 0 : i32
    %c0_i32_0 = arith.constant 0 : i32
    return %arg0, %c0_i32 : i32, i32
  }
}

</mosaic_0001>

<llo_original>
// kernel: tile.13
$region0: #{tile.13}
  #allocation0 [shape = 's32[1]{0}', space=sflag, size = 0x4, scoped, tag = 'scoped memory for tile.13']
  %s0 = inlined_call_operand.vmem [shape: f32[32], index: 0, kind: input, shape index: {}]
  %s1 = inlined_call_operand.vmem [shape: f32[16,32], index: 1, kind: output, shape index: {}]
  // Predicated region
  $region2: #{tile.13} parent=0 // pred_check
    _
  $region3: #{tile.13} parent=0 // pred_check_branch
    %3 = sbr.rel (0) target = $region5
  $region4: #{tile.13} parent=0 // pred_region
    _
  $region5: #{tile.13} parent=0 // pred_fallthru
    _
  %v4 = vld [vmem:[%s0] ss:$0 sm:$0xff]
  %5 = vst [vmem:[%s1] sm:$0xff] %v4
  %s6 = scalar_lea.vmem %s1, 8
  %7 = vst [vmem:[%s6] sm:$0xff] %v4

// kernel: tile.14
$region0: #{tile.14}
  %s0 = inlined_call_operand.vmem [shape: f32[16,32], index: 0, kind: input, shape index: {}]
  %s1 = inlined_call_operand.vmem [shape: f32[1,512], index: 1, kind: output, shape index: {}]
  $region1: #{tile.14} parent=0
    #allocation0 [shape = 'u8[16384]{0}', space=vmem, size = 0x4000, scoped, tag = 'scoped mem for output reshape']
    %v2 = vld [vmem:[%s0] ss:$4 sm:$0xf]
    %vm3 = vcmask 261120
    %4 = vst.msk [vmem:[#allocation0] ss:$8 sm:$0xf] %vm3, %v2
    %s5 = scalar_lea.vmem %s0, 3
    %v6 = vld [vmem:[%s5] ss:$4 sm:$0xf]
    %7 = vrot.lane.b32.xlu0 %v6, 96
    %v8 = vpop.permute.xlu0 %7
    %vm9 = vcmask 1048320
    %10 = vst.msk [vmem:[#allocation0] ss:$8 sm:$0xf] %vm9, %v8
    %s11 = scalar_lea.vmem %s0, 2
    %v12 = vld [vmem:[%s11] ss:$4 sm:$0xf]
    %13 = vrot.lane.b32.xlu0 %v12, 64
    %v14 = vpop.permute.xlu0 %13
    %vm15 = vcmask 785920
    %16 = vst.msk [vmem:[#allocation0] ss:$8 sm:$0xf] %vm15, %v14
    %s17 = scalar_lea.vmem %s0, 1
    %v18 = vld [vmem:[%s17] ss:$4 sm:$0xf]
    %19 = vrot.lane.b32.xlu0 %v18, 32
    %v20 = vpop.permute.xlu0 %19
    %vm21 = vcmask 523520
    %22 = vst.msk [vmem:[#allocation0] ss:$8 sm:$0xf] %vm21, %v20
    %s24 = ssub.s32 2, 1
    %v25 = vld [vmem:[#allocation0] sm:%s24]
    %s27 = ssub.s32 2, 1
    %28 = vst [vmem:[%s1] sm:%s27] %v25
    %s29 = scalar_lea.vmem [#allocation0], 8
    %v30 = vld [vmem:[%s29] sm:%s24]
    %s32 = ssub.s32 2, 1
    %s33 = scalar_lea.vmem %s1, 1
    %34 = vst [vmem:[%s33] sm:%s32] %v30
    %s35 = scalar_lea.vmem [#allocation0], 16
    %v36 = vld [vmem:[%s35] sm:%s24]
    %s38 = ssub.s32 2, 1
    %s39 = scalar_lea.vmem %s1, 2
    %40 = vst [vmem:[%s39] sm:%s38] %v36
    %s41 = scalar_lea.vmem [#allocation0], 24
    %v42 = vld [vmem:[%s41] sm:%s24]
    %s44 = ssub.s32 2, 1
    %s45 = scalar_lea.vmem %s1, 3
    %46 = vst [vmem:[%s45] sm:%s44] %v42

// kernel: tile.18
$region0: #{tile.18}
  #allocation0 [shape = 's32[1]{0}', space=sflag, size = 0x4, scoped, tag = 'scoped memory for tile.18']
  %s0 = inlined_call_operand.vmem [shape: f32[32], index: 0, kind: input, shape index: {}]
  %s1 = inlined_call_operand.vmem [shape: f32[8,32], index: 1, kind: output, shape index: {}]
  // Predicated region
  $region2: #{tile.18} parent=0 // pred_check
    _
  $region3: #{tile.18} parent=0 // pred_check_branch
    %3 = sbr.rel (0) target = $region5
  $region4: #{tile.18} parent=0 // pred_region
    _
  $region5: #{tile.18} parent=0 // pred_fallthru
    _
  %v4 = vld [vmem:[%s0] ss:$0 sm:$0xff]
  %5 = vst [vmem:[%s1] sm:$0xff] %v4

// kernel: tile.19
$region0: #{tile.19}
  %s0 = inlined_call_operand.vmem [shape: f32[8,32], index: 0, kind: input, shape index: {}]
  %s1 = inlined_call_operand.vmem [shape: f32[1,256], index: 1, kind: output, shape index: {}]
  $region1: #{tile.19} parent=0
    #allocation0 [shape = 'u8[8192]{0}', space=vmem, size = 0x2000, scoped, tag = 'scoped mem for output reshape']
    %s2 = smov 3
    %v3 = vld [vmem:[%s0] ss:$4 sm:%s2]
    %vm4 = vcmask 261120
    %5 = vst.msk [vmem:[#allocation0] ss:$8 sm:$0x3] %vm4, %v3
    %s6 = scalar_lea.vmem %s0, 3
    %s7 = smov 3
    %v8 = vld [vmem:[%s6] ss:$4 sm:%s7]
    %9 = vrot.lane.b32.xlu0 %v8, 96
    %v10 = vpop.permute.xlu0 %9
    %vm11 = vcmask 1048320
    %12 = vst.msk [vmem:[#allocation0] ss:$8 sm:$0x3] %vm11, %v10
    %s13 = scalar_lea.vmem %s0, 2
    %s14 = smov 3
    %v15 = vld [vmem:[%s13] ss:$4 sm:%s14]
    %16 = vrot.lane.b32.xlu0 %v15, 64
    %v17 = vpop.permute.xlu0 %16
    %vm18 = vcmask 785920
    %19 = vst.msk [vmem:[#allocation0] ss:$8 sm:$0x3] %vm18, %v17
    %s20 = scalar_lea.vmem %s0, 1
    %s21 = smov 3
    %v22 = vld [vmem:[%s20] ss:$4 sm:%s21]
    %23 = vrot.lane.b32.xlu0 %v22, 32
    %v24 = vpop.permute.xlu0 %23
    %vm25 = vcmask 523520
    %26 = vst.msk [vmem:[#allocation0] ss:$8 sm:$0x3] %vm25, %v24
    %s28 = ssub.s32 2, 1
    %v29 = vld [vmem:[#allocation0] sm:%s28]
    %s31 = ssub.s32 2, 1
    %32 = vst [vmem:[%s1] sm:%s31] %v29
    %s33 = scalar_lea.vmem [#allocation0], 8
    %v34 = vld [vmem:[%s33] sm:%s28]
    %s36 = ssub.s32 2, 1
    %s37 = scalar_lea.vmem %s1, 1
    %38 = vst [vmem:[%s37] sm:%s36] %v34

// kernel: optimized_block_forward.1
$region0: #{optimized_block_forward.1}
  #allocation0 [shape = 'u32[]', space=smem, size = 0x4, offset = 0x4, fixed_abs, tag = 'smem constant byte address 0x4 - core index']
  #allocation1 [shape = 'u32[72,128]{1,0:T(1,128)}', space=vmem, size = 0x9000, scoped, tag = 'internal scratch']
  %s0 = inlined_call_operand.vmem [shape: f32[32,256], index: 0, kind: input, shape index: {}]
  %s1 = inlined_call_operand.vmem [shape: bf16[3,32,32], index: 1, kind: input, shape index: {}]
  %s2 = inlined_call_operand.vmem [shape: bf16[3,256,512], index: 2, kind: input, shape index: {}]
  %s3 = inlined_call_operand.vmem [shape: f32[1,512], index: 3, kind: input, shape index: {}]
  %s4 = inlined_call_operand.vmem [shape: bf16[3,16,32], index: 4, kind: input, shape index: {}]
  %s5 = inlined_call_operand.vmem [shape: bf16[3,512,256], index: 5, kind: input, shape index: {}]
  %s6 = inlined_call_operand.vmem [shape: bf16[16,32], index: 6, kind: input, shape index: {}]
  %s7 = inlined_call_operand.vmem [shape: bf16[256,256], index: 7, kind: input, shape index: {}]
  %s8 = inlined_call_operand.vmem [shape: f32[1,256], index: 8, kind: input, shape index: {}]
  %s9 = inlined_call_operand.vmem [shape: f32[16,256], index: 9, kind: output, shape index: {}]
  %s10 = sld [smem:[#allocation0]]
  $region46: #{optimized_block_forward.1} parent=0
    _
  %s12 = ssub.s32 1, %s10
  %s13 = scalar_select 0, %s12, %s10
  // Predicated region
  $region2: #{optimized_block_forward.1} parent=0 // pred_check
    _
  $region3: #{optimized_block_forward.1} parent=0 // pred_check_branch
    %15 = sbr.rel (0) target = $region5
  $region4: #{optimized_block_forward.1} parent=0 // pred_region
    _
  $region5: #{optimized_block_forward.1} parent=0 // pred_fallthru
    _
  // Predicated region
  $region6: #{optimized_block_forward.1} parent=0 // pred_check
    _
  $region7: #{optimized_block_forward.1} parent=0 // pred_check_branch
    %17 = sbr.rel (0) target = $region9
  $region8: #{optimized_block_forward.1} parent=0 // pred_region
    _
  $region9: #{optimized_block_forward.1} parent=0 // pred_fallthru
    _
  // Predicated region
  $region10: #{optimized_block_forward.1} parent=0 // pred_check
    _
  $region11: #{optimized_block_forward.1} parent=0 // pred_check_branch
    %19 = sbr.rel (0) target = $region13
  $region12: #{optimized_block_forward.1} parent=0 // pred_region
    _
  $region13: #{optimized_block_forward.1} parent=0 // pred_fallthru
    _
  // Predicated region
  $region14: #{optimized_block_forward.1} parent=0 // pred_check
    _
  $region15: #{optimized_block_forward.1} parent=0 // pred_check_branch
    %21 = sbr.rel (0) target = $region17
  $region16: #{optimized_block_forward.1} parent=0 // pred_region
    _
  $region17: #{optimized_block_forward.1} parent=0 // pred_fallthru
    _
  // Predicated region
  $region18: #{optimized_block_forward.1} parent=0 // pred_check
    _
  $region19: #{optimized_block_forward.1} parent=0 // pred_check_branch
    %23 = sbr.rel (0) target = $region21
  $region20: #{optimized_block_forward.1} parent=0 // pred_region
    _
  $region21: #{optimized_block_forward.1} parent=0 // pred_fallthru
    _
  // Predicated region
  $region22: #{optimized_block_forward.1} parent=0 // pred_check
    _
  $region23: #{optimized_block_forward.1} parent=0 // pred_check_branch
    %25 = sbr.rel (0) target = $region25
  $region24: #{optimized_block_forward.1} parent=0 // pred_region
    _
  $region25: #{optimized_block_forward.1} parent=0 // pred_fallthru
    _
  // Predicated region
  $region26: #{optimized_block_forward.1} parent=0 // pred_check
    _
  $region27: #{optimized_block_forward.1} parent=0 // pred_check_branch
    %27 = sbr.rel (0) target = $region29
  $region28: #{optimized_block_forward.1} parent=0 // pred_region
    _
  $region29: #{optimized_block_forward.1} parent=0 // pred_fallthru
    _
  // Predicated region
  $region30: #{optimized_block_forward.1} parent=0 // pred_check
    _
  $region31: #{optimized_block_forward.1} parent=0 // pred_check_branch
    %29 = sbr.rel (0) target = $region33
  $region32: #{optimized_block_forward.1} parent=0 // pred_region
    _
  $region33: #{optimized_block_forward.1} parent=0 // pred_fallthru
    _
  // Predicated region
  $region34: #{optimized_block_forward.1} parent=0 // pred_check
    _
  $region35: #{optimized_block_forward.1} parent=0 // pred_check_branch
    %31 = sbr.rel (0) target = $region37
  $region36: #{optimized_block_forward.1} parent=0 // pred_region
    _
  $region37: #{optimized_block_forward.1} parent=0 // pred_fallthru
    _
  %v33 = vld [vmem:[%s0] sm:$0xff]
  %v34 = vld [vmem:[%s0 + $0x8] sm:$0xff]
  %v35 = vld [vmem:[%s0 + $0x10] sm:$0xff]
  %v36 = vld [vmem:[%s0 + $0x18] sm:$0xff]
  %v37 = vld [vmem:[%s0 + $0x20] sm:$0xff]
  %v38 = vld [vmem:[%s0 + $0x28] sm:$0xff]
  %v39 = vld [vmem:[%s0 + $0x30] sm:$0xff]
  %v40 = vld [vmem:[%s0 + $0x38] sm:$0xff]
  %v41 = vpack.c.bf16 %v35, %v33
  %v42 = vpack.c.bf16 %v36, %v34
  %v43 = vpack.c.bf16 %v39, %v37
  %v44 = vpack.c.bf16 %v40, %v38
  %v45 = vld [vmem:[%s1] sm:$0xf]
  %v46 = vld [vmem:[%s1 + $0x4] sm:$0xf]
  %v47 = vld [vmem:[%s1 + $0x8] sm:$0xf]
  %v48 = vld [vmem:[%s1 + $0xc] sm:$0xf]
  %v53 = vunpack.c.l.b16 %v45
  %v54 = vunpack.c.l.b16 %v46
  %v55 = vunpack.c.l.b16 %v47
  %v56 = vunpack.c.l.b16 %v48
  %v57 = vpack.c.b16 %v54, %v53
  %v58 = vpack.c.b16 %v56, %v55
  %vm59 = vcmask 261120
  %v61 = vsel %vm59, %v57, 0
  %v64 = vsel %vm59, %v58, 0
  %66 = vmatpush.bf16.msra.mxu0 0
  %67 = vmatpush.bf16.msra.mxu0 0
  %68 = vmatpush.bf16.msra.mxu0 0
  %69 = vmatpush.bf16.msra.mxu0 0
  %70 = vmatpush.bf16.msra.mxu0 0
  %71 = vmatpush.bf16.msra.mxu0 0
  %72 = vmatpush.bf16.msra.mxu0 %v43
  %73 = vmatpush.bf16.msra.mxu0 %v41
  %74 = vmatmul.bf16.gmra.mxu0 %v61
  %v75 = vpop.f32.mrf.mxu0
  %v76 = vadd.f32 0.0, %v75
  %v77 = vpop.f32.mrf.mxu0
  %v78 = vadd.f32 0.0, %v77
  %79 = vmatmul.bf16.gmra.mxu0 %v64
  %v80 = vpop.f32.mrf.mxu0
  %v81 = vadd.f32 0.0, %v80
  %v82 = vpop.f32.mrf.mxu0
  %v83 = vadd.f32 0.0, %v82
  %84 = vdwg.mxu0
  %85 = vmatpush.bf16.msra.mxu0 0
  %86 = vmatpush.bf16.msra.mxu0 0
  %87 = vmatpush.bf16.msra.mxu0 0
  %88 = vmatpush.bf16.msra.mxu0 0
  %89 = vmatpush.bf16.msra.mxu0 0
  %90 = vmatpush.bf16.msra.mxu0 0
  %91 = vmatpush.bf16.msra.mxu0 %v44
  %92 = vmatpush.bf16.msra.mxu0 %v42
  %93 = vmatmul.bf16.gmra.mxu0 %v61
  %v94 = vpop.f32.mrf.mxu0
  %v95 = vadd.f32 0.0, %v94
  %v96 = vpop.f32.mrf.mxu0
  %v97 = vadd.f32 0.0, %v96
  %98 = vmatmul.bf16.gmra.mxu0 %v64
  %v99 = vpop.f32.mrf.mxu0
  %v100 = vadd.f32 0.0, %v99
  %v101 = vpop.f32.mrf.mxu0
  %v102 = vadd.f32 0.0, %v101
  %103 = vdwg.mxu0
  %v104 = vpack.c.bf16 %v78, %v76
  %v105 = vpack.c.bf16 %v97, %v95
  %v106 = vpack.c.bf16 %v83, %v81
  %v107 = vpack.c.bf16 %v102, %v100
  %v108 = vld [vmem:[%s2] sm:$0xff]
  %v109 = vld [vmem:[%s2 + $0x8] sm:$0xff]
  %v110 = vld [vmem:[%s2 + $0x10] sm:$0xff]
  %v111 = vld [vmem:[%s2 + $0x18] sm:$0xff]
  %v112 = vld [vmem:[%s2 + $0x20] sm:$0xff]
  %v113 = vld [vmem:[%s2 + $0x28] sm:$0xff]
  %v114 = vld [vmem:[%s2 + $0x30] sm:$0xff]
  %v115 = vld [vmem:[%s2 + $0x38] sm:$0xff]
  %v116 = vld [vmem:[%s2 + $0x40] sm:$0xff]
  %v117 = vld [vmem:[%s2 + $0x48] sm:$0xff]
  %v118 = vld [vmem:[%s2 + $0x50] sm:$0xff]
  %v119 = vld [vmem:[%s2 + $0x58] sm:$0xff]
  %v120 = vld [vmem:[%s2 + $0x60] sm:$0xff]
  %v121 = vld [vmem:[%s2 + $0x68] sm:$0xff]
  %v122 = vld [vmem:[%s2 + $0x70] sm:$0xff]
  %v123 = vld [vmem:[%s2 + $0x78] sm:$0xff]
  %v124 = vld [vmem:[%s2 + $0x80] sm:$0xff]
  %v125 = vld [vmem:[%s2 + $0x88] sm:$0xff]
  %v126 = vld [vmem:[%s2 + $0x90] sm:$0xff]
  %v127 = vld [vmem:[%s2 + $0x98] sm:$0xff]
  %v128 = vld [vmem:[%s2 + $0xa0] sm:$0xff]
  %v129 = vld [vmem:[%s2 + $0xa8] sm:$0xff]
  %v130 = vld [vmem:[%s2 + $0xb0] sm:$0xff]
  %v131 = vld [vmem:[%s2 + $0xb8] sm:$0xff]
  %v132 = vld [vmem:[%s2 + $0xc0] sm:$0xff]
  %v133 = vld [vmem:[%s2 + $0xc8] sm:$0xff]
  %v134 = vld [vmem:[%s2 + $0xd0] sm:$0xff]
  %v135 = vld [vmem:[%s2 + $0xd8] sm:$0xff]
  %v136 = vld [vmem:[%s2 + $0xe0] sm:$0xff]
  %v137 = vld [vmem:[%s2 + $0xe8] sm:$0xff]
  %v138 = vld [vmem:[%s2 + $0xf0] sm:$0xff]
  %v139 = vld [vmem:[%s2 + $0xf8] sm:$0xff]
  %v140 = vld [vmem:[%s2 + $0x100] sm:$0xff]
  %v141 = vld [vmem:[%s2 + $0x108] sm:$0xff]
  %v142 = vld [vmem:[%s2 + $0x110] sm:$0xff]
  %v143 = vld [vmem:[%s2 + $0x118] sm:$0xff]
  %v144 = vld [vmem:[%s2 + $0x120] sm:$0xff]
  %v145 = vld [vmem:[%s2 + $0x128] sm:$0xff]
  %v146 = vld [vmem:[%s2 + $0x130] sm:$0xff]
  %v147 = vld [vmem:[%s2 + $0x138] sm:$0xff]
  %v148 = vld [vmem:[%s2 + $0x140] sm:$0xff]
  %v149 = vld [vmem:[%s2 + $0x148] sm:$0xff]
  %v150 = vld [vmem:[%s2 + $0x150] sm:$0xff]
  %v151 = vld [vmem:[%s2 + $0x158] sm:$0xff]
  %v152 = vld [vmem:[%s2 + $0x160] sm:$0xff]
  %v153 = vld [vmem:[%s2 + $0x168] sm:$0xff]
  %v154 = vld [vmem:[%s2 + $0x170] sm:$0xff]
  %v155 = vld [vmem:[%s2 + $0x178] sm:$0xff]
  %v156 = vld [vmem:[%s2 + $0x180] sm:$0xff]
  %v157 = vld [vmem:[%s2 + $0x188] sm:$0xff]
  %v158 = vld [vmem:[%s2 + $0x190] sm:$0xff]
  %v159 = vld [vmem:[%s2 + $0x198] sm:$0xff]
  %v160 = vld [vmem:[%s2 + $0x1a0] sm:$0xff]
  %v161 = vld [vmem:[%s2 + $0x1a8] sm:$0xff]
  %v162 = vld [vmem:[%s2 + $0x1b0] sm:$0xff]
  %v163 = vld [vmem:[%s2 + $0x1b8] sm:$0xff]
  %v164 = vld [vmem:[%s2 + $0x1c0] sm:$0xff]
  %v165 = vld [vmem:[%s2 + $0x1c8] sm:$0xff]
  %v166 = vld [vmem:[%s2 + $0x1d0] sm:$0xff]
  %v167 = vld [vmem:[%s2 + $0x1d8] sm:$0xff]
  %v168 = vld [vmem:[%s2 + $0x1e0] sm:$0xff]
  %v169 = vld [vmem:[%s2 + $0x1e8] sm:$0xff]
  %v170 = vld [vmem:[%s2 + $0x1f0] sm:$0xff]
  %v171 = vld [vmem:[%s2 + $0x1f8] sm:$0xff]
  %s172 = scalar_lea.vmem %s1, 16
  %v173 = vld [vmem:[%s172] sm:$0xf]
  %v174 = vld [vmem:[%s172 + $0x4] sm:$0xf]
  %v175 = vld [vmem:[%s172 + $0x8] sm:$0xf]
  %v176 = vld [vmem:[%s172 + $0xc] sm:$0xf]
  %v181 = vunpack.c.l.b16 %v173
  %v182 = vunpack.c.l.b16 %v174
  %v183 = vunpack.c.l.b16 %v175
  %v184 = vunpack.c.l.b16 %v176
  %v185 = vpack.c.b16 %v182, %v181
  %v186 = vpack.c.b16 %v184, %v183
  %v188 = vsel %vm59, %v185, 0
  %v191 = vsel %vm59, %v186, 0
  %193 = vmatpush.bf16.msra.mxu0 0
  %194 = vmatpush.bf16.msra.mxu0 0
  %195 = vmatpush.bf16.msra.mxu0 0
  %196 = vmatpush.bf16.msra.mxu0 0
  %197 = vmatpush.bf16.msra.mxu0 0
  %198 = vmatpush.bf16.msra.mxu0 0
  %199 = vmatpush.bf16.msra.mxu0 %v43
  %200 = vmatpush.bf16.msra.mxu0 %v41
  %201 = vmatmul.bf16.gmra.mxu0 %v188
  %v202 = vpop.f32.mrf.mxu0
  %v203 = vadd.f32 0.0, %v202
  %v204 = vpop.f32.mrf.mxu0
  %v205 = vadd.f32 0.0, %v204
  %206 = vmatmul.bf16.gmra.mxu0 %v191
  %v207 = vpop.f32.mrf.mxu0
  %v208 = vadd.f32 0.0, %v207
  %v209 = vpop.f32.mrf.mxu0
  %v210 = vadd.f32 0.0, %v209
  %211 = vdwg.mxu0
  %212 = vmatpush.bf16.msra.mxu0 0
  %213 = vmatpush.bf16.msra.mxu0 0
  %214 = vmatpush.bf16.msra.mxu0 0
  %215 = vmatpush.bf16.msra.mxu0 0
  %216 = vmatpush.bf16.msra.mxu0 0
  %217 = vmatpush.bf16.msra.mxu0 0
  %218 = vmatpush.bf16.msra.mxu0 %v44
  %219 = vmatpush.bf16.msra.mxu0 %v42
  %220 = vmatmul.bf16.gmra.mxu0 %v188
  %v221 = vpop.f32.mrf.mxu0
  %v222 = vadd.f32 0.0, %v221
  %v223 = vpop.f32.mrf.mxu0
  %v224 = vadd.f32 0.0, %v223
  %225 = vmatmul.bf16.gmra.mxu0 %v191
  %v226 = vpop.f32.mrf.mxu0
  %v227 = vadd.f32 0.0, %v226
  %v228 = vpop.f32.mrf.mxu0
  %v229 = vadd.f32 0.0, %v228
  %230 = vdwg.mxu0
  %v231 = vpack.c.bf16 %v205, %v203
  %v232 = vpack.c.bf16 %v224, %v222
  %v233 = vpack.c.bf16 %v210, %v208
  %v234 = vpack.c.bf16 %v229, %v227
  %s235 = scalar_lea.vmem %s2, 512
  %v236 = vld [vmem:[%s235] sm:$0xff]
  %v237 = vld [vmem:[%s235 + $0x8] sm:$0xff]
  %v238 = vld [vmem:[%s235 + $0x10] sm:$0xff]
  %v239 = vld [vmem:[%s235 + $0x18] sm:$0xff]
  %v240 = vld [vmem:[%s235 + $0x20] sm:$0xff]
  %v241 = vld [vmem:[%s235 + $0x28] sm:$0xff]
  %v242 = vld [vmem:[%s235 + $0x30] sm:$0xff]
  %v243 = vld [vmem:[%s235 + $0x38] sm:$0xff]
  %v244 = vld [vmem:[%s235 + $0x40] sm:$0xff]
  %v245 = vld [vmem:[%s235 + $0x48] sm:$0xff]
  %v246 = vld [vmem:[%s235 + $0x50] sm:$0xff]
  %v247 = vld [vmem:[%s235 + $0x58] sm:$0xff]
  %v248 = vld [vmem:[%s235 + $0x60] sm:$0xff]
  %v249 = vld [vmem:[%s235 + $0x68] sm:$0xff]
  %v250 = vld [vmem:[%s235 + $0x70] sm:$0xff]
  %v251 = vld [vmem:[%s235 + $0x78] sm:$0xff]
  %v252 = vld [vmem:[%s235 + $0x80] sm:$0xff]
  %v253 = vld [vmem:[%s235 + $0x88] sm:$0xff]
  %v254 = vld [vmem:[%s235 + $0x90] sm:$0xff]
  %v255 = vld [vmem:[%s235 + $0x98] sm:$0xff]
  %v256 = vld [vmem:[%s235 + $0xa0] sm:$0xff]
  %v257 = vld [vmem:[%s235 + $0xa8] sm:$0xff]
  %v258 = vld [vmem:[%s235 + $0xb0] sm:$0xff]
  %v259 = vld [vmem:[%s235 + $0xb8] sm:$0xff]
  %v260 = vld [vmem:[%s235 + $0xc0] sm:$0xff]
  %v261 = vld [vmem:[%s235 + $0xc8] sm:$0xff]
  %v262 = vld [vmem:[%s235 + $0xd0] sm:$0xff]
  %v263 = vld [vmem:[%s235 + $0xd8] sm:$0xff]
  %v264 = vld [vmem:[%s235 + $0xe0] sm:$0xff]
  %v265 = vld [vmem:[%s235 + $0xe8] sm:$0xff]
  %v266 = vld [vmem:[%s235 + $0xf0] sm:$0xff]
  %v267 = vld [vmem:[%s235 + $0xf8] sm:$0xff]
  %v268 = vld [vmem:[%s235 + $0x100] sm:$0xff]
  %v269 = vld [vmem:[%s235 + $0x108] sm:$0xff]
  %v270 = vld [vmem:[%s235 + $0x110] sm:$0xff]
  %v271 = vld [vmem:[%s235 + $0x118] sm:$0xff]
  %v272 = vld [vmem:[%s235 + $0x120] sm:$0xff]
  %v273 = vld [vmem:[%s235 + $0x128] sm:$0xff]
  %v274 = vld [vmem:[%s235 + $0x130] sm:$0xff]
  %v275 = vld [vmem:[%s235 + $0x138] sm:$0xff]
  %v276 = vld [vmem:[%s235 + $0x140] sm:$0xff]
  %v277 = vld [vmem:[%s235 + $0x148] sm:$0xff]
  %v278 = vld [vmem:[%s235 + $0x150] sm:$0xff]
  %v279 = vld [vmem:[%s235 + $0x158] sm:$0xff]
  %v280 = vld [vmem:[%s235 + $0x160] sm:$0xff]
  %v281 = vld [vmem:[%s235 + $0x168] sm:$0xff]
  %v282 = vld [vmem:[%s235 + $0x170] sm:$0xff]
  %v283 = vld [vmem:[%s235 + $0x178] sm:$0xff]
  %v284 = vld [vmem:[%s235 + $0x180] sm:$0xff]
  %v285 = vld [vmem:[%s235 + $0x188] sm:$0xff]
  %v286 = vld [vmem:[%s235 + $0x190] sm:$0xff]
  %v287 = vld [vmem:[%s235 + $0x198] sm:$0xff]
  %v288 = vld [vmem:[%s235 + $0x1a0] sm:$0xff]
  %v289 = vld [vmem:[%s235 + $0x1a8] sm:$0xff]
  %v290 = vld [vmem:[%s235 + $0x1b0] sm:$0xff]
  %v291 = vld [vmem:[%s235 + $0x1b8] sm:$0xff]
  %v292 = vld [vmem:[%s235 + $0x1c0] sm:$0xff]
  %v293 = vld [vmem:[%s235 + $0x1c8] sm:$0xff]
  %v294 = vld [vmem:[%s235 + $0x1d0] sm:$0xff]
  %v295 = vld [vmem:[%s235 + $0x1d8] sm:$0xff]
  %v296 = vld [vmem:[%s235 + $0x1e0] sm:$0xff]
  %v297 = vld [vmem:[%s235 + $0x1e8] sm:$0xff]
  %v298 = vld [vmem:[%s235 + $0x1f0] sm:$0xff]
  %v299 = vld [vmem:[%s235 + $0x1f8] sm:$0xff]
  %v364 = vunpack.c.l.b16 %v236
  %v365 = vunpack.c.h.b16 %v236
  %v366 = vunpack.c.l.b16 %v237
  %v367 = vunpack.c.h.b16 %v237
  %v368 = vunpack.c.l.b16 %v238
  %v369 = vunpack.c.h.b16 %v238
  %v370 = vunpack.c.l.b16 %v239
  %v371 = vunpack.c.h.b16 %v239
  %v372 = vunpack.c.l.b16 %v240
  %v373 = vunpack.c.h.b16 %v240
  %v374 = vunpack.c.l.b16 %v241
  %v375 = vunpack.c.h.b16 %v241
  %v376 = vunpack.c.l.b16 %v242
  %v377 = vunpack.c.h.b16 %v242
  %v378 = vunpack.c.l.b16 %v243
  %v379 = vunpack.c.h.b16 %v243
  %v380 = vunpack.c.l.b16 %v244
  %v381 = vunpack.c.h.b16 %v244
  %v382 = vunpack.c.l.b16 %v245
  %v383 = vunpack.c.h.b16 %v245
  %v384 = vunpack.c.l.b16 %v246
  %v385 = vunpack.c.h.b16 %v246
  %v386 = vunpack.c.l.b16 %v247
  %v387 = vunpack.c.h.b16 %v247
  %v388 = vunpack.c.l.b16 %v248
  %v389 = vunpack.c.h.b16 %v248
  %v390 = vunpack.c.l.b16 %v249
  %v391 = vunpack.c.h.b16 %v249
  %v392 = vunpack.c.l.b16 %v250
  %v393 = vunpack.c.h.b16 %v250
  %v394 = vunpack.c.l.b16 %v251
  %v395 = vunpack.c.h.b16 %v251
  %v396 = vunpack.c.l.b16 %v252
  %v397 = vunpack.c.h.b16 %v252
  %v398 = vunpack.c.l.b16 %v253
  %v399 = vunpack.c.h.b16 %v253
  %v400 = vunpack.c.l.b16 %v254
  %v401 = vunpack.c.h.b16 %v254
  %v402 = vunpack.c.l.b16 %v255
  %v403 = vunpack.c.h.b16 %v255
  %v404 = vunpack.c.l.b16 %v256
  %v405 = vunpack.c.h.b16 %v256
  %v406 = vunpack.c.l.b16 %v257
  %v407 = vunpack.c.h.b16 %v257
  %v408 = vunpack.c.l.b16 %v258
  %v409 = vunpack.c.h.b16 %v258
  %v410 = vunpack.c.l.b16 %v259
  %v411 = vunpack.c.h.b16 %v259
  %v412 = vunpack.c.l.b16 %v260
  %v413 = vunpack.c.h.b16 %v260
  %v414 = vunpack.c.l.b16 %v261
  %v415 = vunpack.c.h.b16 %v261
  %v416 = vunpack.c.l.b16 %v262
  %v417 = vunpack.c.h.b16 %v262
  %v418 = vunpack.c.l.b16 %v263
  %v419 = vunpack.c.h.b16 %v263
  %v420 = vunpack.c.l.b16 %v264
  %v421 = vunpack.c.h.b16 %v264
  %v422 = vunpack.c.l.b16 %v265
  %v423 = vunpack.c.h.b16 %v265
  %v424 = vunpack.c.l.b16 %v266
  %v425 = vunpack.c.h.b16 %v266
  %v426 = vunpack.c.l.b16 %v267
  %v427 = vunpack.c.h.b16 %v267
  %v428 = vunpack.c.l.b16 %v268
  %v429 = vunpack.c.h.b16 %v268
  %v430 = vunpack.c.l.b16 %v269
  %v431 = vunpack.c.h.b16 %v269
  %v432 = vunpack.c.l.b16 %v270
  %v433 = vunpack.c.h.b16 %v270
  %v434 = vunpack.c.l.b16 %v271
  %v435 = vunpack.c.h.b16 %v271
  %v436 = vunpack.c.l.b16 %v272
  %v437 = vunpack.c.h.b16 %v272
  %v438 = vunpack.c.l.b16 %v273
  %v439 = vunpack.c.h.b16 %v273
  %v440 = vunpack.c.l.b16 %v274
  %v441 = vunpack.c.h.b16 %v274
  %v442 = vunpack.c.l.b16 %v275
  %v443 = vunpack.c.h.b16 %v275
  %v444 = vunpack.c.l.b16 %v276
  %v445 = vunpack.c.h.b16 %v276
  %v446 = vunpack.c.l.b16 %v277
  %v447 = vunpack.c.h.b16 %v277
  %v448 = vunpack.c.l.b16 %v278
  %v449 = vunpack.c.h.b16 %v278
  %v450 = vunpack.c.l.b16 %v279
  %v451 = vunpack.c.h.b16 %v279
  %v452 = vunpack.c.l.b16 %v280
  %v453 = vunpack.c.h.b16 %v280
  %v454 = vunpack.c.l.b16 %v281
  %v455 = vunpack.c.h.b16 %v281
  %v456 = vunpack.c.l.b16 %v282
  %v457 = vunpack.c.h.b16 %v282
  %v458 = vunpack.c.l.b16 %v283
  %v459 = vunpack.c.h.b16 %v283
  %v460 = vunpack.c.l.b16 %v284
  %v461 = vunpack.c.h.b16 %v284
  %v462 = vunpack.c.l.b16 %v285
  %v463 = vunpack.c.h.b16 %v285
  %v464 = vunpack.c.l.b16 %v286
  %v465 = vunpack.c.h.b16 %v286
  %v466 = vunpack.c.l.b16 %v287
  %v467 = vunpack.c.h.b16 %v287
  %v468 = vunpack.c.l.b16 %v288
  %v469 = vunpack.c.h.b16 %v288
  %v470 = vunpack.c.l.b16 %v289
  %v471 = vunpack.c.h.b16 %v289
  %v472 = vunpack.c.l.b16 %v290
  %v473 = vunpack.c.h.b16 %v290
  %v474 = vunpack.c.l.b16 %v291
  %v475 = vunpack.c.h.b16 %v291
  %v476 = vunpack.c.l.b16 %v292
  %v477 = vunpack.c.h.b16 %v292
  %v478 = vunpack.c.l.b16 %v293
  %v479 = vunpack.c.h.b16 %v293
  %v480 = vunpack.c.l.b16 %v294
  %v481 = vunpack.c.h.b16 %v294
  %v482 = vunpack.c.l.b16 %v295
  %v483 = vunpack.c.h.b16 %v295
  %v484 = vunpack.c.l.b16 %v296
  %v485 = vunpack.c.h.b16 %v296
  %v486 = vunpack.c.l.b16 %v297
  %v487 = vunpack.c.h.b16 %v297
  %v488 = vunpack.c.l.b16 %v298
  %v489 = vunpack.c.h.b16 %v298
  %v490 = vunpack.c.l.b16 %v299
  %v491 = vunpack.c.h.b16 %v299
  %v492 = vpack.c.b16 %v368, %v364
  %v493 = vpack.c.b16 %v369, %v365
  %v494 = vpack.c.b16 %v370, %v366
  %v495 = vpack.c.b16 %v371, %v367
  %v496 = vpack.c.b16 %v376, %v372
  %v497 = vpack.c.b16 %v377, %v373
  %v498 = vpack.c.b16 %v378, %v374
  %v499 = vpack.c.b16 %v379, %v375
  %v500 = vpack.c.b16 %v384, %v380
  %v501 = vpack.c.b16 %v385, %v381
  %v502 = vpack.c.b16 %v386, %v382
  %v503 = vpack.c.b16 %v387, %v383
  %v504 = vpack.c.b16 %v392, %v388
  %v505 = vpack.c.b16 %v393, %v389
  %v506 = vpack.c.b16 %v394, %v390
  %v507 = vpack.c.b16 %v395, %v391
  %v508 = vpack.c.b16 %v400, %v396
  %v509 = vpack.c.b16 %v401, %v397
  %v510 = vpack.c.b16 %v402, %v398
  %v511 = vpack.c.b16 %v403, %v399
  %v512 = vpack.c.b16 %v408, %v404
  %v513 = vpack.c.b16 %v409, %v405
  %v514 = vpack.c.b16 %v410, %v406
  %v515 = vpack.c.b16 %v411, %v407
  %v516 = vpack.c.b16 %v416, %v412
  %v517 = vpack.c.b16 %v417, %v413
  %v518 = vpack.c.b16 %v418, %v414
  %v519 = vpack.c.b16 %v419, %v415
  %v520 = vpack.c.b16 %v424, %v420
  %v521 = vpack.c.b16 %v425, %v421
  %v522 = vpack.c.b16 %v426, %v422
  %v523 = vpack.c.b16 %v427, %v423
  %v524 = vpack.c.b16 %v432, %v428
  %v525 = vpack.c.b16 %v433, %v429
  %v526 = vpack.c.b16 %v434, %v430
  %v527 = vpack.c.b16 %v435, %v431
  %v528 = vpack.c.b16 %v440, %v436
  %v529 = vpack.c.b16 %v441, %v437
  %v530 = vpack.c.b16 %v442, %v438
  %v531 = vpack.c.b16 %v443, %v439
  %v532 = vpack.c.b16 %v448, %v444
  %v533 = vpack.c.b16 %v449, %v445
  %v534 = vpack.c.b16 %v450, %v446
  %v535 = vpack.c.b16 %v451, %v447
  %v536 = vpack.c.b16 %v456, %v452
  %v537 = vpack.c.b16 %v457, %v453
  %v538 = vpack.c.b16 %v458, %v454
  %v539 = vpack.c.b16 %v459, %v455
  %v540 = vpack.c.b16 %v464, %v460
  %v541 = vpack.c.b16 %v465, %v461
  %v542 = vpack.c.b16 %v466, %v462
  %v543 = vpack.c.b16 %v467, %v463
  %v544 = vpack.c.b16 %v472, %v468
  %v545 = vpack.c.b16 %v473, %v469
  %v546 = vpack.c.b16 %v474, %v470
  %v547 = vpack.c.b16 %v475, %v471
  %v548 = vpack.c.b16 %v480, %v476
  %v549 = vpack.c.b16 %v481, %v477
  %v550 = vpack.c.b16 %v482, %v478
  %v551 = vpack.c.b16 %v483, %v479
  %v552 = vpack.c.b16 %v488, %v484
  %v553 = vpack.c.b16 %v489, %v485
  %v554 = vpack.c.b16 %v490, %v486
  %v555 = vpack.c.b16 %v491, %v487
  %620 = vmatpush.bf16.msra.mxu0 %v520
  %621 = vmatpush.bf16.msra.mxu0 %v516
  %622 = vmatpush.bf16.msra.mxu0 %v512
  %623 = vmatpush.bf16.msra.mxu0 %v508
  %624 = vmatpush.bf16.msra.mxu0 %v504
  %625 = vmatpush.bf16.msra.mxu0 %v500
  %626 = vmatpush.bf16.msra.mxu0 %v496
  %627 = vmatpush.bf16.msra.mxu0 %v492
  %628 = vmatmul.bf16.gmra.mxu0 %v231
  %v629 = vpop.f32.mrf.mxu0
  %v630 = vadd.f32 0.0, %v629
  %v631 = vpop.f32.mrf.mxu0
  %v632 = vadd.f32 0.0, %v631
  %633 = vmatmul.bf16.gmra.mxu0 %v233
  %v634 = vpop.f32.mrf.mxu0
  %v635 = vadd.f32 0.0, %v634
  %v636 = vpop.f32.mrf.mxu0
  %v637 = vadd.f32 0.0, %v636
  %638 = vdwg.mxu0
  %639 = vmatpush.bf16.msra.mxu0 %v552
  %640 = vmatpush.bf16.msra.mxu0 %v548
  %641 = vmatpush.bf16.msra.mxu0 %v544
  %642 = vmatpush.bf16.msra.mxu0 %v540
  %643 = vmatpush.bf16.msra.mxu0 %v536
  %644 = vmatpush.bf16.msra.mxu0 %v532
  %645 = vmatpush.bf16.msra.mxu0 %v528
  %646 = vmatpush.bf16.msra.mxu0 %v524
  %647 = vmatmul.bf16.gmra.mxu0 %v232
  %v648 = vpop.f32.mrf.mxu0
  %v649 = vadd.f32 %v630, %v648
  %v650 = vpop.f32.mrf.mxu0
  %v651 = vadd.f32 %v632, %v650
  %652 = vmatmul.bf16.gmra.mxu0 %v234
  %v653 = vpop.f32.mrf.mxu0
  %v654 = vadd.f32 %v635, %v653
  %v655 = vpop.f32.mrf.mxu0
  %v656 = vadd.f32 %v637, %v655
  %657 = vdwg.mxu0
  %658 = vmatpush.bf16.msra.mxu0 %v521
  %659 = vmatpush.bf16.msra.mxu0 %v517
  %660 = vmatpush.bf16.msra.mxu0 %v513
  %661 = vmatpush.bf16.msra.mxu0 %v509
  %662 = vmatpush.bf16.msra.mxu0 %v505
  %663 = vmatpush.bf16.msra.mxu0 %v501
  %664 = vmatpush.bf16.msra.mxu0 %v497
  %665 = vmatpush.bf16.msra.mxu0 %v493
  %666 = vmatmul.bf16.gmra.mxu0 %v231
  %v667 = vpop.f32.mrf.mxu0
  %v668 = vadd.f32 0.0, %v667
  %v669 = vpop.f32.mrf.mxu0
  %v670 = vadd.f32 0.0, %v669
  %671 = vmatmul.bf16.gmra.mxu0 %v233
  %v672 = vpop.f32.mrf.mxu0
  %v673 = vadd.f32 0.0, %v672
  %v674 = vpop.f32.mrf.mxu0
  %v675 = vadd.f32 0.0, %v674
  %676 = vdwg.mxu0
  %677 = vmatpush.bf16.msra.mxu0 %v553
  %678 = vmatpush.bf16.msra.mxu0 %v549
  %679 = vmatpush.bf16.msra.mxu0 %v545
  %680 = vmatpush.bf16.msra.mxu0 %v541
  %681 = vmatpush.bf16.msra.mxu0 %v537
  %682 = vmatpush.bf16.msra.mxu0 %v533
  %683 = vmatpush.bf16.msra.mxu0 %v529
  %684 = vmatpush.bf16.msra.mxu0 %v525
  %685 = vmatmul.bf16.gmra.mxu0 %v232
  %v686 = vpop.f32.mrf.mxu0
  %v687 = vadd.f32 %v668, %v686
  %v688 = vpop.f32.mrf.mxu0
  %v689 = vadd.f32 %v670, %v688
  %690 = vmatmul.bf16.gmra.mxu0 %v234
  %v691 = vpop.f32.mrf.mxu0
  %v692 = vadd.f32 %v673, %v691
  %v693 = vpop.f32.mrf.mxu0
  %v694 = vadd.f32 %v675, %v693
  %695 = vdwg.mxu0
  %696 = vmatpush.bf16.msra.mxu0 %v522
  %697 = vmatpush.bf16.msra.mxu0 %v518
  %698 = vmatpush.bf16.msra.mxu0 %v514
  %699 = vmatpush.bf16.msra.mxu0 %v510
  %700 = vmatpush.bf16.msra.mxu0 %v506
  %701 = vmatpush.bf16.msra.mxu0 %v502
  %702 = vmatpush.bf16.msra.mxu0 %v498
  %703 = vmatpush.bf16.msra.mxu0 %v494
  %704 = vmatmul.bf16.gmra.mxu0 %v231
  %v705 = vpop.f32.mrf.mxu0
  %v706 = vadd.f32 0.0, %v705
  %v707 = vpop.f32.mrf.mxu0
  %v708 = vadd.f32 0.0, %v707
  %709 = vmatmul.bf16.gmra.mxu0 %v233
  %v710 = vpop.f32.mrf.mxu0
  %v711 = vadd.f32 0.0, %v710
  %v712 = vpop.f32.mrf.mxu0
  %v713 = vadd.f32 0.0, %v712
  %714 = vdwg.mxu0
  %715 = vmatpush.bf16.msra.mxu0 %v554
  %716 = vmatpush.bf16.msra.mxu0 %v550
  %717 = vmatpush.bf16.msra.mxu0 %v546
  %718 = vmatpush.bf16.msra.mxu0 %v542
  %719 = vmatpush.bf16.msra.mxu0 %v538
  %720 = vmatpush.bf16.msra.mxu0 %v534
  %721 = vmatpush.bf16.msra.mxu0 %v530
  %722 = vmatpush.bf16.msra.mxu0 %v526
  %723 = vmatmul.bf16.gmra.mxu0 %v232
  %v724 = vpop.f32.mrf.mxu0
  %v725 = vadd.f32 %v706, %v724
  %v726 = vpop.f32.mrf.mxu0
  %v727 = vadd.f32 %v708, %v726
  %728 = vmatmul.bf16.gmra.mxu0 %v234
  %v729 = vpop.f32.mrf.mxu0
  %v730 = vadd.f32 %v711, %v729
  %v731 = vpop.f32.mrf.mxu0
  %v732 = vadd.f32 %v713, %v731
  %733 = vdwg.mxu0
  %734 = vmatpush.bf16.msra.mxu0 %v523
  %735 = vmatpush.bf16.msra.mxu0 %v519
  %736 = vmatpush.bf16.msra.mxu0 %v515
  %737 = vmatpush.bf16.msra.mxu0 %v511
  %738 = vmatpush.bf16.msra.mxu0 %v507
  %739 = vmatpush.bf16.msra.mxu0 %v503
  %740 = vmatpush.bf16.msra.mxu0 %v499
  %741 = vmatpush.bf16.msra.mxu0 %v495
  %742 = vmatmul.bf16.gmra.mxu0 %v231
  %v743 = vpop.f32.mrf.mxu0
  %v744 = vadd.f32 0.0, %v743
  %v745 = vpop.f32.mrf.mxu0
  %v746 = vadd.f32 0.0, %v745
  %747 = vmatmul.bf16.gmra.mxu0 %v233
  %v748 = vpop.f32.mrf.mxu0
  %v749 = vadd.f32 0.0, %v748
  %v750 = vpop.f32.mrf.mxu0
  %v751 = vadd.f32 0.0, %v750
  %752 = vdwg.mxu0
  %753 = vmatpush.bf16.msra.mxu0 %v555
  %754 = vmatpush.bf16.msra.mxu0 %v551
  %755 = vmatpush.bf16.msra.mxu0 %v547
  %756 = vmatpush.bf16.msra.mxu0 %v543
  %757 = vmatpush.bf16.msra.mxu0 %v539
  %758 = vmatpush.bf16.msra.mxu0 %v535
  %759 = vmatpush.bf16.msra.mxu0 %v531
  %760 = vmatpush.bf16.msra.mxu0 %v527
  %761 = vmatmul.bf16.gmra.mxu0 %v232
  %v762 = vpop.f32.mrf.mxu0
  %v763 = vadd.f32 %v744, %v762
  %v764 = vpop.f32.mrf.mxu0
  %v765 = vadd.f32 %v746, %v764
  %766 = vmatmul.bf16.gmra.mxu0 %v234
  %v767 = vpop.f32.mrf.mxu0
  %v768 = vadd.f32 %v749, %v767
  %v769 = vpop.f32.mrf.mxu0
  %v770 = vadd.f32 %v751, %v769
  %771 = vdwg.mxu0
  %v836 = vunpack.c.l.b16 %v108
  %v837 = vunpack.c.h.b16 %v108
  %v838 = vunpack.c.l.b16 %v109
  %v839 = vunpack.c.h.b16 %v109
  %v840 = vunpack.c.l.b16 %v110
  %v841 = vunpack.c.h.b16 %v110
  %v842 = vunpack.c.l.b16 %v111
  %v843 = vunpack.c.h.b16 %v111
  %v844 = vunpack.c.l.b16 %v112
  %v845 = vunpack.c.h.b16 %v112
  %v846 = vunpack.c.l.b16 %v113
  %v847 = vunpack.c.h.b16 %v113
  %v848 = vunpack.c.l.b16 %v114
  %v849 = vunpack.c.h.b16 %v114
  %v850 = vunpack.c.l.b16 %v115
  %v851 = vunpack.c.h.b16 %v115
  %v852 = vunpack.c.l.b16 %v116
  %v853 = vunpack.c.h.b16 %v116
  %v854 = vunpack.c.l.b16 %v117
  %v855 = vunpack.c.h.b16 %v117
  %v856 = vunpack.c.l.b16 %v118
  %v857 = vunpack.c.h.b16 %v118
  %v858 = vunpack.c.l.b16 %v119
  %v859 = vunpack.c.h.b16 %v119
  %v860 = vunpack.c.l.b16 %v120
  %v861 = vunpack.c.h.b16 %v120
  %v862 = vunpack.c.l.b16 %v121
  %v863 = vunpack.c.h.b16 %v121
  %v864 = vunpack.c.l.b16 %v122
  %v865 = vunpack.c.h.b16 %v122
  %v866 = vunpack.c.l.b16 %v123
  %v867 = vunpack.c.h.b16 %v123
  %v868 = vunpack.c.l.b16 %v124
  %v869 = vunpack.c.h.b16 %v124
  %v870 = vunpack.c.l.b16 %v125
  %v871 = vunpack.c.h.b16 %v125
  %v872 = vunpack.c.l.b16 %v126
  %v873 = vunpack.c.h.b16 %v126
  %v874 = vunpack.c.l.b16 %v127
  %v875 = vunpack.c.h.b16 %v127
  %v876 = vunpack.c.l.b16 %v128
  %v877 = vunpack.c.h.b16 %v128
  %v878 = vunpack.c.l.b16 %v129
  %v879 = vunpack.c.h.b16 %v129
  %v880 = vunpack.c.l.b16 %v130
  %v881 = vunpack.c.h.b16 %v130
  %v882 = vunpack.c.l.b16 %v131
  %v883 = vunpack.c.h.b16 %v131
  %v884 = vunpack.c.l.b16 %v132
  %v885 = vunpack.c.h.b16 %v132
  %v886 = vunpack.c.l.b16 %v133
  %v887 = vunpack.c.h.b16 %v133
  %v888 = vunpack.c.l.b16 %v134
  %v889 = vunpack.c.h.b16 %v134
  %v890 = vunpack.c.l.b16 %v135
  %v891 = vunpack.c.h.b16 %v135
  %v892 = vunpack.c.l.b16 %v136
  %v893 = vunpack.c.h.b16 %v136
  %v894 = vunpack.c.l.b16 %v137
  %v895 = vunpack.c.h.b16 %v137
  %v896 = vunpack.c.l.b16 %v138
  %v897 = vunpack.c.h.b16 %v138
  %v898 = vunpack.c.l.b16 %v139
  %v899 = vunpack.c.h.b16 %v139
  %v900 = vunpack.c.l.b16 %v140
  %v901 = vunpack.c.h.b16 %v140
  %v902 = vunpack.c.l.b16 %v141
  %v903 = vunpack.c.h.b16 %v141
  %v904 = vunpack.c.l.b16 %v142
  %v905 = vunpack.c.h.b16 %v142
  %v906 = vunpack.c.l.b16 %v143
  %v907 = vunpack.c.h.b16 %v143
  %v908 = vunpack.c.l.b16 %v144
  %v909 = vunpack.c.h.b16 %v144
  %v910 = vunpack.c.l.b16 %v145
  %v911 = vunpack.c.h.b16 %v145
  %v912 = vunpack.c.l.b16 %v146
  %v913 = vunpack.c.h.b16 %v146
  %v914 = vunpack.c.l.b16 %v147
  %v915 = vunpack.c.h.b16 %v147
  %v916 = vunpack.c.l.b16 %v148
  %v917 = vunpack.c.h.b16 %v148
  %v918 = vunpack.c.l.b16 %v149
  %v919 = vunpack.c.h.b16 %v149
  %v920 = vunpack.c.l.b16 %v150
  %v921 = vunpack.c.h.b16 %v150
  %v922 = vunpack.c.l.b16 %v151
  %v923 = vunpack.c.h.b16 %v151
  %v924 = vunpack.c.l.b16 %v152
  %v925 = vunpack.c.h.b16 %v152
  %v926 = vunpack.c.l.b16 %v153
  %v927 = vunpack.c.h.b16 %v153
  %v928 = vunpack.c.l.b16 %v154
  %v929 = vunpack.c.h.b16 %v154
  %v930 = vunpack.c.l.b16 %v155
  %v931 = vunpack.c.h.b16 %v155
  %v932 = vunpack.c.l.b16 %v156
  %v933 = vunpack.c.h.b16 %v156
  %v934 = vunpack.c.l.b16 %v157
  %v935 = vunpack.c.h.b16 %v157
  %v936 = vunpack.c.l.b16 %v158
  %v937 = vunpack.c.h.b16 %v158
  %v938 = vunpack.c.l.b16 %v159
  %v939 = vunpack.c.h.b16 %v159
  %v940 = vunpack.c.l.b16 %v160
  %v941 = vunpack.c.h.b16 %v160
  %v942 = vunpack.c.l.b16 %v161
  %v943 = vunpack.c.h.b16 %v161
  %v944 = vunpack.c.l.b16 %v162
  %v945 = vunpack.c.h.b16 %v162
  %v946 = vunpack.c.l.b16 %v163
  %v947 = vunpack.c.h.b16 %v163
  %v948 = vunpack.c.l.b16 %v164
  %v949 = vunpack.c.h.b16 %v164
  %v950 = vunpack.c.l.b16 %v165
  %v951 = vunpack.c.h.b16 %v165
  %v952 = vunpack.c.l.b16 %v166
  %v953 = vunpack.c.h.b16 %v166
  %v954 = vunpack.c.l.b16 %v167
  %v955 = vunpack.c.h.b16 %v167
  %v956 = vunpack.c.l.b16 %v168
  %v957 = vunpack.c.h.b16 %v168
  %v958 = vunpack.c.l.b16 %v169
  %v959 = vunpack.c.h.b16 %v169
  %v960 = vunpack.c.l.b16 %v170
  %v961 = vunpack.c.h.b16 %v170
  %v962 = vunpack.c.l.b16 %v171
  %v963 = vunpack.c.h.b16 %v171
  %v964 = vpack.c.b16 %v840, %v836
  %v965 = vpack.c.b16 %v841, %v837
  %v966 = vpack.c.b16 %v842, %v838
  %v967 = vpack.c.b16 %v843, %v839
  %v968 = vpack.c.b16 %v848, %v844
  %v969 = vpack.c.b16 %v849, %v845
  %v970 = vpack.c.b16 %v850, %v846
  %v971 = vpack.c.b16 %v851, %v847
  %v972 = vpack.c.b16 %v856, %v852
  %v973 = vpack.c.b16 %v857, %v853
  %v974 = vpack.c.b16 %v858, %v854
  %v975 = vpack.c.b16 %v859, %v855
  %v976 = vpack.c.b16 %v864, %v860
  %v977 = vpack.c.b16 %v865, %v861
  %v978 = vpack.c.b16 %v866, %v862
  %v979 = vpack.c.b16 %v867, %v863
  %v980 = vpack.c.b16 %v872, %v868
  %v981 = vpack.c.b16 %v873, %v869
  %v982 = vpack.c.b16 %v874, %v870
  %v983 = vpack.c.b16 %v875, %v871
  %v984 = vpack.c.b16 %v880, %v876
  %v985 = vpack.c.b16 %v881, %v877
  %v986 = vpack.c.b16 %v882, %v878
  %v987 = vpack.c.b16 %v883, %v879
  %v988 = vpack.c.b16 %v888, %v884
  %v989 = vpack.c.b16 %v889, %v885
  %v990 = vpack.c.b16 %v890, %v886
  %v991 = vpack.c.b16 %v891, %v887
  %v992 = vpack.c.b16 %v896, %v892
  %v993 = vpack.c.b16 %v897, %v893
  %v994 = vpack.c.b16 %v898, %v894
  %v995 = vpack.c.b16 %v899, %v895
  %v996 = vpack.c.b16 %v904, %v900
  %v997 = vpack.c.b16 %v905, %v901
  %v998 = vpack.c.b16 %v906, %v902
  %v999 = vpack.c.b16 %v907, %v903
  %v1000 = vpack.c.b16 %v912, %v908
  %v1001 = vpack.c.b16 %v913, %v909
  %v1002 = vpack.c.b16 %v914, %v910
  %v1003 = vpack.c.b16 %v915, %v911
  %v1004 = vpack.c.b16 %v920, %v916
  %v1005 = vpack.c.b16 %v921, %v917
  %v1006 = vpack.c.b16 %v922, %v918
  %v1007 = vpack.c.b16 %v923, %v919
  %v1008 = vpack.c.b16 %v928, %v924
  %v1009 = vpack.c.b16 %v929, %v925
  %v1010 = vpack.c.b16 %v930, %v926
  %v1011 = vpack.c.b16 %v931, %v927
  %v1012 = vpack.c.b16 %v936, %v932
  %v1013 = vpack.c.b16 %v937, %v933
  %v1014 = vpack.c.b16 %v938, %v934
  %v1015 = vpack.c.b16 %v939, %v935
  %v1016 = vpack.c.b16 %v944, %v940
  %v1017 = vpack.c.b16 %v945, %v941
  %v1018 = vpack.c.b16 %v946, %v942
  %v1019 = vpack.c.b16 %v947, %v943
  %v1020 = vpack.c.b16 %v952, %v948
  %v1021 = vpack.c.b16 %v953, %v949
  %v1022 = vpack.c.b16 %v954, %v950
  %v1023 = vpack.c.b16 %v955, %v951
  %v1024 = vpack.c.b16 %v960, %v956
  %v1025 = vpack.c.b16 %v961, %v957
  %v1026 = vpack.c.b16 %v962, %v958
  %v1027 = vpack.c.b16 %v963, %v959
  %1092 = vmatpush.bf16.msra.mxu0 %v992
  %1093 = vmatpush.bf16.msra.mxu0 %v988
  %1094 = vmatpush.bf16.msra.mxu0 %v984
  %1095 = vmatpush.bf16.msra.mxu0 %v980
  %1096 = vmatpush.bf16.msra.mxu0 %v976
  %1097 = vmatpush.bf16.msra.mxu0 %v972
  %1098 = vmatpush.bf16.msra.mxu0 %v968
  %1099 = vmatpush.bf16.msra.mxu0 %v964
  %1100 = vmatmul.bf16.gmra.mxu0 %v104
  %v1101 = vpop.f32.mrf.mxu0
  %v1102 = vadd.f32 %v649, %v1101
  %v1103 = vpop.f32.mrf.mxu0
  %v1104 = vadd.f32 %v651, %v1103
  %1105 = vmatmul.bf16.gmra.mxu0 %v106
  %v1106 = vpop.f32.mrf.mxu0
  %v1107 = vadd.f32 %v654, %v1106
  %v1108 = vpop.f32.mrf.mxu0
  %v1109 = vadd.f32 %v656, %v1108
  %1110 = vdwg.mxu0
  %1111 = vmatpush.bf16.msra.mxu0 %v1024
  %1112 = vmatpush.bf16.msra.mxu0 %v1020
  %1113 = vmatpush.bf16.msra.mxu0 %v1016
  %1114 = vmatpush.bf16.msra.mxu0 %v1012
  %1115 = vmatpush.bf16.msra.mxu0 %v1008
  %1116 = vmatpush.bf16.msra.mxu0 %v1004
  %1117 = vmatpush.bf16.msra.mxu0 %v1000
  %1118 = vmatpush.bf16.msra.mxu0 %v996
  %1119 = vmatmul.bf16.gmra.mxu0 %v105
  %v1120 = vpop.f32.mrf.mxu0
  %v1121 = vadd.f32 %v1102, %v1120
  %v1122 = vpop.f32.mrf.mxu0
  %v1123 = vadd.f32 %v1104, %v1122
  %1124 = vmatmul.bf16.gmra.mxu0 %v107
  %v1125 = vpop.f32.mrf.mxu0
  %v1126 = vadd.f32 %v1107, %v1125
  %v1127 = vpop.f32.mrf.mxu0
  %v1128 = vadd.f32 %v1109, %v1127
  %1129 = vdwg.mxu0
  %1130 = vmatpush.bf16.msra.mxu0 %v993
  %1131 = vmatpush.bf16.msra.mxu0 %v989
  %1132 = vmatpush.bf16.msra.mxu0 %v985
  %1133 = vmatpush.bf16.msra.mxu0 %v981
  %1134 = vmatpush.bf16.msra.mxu0 %v977
  %1135 = vmatpush.bf16.msra.mxu0 %v973
  %1136 = vmatpush.bf16.msra.mxu0 %v969
  %1137 = vmatpush.bf16.msra.mxu0 %v965
  %1138 = vmatmul.bf16.gmra.mxu0 %v104
  %v1139 = vpop.f32.mrf.mxu0
  %v1140 = vadd.f32 %v687, %v1139
  %v1141 = vpop.f32.mrf.mxu0
  %v1142 = vadd.f32 %v689, %v1141
  %1143 = vmatmul.bf16.gmra.mxu0 %v106
  %v1144 = vpop.f32.mrf.mxu0
  %v1145 = vadd.f32 %v692, %v1144
  %v1146 = vpop.f32.mrf.mxu0
  %v1147 = vadd.f32 %v694, %v1146
  %1148 = vdwg.mxu0
  %1149 = vmatpush.bf16.msra.mxu0 %v1025
  %1150 = vmatpush.bf16.msra.mxu0 %v1021
  %1151 = vmatpush.bf16.msra.mxu0 %v1017
  %1152 = vmatpush.bf16.msra.mxu0 %v1013
  %1153 = vmatpush.bf16.msra.mxu0 %v1009
  %1154 = vmatpush.bf16.msra.mxu0 %v1005
  %1155 = vmatpush.bf16.msra.mxu0 %v1001
  %1156 = vmatpush.bf16.msra.mxu0 %v997
  %1157 = vmatmul.bf16.gmra.mxu0 %v105
  %v1158 = vpop.f32.mrf.mxu0
  %v1159 = vadd.f32 %v1140, %v1158
  %v1160 = vpop.f32.mrf.mxu0
  %v1161 = vadd.f32 %v1142, %v1160
  %1162 = vmatmul.bf16.gmra.mxu0 %v107
  %v1163 = vpop.f32.mrf.mxu0
  %v1164 = vadd.f32 %v1145, %v1163
  %v1165 = vpop.f32.mrf.mxu0
  %v1166 = vadd.f32 %v1147, %v1165
  %1167 = vdwg.mxu0
  %1168 = vmatpush.bf16.msra.mxu0 %v994
  %1169 = vmatpush.bf16.msra.mxu0 %v990
  %1170 = vmatpush.bf16.msra.mxu0 %v986
  %1171 = vmatpush.bf16.msra.mxu0 %v982
  %1172 = vmatpush.bf16.msra.mxu0 %v978
  %1173 = vmatpush.bf16.msra.mxu0 %v974
  %1174 = vmatpush.bf16.msra.mxu0 %v970
  %1175 = vmatpush.bf16.msra.mxu0 %v966
  %1176 = vmatmul.bf16.gmra.mxu0 %v104
  %v1177 = vpop.f32.mrf.mxu0
  %v1178 = vadd.f32 %v725, %v1177
  %v1179 = vpop.f32.mrf.mxu0
  %v1180 = vadd.f32 %v727, %v1179
  %1181 = vmatmul.bf16.gmra.mxu0 %v106
  %v1182 = vpop.f32.mrf.mxu0
  %v1183 = vadd.f32 %v730, %v1182
  %v1184 = vpop.f32.mrf.mxu0
  %v1185 = vadd.f32 %v732, %v1184
  %1186 = vdwg.mxu0
  %1187 = vmatpush.bf16.msra.mxu0 %v1026
  %1188 = vmatpush.bf16.msra.mxu0 %v1022
  %1189 = vmatpush.bf16.msra.mxu0 %v1018
  %1190 = vmatpush.bf16.msra.mxu0 %v1014
  %1191 = vmatpush.bf16.msra.mxu0 %v1010
  %1192 = vmatpush.bf16.msra.mxu0 %v1006
  %1193 = vmatpush.bf16.msra.mxu0 %v1002
  %1194 = vmatpush.bf16.msra.mxu0 %v998
  %1195 = vmatmul.bf16.gmra.mxu0 %v105
  %v1196 = vpop.f32.mrf.mxu0
  %v1197 = vadd.f32 %v1178, %v1196
  %v1198 = vpop.f32.mrf.mxu0
  %v1199 = vadd.f32 %v1180, %v1198
  %1200 = vmatmul.bf16.gmra.mxu0 %v107
  %v1201 = vpop.f32.mrf.mxu0
  %v1202 = vadd.f32 %v1183, %v1201
  %v1203 = vpop.f32.mrf.mxu0
  %v1204 = vadd.f32 %v1185, %v1203
  %1205 = vdwg.mxu0
  %1206 = vmatpush.bf16.msra.mxu0 %v995
  %1207 = vmatpush.bf16.msra.mxu0 %v991
  %1208 = vmatpush.bf16.msra.mxu0 %v987
  %1209 = vmatpush.bf16.msra.mxu0 %v983
  %1210 = vmatpush.bf16.msra.mxu0 %v979
  %1211 = vmatpush.bf16.msra.mxu0 %v975
  %1212 = vmatpush.bf16.msra.mxu0 %v971
  %1213 = vmatpush.bf16.msra.mxu0 %v967
  %1214 = vmatmul.bf16.gmra.mxu0 %v104
  %v1215 = vpop.f32.mrf.mxu0
  %v1216 = vadd.f32 %v763, %v1215
  %v1217 = vpop.f32.mrf.mxu0
  %v1218 = vadd.f32 %v765, %v1217
  %1219 = vmatmul.bf16.gmra.mxu0 %v106
  %v1220 = vpop.f32.mrf.mxu0
  %v1221 = vadd.f32 %v768, %v1220
  %v1222 = vpop.f32.mrf.mxu0
  %v1223 = vadd.f32 %v770, %v1222
  %1224 = vdwg.mxu0
  %1225 = vmatpush.bf16.msra.mxu0 %v1027
  %1226 = vmatpush.bf16.msra.mxu0 %v1023
  %1227 = vmatpush.bf16.msra.mxu0 %v1019
  %1228 = vmatpush.bf16.msra.mxu0 %v1015
  %1229 = vmatpush.bf16.msra.mxu0 %v1011
  %1230 = vmatpush.bf16.msra.mxu0 %v1007
  %1231 = vmatpush.bf16.msra.mxu0 %v1003
  %1232 = vmatpush.bf16.msra.mxu0 %v999
  %1233 = vmatmul.bf16.gmra.mxu0 %v105
  %v1234 = vpop.f32.mrf.mxu0
  %v1235 = vadd.f32 %v1216, %v1234
  %v1236 = vpop.f32.mrf.mxu0
  %v1237 = vadd.f32 %v1218, %v1236
  %1238 = vmatmul.bf16.gmra.mxu0 %v107
  %v1239 = vpop.f32.mrf.mxu0
  %v1240 = vadd.f32 %v1221, %v1239
  %v1241 = vpop.f32.mrf.mxu0
  %v1242 = vadd.f32 %v1223, %v1241
  %1243 = vdwg.mxu0
  %s1244 = scalar_lea.vmem %s1, 32
  %v1245 = vld [vmem:[%s1244] sm:$0xf]
  %v1246 = vld [vmem:[%s1244 + $0x4] sm:$0xf]
  %v1247 = vld [vmem:[%s1244 + $0x8] sm:$0xf]
  %v1248 = vld [vmem:[%s1244 + $0xc] sm:$0xf]
  %v1253 = vunpack.c.l.b16 %v1245
  %v1254 = vunpack.c.l.b16 %v1246
  %v1255 = vunpack.c.l.b16 %v1247
  %v1256 = vunpack.c.l.b16 %v1248
  %v1257 = vpack.c.b16 %v1254, %v1253
  %v1258 = vpack.c.b16 %v1256, %v1255
  %v1260 = vsel %vm59, %v1257, 0
  %v1263 = vsel %vm59, %v1258, 0
  %1265 = vmatpush.bf16.msra.mxu0 0
  %1266 = vmatpush.bf16.msra.mxu0 0
  %1267 = vmatpush.bf16.msra.mxu0 0
  %1268 = vmatpush.bf16.msra.mxu0 0
  %1269 = vmatpush.bf16.msra.mxu0 0
  %1270 = vmatpush.bf16.msra.mxu0 0
  %1271 = vmatpush.bf16.msra.mxu0 %v43
  %1272 = vmatpush.bf16.msra.mxu0 %v41
  %1273 = vmatmul.bf16.gmra.mxu0 %v1260
  %v1274 = vpop.f32.mrf.mxu0
  %v1275 = vadd.f32 0.0, %v1274
  %v1276 = vpop.f32.mrf.mxu0
  %v1277 = vadd.f32 0.0, %v1276
  %1278 = vmatmul.bf16.gmra.mxu0 %v1263
  %v1279 = vpop.f32.mrf.mxu0
  %v1280 = vadd.f32 0.0, %v1279
  %v1281 = vpop.f32.mrf.mxu0
  %v1282 = vadd.f32 0.0, %v1281
  %1283 = vdwg.mxu0
  %1284 = vmatpush.bf16.msra.mxu0 0
  %1285 = vmatpush.bf16.msra.mxu0 0
  %1286 = vmatpush.bf16.msra.mxu0 0
  %1287 = vmatpush.bf16.msra.mxu0 0
  %1288 = vmatpush.bf16.msra.mxu0 0
  %1289 = vmatpush.bf16.msra.mxu0 0
  %1290 = vmatpush.bf16.msra.mxu0 %v44
  %1291 = vmatpush.bf16.msra.mxu0 %v42
  %1292 = vmatmul.bf16.gmra.mxu0 %v1260
  %v1293 = vpop.f32.mrf.mxu0
  %v1294 = vadd.f32 0.0, %v1293
  %v1295 = vpop.f32.mrf.mxu0
  %v1296 = vadd.f32 0.0, %v1295
  %1297 = vmatmul.bf16.gmra.mxu0 %v1263
  %v1298 = vpop.f32.mrf.mxu0
  %v1299 = vadd.f32 0.0, %v1298
  %v1300 = vpop.f32.mrf.mxu0
  %v1301 = vadd.f32 0.0, %v1300
  %1302 = vdwg.mxu0
  %v1303 = vpack.c.bf16 %v1277, %v1275
  %v1304 = vpack.c.bf16 %v1296, %v1294
  %v1305 = vpack.c.bf16 %v1282, %v1280
  %v1306 = vpack.c.bf16 %v1301, %v1299
  %s1307 = scalar_lea.vmem %s2, 1024
  %v1308 = vld [vmem:[%s1307] sm:$0xff]
  %v1309 = vld [vmem:[%s1307 + $0x8] sm:$0xff]
  %v1310 = vld [vmem:[%s1307 + $0x10] sm:$0xff]
  %v1311 = vld [vmem:[%s1307 + $0x18] sm:$0xff]
  %v1312 = vld [vmem:[%s1307 + $0x20] sm:$0xff]
  %v1313 = vld [vmem:[%s1307 + $0x28] sm:$0xff]
  %v1314 = vld [vmem:[%s1307 + $0x30] sm:$0xff]
  %v1315 = vld [vmem:[%s1307 + $0x38] sm:$0xff]
  %v1316 = vld [vmem:[%s1307 + $0x40] sm:$0xff]
  %v1317 = vld [vmem:[%s1307 + $0x48] sm:$0xff]
  %v1318 = vld [vmem:[%s1307 + $0x50] sm:$0xff]
  %v1319 = vld [vmem:[%s1307 + $0x58] sm:$0xff]
  %v1320 = vld [vmem:[%s1307 + $0x60] sm:$0xff]
  %v1321 = vld [vmem:[%s1307 + $0x68] sm:$0xff]
  %v1322 = vld [vmem:[%s1307 + $0x70] sm:$0xff]
  %v1323 = vld [vmem:[%s1307 + $0x78] sm:$0xff]
  %v1324 = vld [vmem:[%s1307 + $0x80] sm:$0xff]
  %v1325 = vld [vmem:[%s1307 + $0x88] sm:$0xff]
  %v1326 = vld [vmem:[%s1307 + $0x90] sm:$0xff]
  %v1327 = vld [vmem:[%s1307 + $0x98] sm:$0xff]
  %v1328 = vld [vmem:[%s1307 + $0xa0] sm:$0xff]
  %v1329 = vld [vmem:[%s1307 + $0xa8] sm:$0xff]
  %v1330 = vld [vmem:[%s1307 + $0xb0] sm:$0xff]
  %v1331 = vld [vmem:[%s1307 + $0xb8] sm:$0xff]
  %v1332 = vld [vmem:[%s1307 + $0xc0] sm:$0xff]
  %v1333 = vld [vmem:[%s1307 + $0xc8] sm:$0xff]
  %v1334 = vld [vmem:[%s1307 + $0xd0] sm:$0xff]
  %v1335 = vld [vmem:[%s1307 + $0xd8] sm:$0xff]
  %v1336 = vld [vmem:[%s1307 + $0xe0] sm:$0xff]
  %v1337 = vld [vmem:[%s1307 + $0xe8] sm:$0xff]
  %v1338 = vld [vmem:[%s1307 + $0xf0] sm:$0xff]
  %v1339 = vld [vmem:[%s1307 + $0xf8] sm:$0xff]
  %v1340 = vld [vmem:[%s1307 + $0x100] sm:$0xff]
  %v1341 = vld [vmem:[%s1307 + $0x108] sm:$0xff]
  %v1342 = vld [vmem:[%s1307 + $0x110] sm:$0xff]
  %v1343 = vld [vmem:[%s1307 + $0x118] sm:$0xff]
  %v1344 = vld [vmem:[%s1307 + $0x120] sm:$0xff]
  %v1345 = vld [vmem:[%s1307 + $0x128] sm:$0xff]
  %v1346 = vld [vmem:[%s1307 + $0x130] sm:$0xff]
  %v1347 = vld [vmem:[%s1307 + $0x138] sm:$0xff]
  %v1348 = vld [vmem:[%s1307 + $0x140] sm:$0xff]
  %v1349 = vld [vmem:[%s1307 + $0x148] sm:$0xff]
  %v1350 = vld [vmem:[%s1307 + $0x150] sm:$0xff]
  %v1351 = vld [vmem:[%s1307 + $0x158] sm:$0xff]
  %v1352 = vld [vmem:[%s1307 + $0x160] sm:$0xff]
  %v1353 = vld [vmem:[%s1307 + $0x168] sm:$0xff]
  %v1354 = vld [vmem:[%s1307 + $0x170] sm:$0xff]
  %v1355 = vld [vmem:[%s1307 + $0x178] sm:$0xff]
  %v1356 = vld [vmem:[%s1307 + $0x180] sm:$0xff]
  %v1357 = vld [vmem:[%s1307 + $0x188] sm:$0xff]
  %v1358 = vld [vmem:[%s1307 + $0x190] sm:$0xff]
  %v1359 = vld [vmem:[%s1307 + $0x198] sm:$0xff]
  %v1360 = vld [vmem:[%s1307 + $0x1a0] sm:$0xff]
  %v1361 = vld [vmem:[%s1307 + $0x1a8] sm:$0xff]
  %v1362 = vld [vmem:[%s1307 + $0x1b0] sm:$0xff]
  %v1363 = vld [vmem:[%s1307 + $0x1b8] sm:$0xff]
  %v1364 = vld [vmem:[%s1307 + $0x1c0] sm:$0xff]
  %v1365 = vld [vmem:[%s1307 + $0x1c8] sm:$0xff]
  %v1366 = vld [vmem:[%s1307 + $0x1d0] sm:$0xff]
  %v1367 = vld [vmem:[%s1307 + $0x1d8] sm:$0xff]
  %v1368 = vld [vmem:[%s1307 + $0x1e0] sm:$0xff]
  %v1369 = vld [vmem:[%s1307 + $0x1e8] sm:$0xff]
  %v1370 = vld [vmem:[%s1307 + $0x1f0] sm:$0xff]
  %v1371 = vld [vmem:[%s1307 + $0x1f8] sm:$0xff]
  %v1436 = vunpack.c.l.b16 %v1308
  %v1437 = vunpack.c.h.b16 %v1308
  %v1438 = vunpack.c.l.b16 %v1309
  %v1439 = vunpack.c.h.b16 %v1309
  %v1440 = vunpack.c.l.b16 %v1310
  %v1441 = vunpack.c.h.b16 %v1310
  %v1442 = vunpack.c.l.b16 %v1311
  %v1443 = vunpack.c.h.b16 %v1311
  %v1444 = vunpack.c.l.b16 %v1312
  %v1445 = vunpack.c.h.b16 %v1312
  %v1446 = vunpack.c.l.b16 %v1313
  %v1447 = vunpack.c.h.b16 %v1313
  %v1448 = vunpack.c.l.b16 %v1314
  %v1449 = vunpack.c.h.b16 %v1314
  %v1450 = vunpack.c.l.b16 %v1315
  %v1451 = vunpack.c.h.b16 %v1315
  %v1452 = vunpack.c.l.b16 %v1316
  %v1453 = vunpack.c.h.b16 %v1316
  %v1454 = vunpack.c.l.b16 %v1317
  %v1455 = vunpack.c.h.b16 %v1317
  %v1456 = vunpack.c.l.b16 %v1318
  %v1457 = vunpack.c.h.b16 %v1318
  %v1458 = vunpack.c.l.b16 %v1319
  %v1459 = vunpack.c.h.b16 %v1319
  %v1460 = vunpack.c.l.b16 %v1320
  %v1461 = vunpack.c.h.b16 %v1320
  %v1462 = vunpack.c.l.b16 %v1321
  %v1463 = vunpack.c.h.b16 %v1321
  %v1464 = vunpack.c.l.b16 %v1322
  %v1465 = vunpack.c.h.b16 %v1322
  %v1466 = vunpack.c.l.b16 %v1323
  %v1467 = vunpack.c.h.b16 %v1323
  %v1468 = vunpack.c.l.b16 %v1324
  %v1469 = vunpack.c.h.b16 %v1324
  %v1470 = vunpack.c.l.b16 %v1325
  %v1471 = vunpack.c.h.b16 %v1325
  %v1472 = vunpack.c.l.b16 %v1326
  %v1473 = vunpack.c.h.b16 %v1326
  %v1474 = vunpack.c.l.b16 %v1327
  %v1475 = vunpack.c.h.b16 %v1327
  %v1476 = vunpack.c.l.b16 %v1328
  %v1477 = vunpack.c.h.b16 %v1328
  %v1478 = vunpack.c.l.b16 %v1329
  %v1479 = vunpack.c.h.b16 %v1329
  %v1480 = vunpack.c.l.b16 %v1330
  %v1481 = vunpack.c.h.b16 %v1330
  %v1482 = vunpack.c.l.b16 %v1331
  %v1483 = vunpack.c.h.b16 %v1331
  %v1484 = vunpack.c.l.b16 %v1332
  %v1485 = vunpack.c.h.b16 %v1332
  %v1486 = vunpack.c.l.b16 %v1333
  %v1487 = vunpack.c.h.b16 %v1333
  %v1488 = vunpack.c.l.b16 %v1334
  %v1489 = vunpack.c.h.b16 %v1334
  %v1490 = vunpack.c.l.b16 %v1335
  %v1491 = vunpack.c.h.b16 %v1335
  %v1492 = vunpack.c.l.b16 %v1336
  %v1493 = vunpack.c.h.b16 %v1336
  %v1494 = vunpack.c.l.b16 %v1337
  %v1495 = vunpack.c.h.b16 %v1337
  %v1496 = vunpack.c.l.b16 %v1338
  %v1497 = vunpack.c.h.b16 %v1338
  %v1498 = vunpack.c.l.b16 %v1339
  %v1499 = vunpack.c.h.b16 %v1339
  %v1500 = vunpack.c.l.b16 %v1340
  %v1501 = vunpack.c.h.b16 %v1340
  %v1502 = vunpack.c.l.b16 %v1341
  %v1503 = vunpack.c.h.b16 %v1341
  %v1504 = vunpack.c.l.b16 %v1342
  %v1505 = vunpack.c.h.b16 %v1342
  %v1506 = vunpack.c.l.b16 %v1343
  %v1507 = vunpack.c.h.b16 %v1343
  %v1508 = vunpack.c.l.b16 %v1344
  %v1509 = vunpack.c.h.b16 %v1344
  %v1510 = vunpack.c.l.b16 %v1345
  %v1511 = vunpack.c.h.b16 %v1345
  %v1512 = vunpack.c.l.b16 %v1346
  %v1513 = vunpack.c.h.b16 %v1346
  %v1514 = vunpack.c.l.b16 %v1347
  %v1515 = vunpack.c.h.b16 %v1347
  %v1516 = vunpack.c.l.b16 %v1348
  %v1517 = vunpack.c.h.b16 %v1348
  %v1518 = vunpack.c.l.b16 %v1349
  %v1519 = vunpack.c.h.b16 %v1349
  %v1520 = vunpack.c.l.b16 %v1350
  %v1521 = vunpack.c.h.b16 %v1350
  %v1522 = vunpack.c.l.b16 %v1351
  %v1523 = vunpack.c.h.b16 %v1351
  %v1524 = vunpack.c.l.b16 %v1352
  %v1525 = vunpack.c.h.b16 %v1352
  %v1526 = vunpack.c.l.b16 %v1353
  %v1527 = vunpack.c.h.b16 %v1353
  %v1528 = vunpack.c.l.b16 %v1354
  %v1529 = vunpack.c.h.b16 %v1354
  %v1530 = vunpack.c.l.b16 %v1355
  %v1531 = vunpack.c.h.b16 %v1355
  %v1532 = vunpack.c.l.b16 %v1356
  %v1533 = vunpack.c.h.b16 %v1356
  %v1534 = vunpack.c.l.b16 %v1357
  %v1535 = vunpack.c.h.b16 %v1357
  %v1536 = vunpack.c.l.b16 %v1358
  %v1537 = vunpack.c.h.b16 %v1358
  %v1538 = vunpack.c.l.b16 %v1359
  %v1539 = vunpack.c.h.b16 %v1359
  %v1540 = vunpack.c.l.b16 %v1360
  %v1541 = vunpack.c.h.b16 %v1360
  %v1542 = vunpack.c.l.b16 %v1361
  %v1543 = vunpack.c.h.b16 %v1361
  %v1544 = vunpack.c.l.b16 %v1362
  %v1545 = vunpack.c.h.b16 %v1362
  %v1546 = vunpack.c.l.b16 %v1363
  %v1547 = vunpack.c.h.b16 %v1363
  %v1548 = vunpack.c.l.b16 %v1364
  %v1549 = vunpack.c.h.b16 %v1364
  %v1550 = vunpack.c.l.b16 %v1365
  %v1551 = vunpack.c.h.b16 %v1365
  %v1552 = vunpack.c.l.b16 %v1366
  %v1553 = vunpack.c.h.b16 %v1366
  %v1554 = vunpack.c.l.b16 %v1367
  %v1555 = vunpack.c.h.b16 %v1367
  %v1556 = vunpack.c.l.b16 %v1368
  %v1557 = vunpack.c.h.b16 %v1368
  %v1558 = vunpack.c.l.b16 %v1369
  %v1559 = vunpack.c.h.b16 %v1369
  %v1560 = vunpack.c.l.b16 %v1370
  %v1561 = vunpack.c.h.b16 %v1370
  %v1562 = vunpack.c.l.b16 %v1371
  %v1563 = vunpack.c.h.b16 %v1371
  %v1564 = vpack.c.b16 %v1440, %v1436
  %v1565 = vpack.c.b16 %v1441, %v1437
  %v1566 = vpack.c.b16 %v1442, %v1438
  %v1567 = vpack.c.b16 %v1443, %v1439
  %v1568 = vpack.c.b16 %v1448, %v1444
  %v1569 = vpack.c.b16 %v1449, %v1445
  %v1570 = vpack.c.b16 %v1450, %v1446
  %v1571 = vpack.c.b16 %v1451, %v1447
  %v1572 = vpack.c.b16 %v1456, %v1452
  %v1573 = vpack.c.b16 %v1457, %v1453
  %v1574 = vpack.c.b16 %v1458, %v1454
  %v1575 = vpack.c.b16 %v1459, %v1455
  %v1576 = vpack.c.b16 %v1464, %v1460
  %v1577 = vpack.c.b16 %v1465, %v1461
  %v1578 = vpack.c.b16 %v1466, %v1462
  %v1579 = vpack.c.b16 %v1467, %v1463
  %v1580 = vpack.c.b16 %v1472, %v1468
  %v1581 = vpack.c.b16 %v1473, %v1469
  %v1582 = vpack.c.b16 %v1474, %v1470
  %v1583 = vpack.c.b16 %v1475, %v1471
  %v1584 = vpack.c.b16 %v1480, %v1476
  %v1585 = vpack.c.b16 %v1481, %v1477
  %v1586 = vpack.c.b16 %v1482, %v1478
  %v1587 = vpack.c.b16 %v1483, %v1479
  %v1588 = vpack.c.b16 %v1488, %v1484
  %v1589 = vpack.c.b16 %v1489, %v1485
  %v1590 = vpack.c.b16 %v1490, %v1486
  %v1591 = vpack.c.b16 %v1491, %v1487
  %v1592 = vpack.c.b16 %v1496, %v1492
  %v1593 = vpack.c.b16 %v1497, %v1493
  %v1594 = vpack.c.b16 %v1498, %v1494
  %v1595 = vpack.c.b16 %v1499, %v1495
  %v1596 = vpack.c.b16 %v1504, %v1500
  %v1597 = vpack.c.b16 %v1505, %v1501
  %v1598 = vpack.c.b16 %v1506, %v1502
  %v1599 = vpack.c.b16 %v1507, %v1503
  %v1600 = vpack.c.b16 %v1512, %v1508
  %v1601 = vpack.c.b16 %v1513, %v1509
  %v1602 = vpack.c.b16 %v1514, %v1510
  %v1603 = vpack.c.b16 %v1515, %v1511
  %v1604 = vpack.c.b16 %v1520, %v1516
  %v1605 = vpack.c.b16 %v1521, %v1517
  %v1606 = vpack.c.b16 %v1522, %v1518
  %v1607 = vpack.c.b16 %v1523, %v1519
  %v1608 = vpack.c.b16 %v1528, %v1524
  %v1609 = vpack.c.b16 %v1529, %v1525
  %v1610 = vpack.c.b16 %v1530, %v1526
  %v1611 = vpack.c.b16 %v1531, %v1527
  %v1612 = vpack.c.b16 %v1536, %v1532
  %v1613 = vpack.c.b16 %v1537, %v1533
  %v1614 = vpack.c.b16 %v1538, %v1534
  %v1615 = vpack.c.b16 %v1539, %v1535
  %v1616 = vpack.c.b16 %v1544, %v1540
  %v1617 = vpack.c.b16 %v1545, %v1541
  %v1618 = vpack.c.b16 %v1546, %v1542
  %v1619 = vpack.c.b16 %v1547, %v1543
  %v1620 = vpack.c.b16 %v1552, %v1548
  %v1621 = vpack.c.b16 %v1553, %v1549
  %v1622 = vpack.c.b16 %v1554, %v1550
  %v1623 = vpack.c.b16 %v1555, %v1551
  %v1624 = vpack.c.b16 %v1560, %v1556
  %v1625 = vpack.c.b16 %v1561, %v1557
  %v1626 = vpack.c.b16 %v1562, %v1558
  %v1627 = vpack.c.b16 %v1563, %v1559
  %1692 = vmatpush.bf16.msra.mxu0 %v1592
  %1693 = vmatpush.bf16.msra.mxu0 %v1588
  %1694 = vmatpush.bf16.msra.mxu0 %v1584
  %1695 = vmatpush.bf16.msra.mxu0 %v1580
  %1696 = vmatpush.bf16.msra.mxu0 %v1576
  %1697 = vmatpush.bf16.msra.mxu0 %v1572
  %1698 = vmatpush.bf16.msra.mxu0 %v1568
  %1699 = vmatpush.bf16.msra.mxu0 %v1564
  %1700 = vmatmul.bf16.gmra.mxu0 %v1303
  %v1701 = vpop.f32.mrf.mxu0
  %v1702 = vadd.f32 0.0, %v1701
  %v1703 = vpop.f32.mrf.mxu0
  %v1704 = vadd.f32 0.0, %v1703
  %1705 = vmatmul.bf16.gmra.mxu0 %v1305
  %v1706 = vpop.f32.mrf.mxu0
  %v1707 = vadd.f32 0.0, %v1706
  %v1708 = vpop.f32.mrf.mxu0
  %v1709 = vadd.f32 0.0, %v1708
  %1710 = vdwg.mxu0
  %1711 = vmatpush.bf16.msra.mxu0 %v1624
  %1712 = vmatpush.bf16.msra.mxu0 %v1620
  %1713 = vmatpush.bf16.msra.mxu0 %v1616
  %1714 = vmatpush.bf16.msra.mxu0 %v1612
  %1715 = vmatpush.bf16.msra.mxu0 %v1608
  %1716 = vmatpush.bf16.msra.mxu0 %v1604
  %1717 = vmatpush.bf16.msra.mxu0 %v1600
  %1718 = vmatpush.bf16.msra.mxu0 %v1596
  %1719 = vmatmul.bf16.gmra.mxu0 %v1304
  %v1720 = vpop.f32.mrf.mxu0
  %v1721 = vadd.f32 %v1702, %v1720
  %v1722 = vpop.f32.mrf.mxu0
  %v1723 = vadd.f32 %v1704, %v1722
  %1724 = vmatmul.bf16.gmra.mxu0 %v1306
  %v1725 = vpop.f32.mrf.mxu0
  %v1726 = vadd.f32 %v1707, %v1725
  %v1727 = vpop.f32.mrf.mxu0
  %v1728 = vadd.f32 %v1709, %v1727
  %1729 = vdwg.mxu0
  %1730 = vmatpush.bf16.msra.mxu0 %v1593
  %1731 = vmatpush.bf16.msra.mxu0 %v1589
  %1732 = vmatpush.bf16.msra.mxu0 %v1585
  %1733 = vmatpush.bf16.msra.mxu0 %v1581
  %1734 = vmatpush.bf16.msra.mxu0 %v1577
  %1735 = vmatpush.bf16.msra.mxu0 %v1573
  %1736 = vmatpush.bf16.msra.mxu0 %v1569
  %1737 = vmatpush.bf16.msra.mxu0 %v1565
  %1738 = vmatmul.bf16.gmra.mxu0 %v1303
  %v1739 = vpop.f32.mrf.mxu0
  %v1740 = vadd.f32 0.0, %v1739
  %v1741 = vpop.f32.mrf.mxu0
  %v1742 = vadd.f32 0.0, %v1741
  %1743 = vmatmul.bf16.gmra.mxu0 %v1305
  %v1744 = vpop.f32.mrf.mxu0
  %v1745 = vadd.f32 0.0, %v1744
  %v1746 = vpop.f32.mrf.mxu0
  %v1747 = vadd.f32 0.0, %v1746
  %1748 = vdwg.mxu0
  %1749 = vmatpush.bf16.msra.mxu0 %v1625
  %1750 = vmatpush.bf16.msra.mxu0 %v1621
  %1751 = vmatpush.bf16.msra.mxu0 %v1617
  %1752 = vmatpush.bf16.msra.mxu0 %v1613
  %1753 = vmatpush.bf16.msra.mxu0 %v1609
  %1754 = vmatpush.bf16.msra.mxu0 %v1605
  %1755 = vmatpush.bf16.msra.mxu0 %v1601
  %1756 = vmatpush.bf16.msra.mxu0 %v1597
  %1757 = vmatmul.bf16.gmra.mxu0 %v1304
  %v1758 = vpop.f32.mrf.mxu0
  %v1759 = vadd.f32 %v1740, %v1758
  %v1760 = vpop.f32.mrf.mxu0
  %v1761 = vadd.f32 %v1742, %v1760
  %1762 = vmatmul.bf16.gmra.mxu0 %v1306
  %v1763 = vpop.f32.mrf.mxu0
  %v1764 = vadd.f32 %v1745, %v1763
  %v1765 = vpop.f32.mrf.mxu0
  %v1766 = vadd.f32 %v1747, %v1765
  %1767 = vdwg.mxu0
  %1768 = vmatpush.bf16.msra.mxu0 %v1594
  %1769 = vmatpush.bf16.msra.mxu0 %v1590
  %1770 = vmatpush.bf16.msra.mxu0 %v1586
  %1771 = vmatpush.bf16.msra.mxu0 %v1582
  %1772 = vmatpush.bf16.msra.mxu0 %v1578
  %1773 = vmatpush.bf16.msra.mxu0 %v1574
  %1774 = vmatpush.bf16.msra.mxu0 %v1570
  %1775 = vmatpush.bf16.msra.mxu0 %v1566
  %1776 = vmatmul.bf16.gmra.mxu0 %v1303
  %v1777 = vpop.f32.mrf.mxu0
  %v1778 = vadd.f32 0.0, %v1777
  %v1779 = vpop.f32.mrf.mxu0
  %v1780 = vadd.f32 0.0, %v1779
  %1781 = vmatmul.bf16.gmra.mxu0 %v1305
  %v1782 = vpop.f32.mrf.mxu0
  %v1783 = vadd.f32 0.0, %v1782
  %v1784 = vpop.f32.mrf.mxu0
  %v1785 = vadd.f32 0.0, %v1784
  %1786 = vdwg.mxu0
  %1787 = vmatpush.bf16.msra.mxu0 %v1626
  %1788 = vmatpush.bf16.msra.mxu0 %v1622
  %1789 = vmatpush.bf16.msra.mxu0 %v1618
  %1790 = vmatpush.bf16.msra.mxu0 %v1614
  %1791 = vmatpush.bf16.msra.mxu0 %v1610
  %1792 = vmatpush.bf16.msra.mxu0 %v1606
  %1793 = vmatpush.bf16.msra.mxu0 %v1602
  %1794 = vmatpush.bf16.msra.mxu0 %v1598
  %1795 = vmatmul.bf16.gmra.mxu0 %v1304
  %v1796 = vpop.f32.mrf.mxu0
  %v1797 = vadd.f32 %v1778, %v1796
  %v1798 = vpop.f32.mrf.mxu0
  %v1799 = vadd.f32 %v1780, %v1798
  %1800 = vmatmul.bf16.gmra.mxu0 %v1306
  %v1801 = vpop.f32.mrf.mxu0
  %v1802 = vadd.f32 %v1783, %v1801
  %v1803 = vpop.f32.mrf.mxu0
  %v1804 = vadd.f32 %v1785, %v1803
  %1805 = vdwg.mxu0
  %1806 = vmatpush.bf16.msra.mxu0 %v1595
  %1807 = vmatpush.bf16.msra.mxu0 %v1591
  %1808 = vmatpush.bf16.msra.mxu0 %v1587
  %1809 = vmatpush.bf16.msra.mxu0 %v1583
  %1810 = vmatpush.bf16.msra.mxu0 %v1579
  %1811 = vmatpush.bf16.msra.mxu0 %v1575
  %1812 = vmatpush.bf16.msra.mxu0 %v1571
  %1813 = vmatpush.bf16.msra.mxu0 %v1567
  %1814 = vmatmul.bf16.gmra.mxu0 %v1303
  %v1815 = vpop.f32.mrf.mxu0
  %v1816 = vadd.f32 0.0, %v1815
  %v1817 = vpop.f32.mrf.mxu0
  %v1818 = vadd.f32 0.0, %v1817
  %1819 = vmatmul.bf16.gmra.mxu0 %v1305
  %v1820 = vpop.f32.mrf.mxu0
  %v1821 = vadd.f32 0.0, %v1820
  %v1822 = vpop.f32.mrf.mxu0
  %v1823 = vadd.f32 0.0, %v1822
  %1824 = vdwg.mxu0
  %1825 = vmatpush.bf16.msra.mxu0 %v1627
  %1826 = vmatpush.bf16.msra.mxu0 %v1623
  %1827 = vmatpush.bf16.msra.mxu0 %v1619
  %1828 = vmatpush.bf16.msra.mxu0 %v1615
  %1829 = vmatpush.bf16.msra.mxu0 %v1611
  %1830 = vmatpush.bf16.msra.mxu0 %v1607
  %1831 = vmatpush.bf16.msra.mxu0 %v1603
  %1832 = vmatpush.bf16.msra.mxu0 %v1599
  %1833 = vmatmul.bf16.gmra.mxu0 %v1304
  %v1834 = vpop.f32.mrf.mxu0
  %v1835 = vadd.f32 %v1816, %v1834
  %v1836 = vpop.f32.mrf.mxu0
  %v1837 = vadd.f32 %v1818, %v1836
  %1838 = vmatmul.bf16.gmra.mxu0 %v1306
  %v1839 = vpop.f32.mrf.mxu0
  %v1840 = vadd.f32 %v1821, %v1839
  %v1841 = vpop.f32.mrf.mxu0
  %v1842 = vadd.f32 %v1823, %v1841
  %1843 = vdwg.mxu0
  %v1844 = vadd.f32 %v1121, %v1721
  %v1845 = vadd.f32 %v1159, %v1759
  %v1846 = vadd.f32 %v1197, %v1797
  %v1847 = vadd.f32 %v1235, %v1835
  %v1848 = vadd.f32 %v1123, %v1723
  %v1849 = vadd.f32 %v1161, %v1761
  %v1850 = vadd.f32 %v1199, %v1799
  %v1851 = vadd.f32 %v1237, %v1837
  %v1852 = vadd.f32 %v1126, %v1726
  %v1853 = vadd.f32 %v1164, %v1764
  %v1854 = vadd.f32 %v1202, %v1802
  %v1855 = vadd.f32 %v1240, %v1840
  %v1856 = vadd.f32 %v1128, %v1728
  %v1857 = vadd.f32 %v1166, %v1766
  %v1858 = vadd.f32 %v1204, %v1804
  %v1859 = vadd.f32 %v1242, %v1842
  %v1860 = vld [vmem:[%s3] sm:$0xf]
  %v1862 = vperm.slane %v1860, 0
  %v1863 = vperm.slane %v1860, 1
  %v1864 = vperm.slane %v1860, 2
  %v1865 = vperm.slane %v1860, 3
  %v1870 = vadd.f32 %v1844, %v1862
  %v1871 = vadd.f32 %v1845, %v1863
  %v1872 = vadd.f32 %v1846, %v1864
  %v1873 = vadd.f32 %v1847, %v1865
  %v1874 = vadd.f32 %v1848, %v1862
  %v1875 = vadd.f32 %v1849, %v1863
  %v1876 = vadd.f32 %v1850, %v1864
  %v1877 = vadd.f32 %v1851, %v1865
  %v1878 = vadd.f32 %v1852, %v1862
  %v1879 = vadd.f32 %v1853, %v1863
  %v1880 = vadd.f32 %v1854, %v1864
  %v1881 = vadd.f32 %v1855, %v1865
  %v1882 = vadd.f32 %v1856, %v1862
  %v1883 = vadd.f32 %v1857, %v1863
  %v1884 = vadd.f32 %v1858, %v1864
  %v1885 = vadd.f32 %v1859, %v1865
  %vm1886 = vcmp.ge.f32.partialorder %v1870, 0.0
  %vm1887 = vcmp.ge.f32.partialorder %v1871, 0.0
  %vm1888 = vcmp.ge.f32.partialorder %v1872, 0.0
  %vm1889 = vcmp.ge.f32.partialorder %v1873, 0.0
  %vm1890 = vcmp.ge.f32.partialorder %v1874, 0.0
  %vm1891 = vcmp.ge.f32.partialorder %v1875, 0.0
  %vm1892 = vcmp.ge.f32.partialorder %v1876, 0.0
  %vm1893 = vcmp.ge.f32.partialorder %v1877, 0.0
  %vm1894 = vcmp.ge.f32.partialorder %v1878, 0.0
  %vm1895 = vcmp.ge.f32.partialorder %v1879, 0.0
  %vm1896 = vcmp.ge.f32.partialorder %v1880, 0.0
  %vm1897 = vcmp.ge.f32.partialorder %v1881, 0.0
  %vm1898 = vcmp.ge.f32.partialorder %v1882, 0.0
  %vm1899 = vcmp.ge.f32.partialorder %v1883, 0.0
  %vm1900 = vcmp.ge.f32.partialorder %v1884, 0.0
  %vm1901 = vcmp.ge.f32.partialorder %v1885, 0.0
  %v1902 = vmul.f32 %v1870, 0.2
  %v1903 = vmul.f32 %v1871, 0.2
  %v1904 = vmul.f32 %v1872, 0.2
  %v1905 = vmul.f32 %v1873, 0.2
  %v1906 = vmul.f32 %v1874, 0.2
  %v1907 = vmul.f32 %v1875, 0.2
  %v1908 = vmul.f32 %v1876, 0.2
  %v1909 = vmul.f32 %v1877, 0.2
  %v1910 = vmul.f32 %v1878, 0.2
  %v1911 = vmul.f32 %v1879, 0.2
  %v1912 = vmul.f32 %v1880, 0.2
  %v1913 = vmul.f32 %v1881, 0.2
  %v1914 = vmul.f32 %v1882, 0.2
  %v1915 = vmul.f32 %v1883, 0.2
  %v1916 = vmul.f32 %v1884, 0.2
  %v1917 = vmul.f32 %v1885, 0.2
  %v1918 = vsel %vm1886, %v1870, %v1902
  %v1919 = vsel %vm1887, %v1871, %v1903
  %v1920 = vsel %vm1888, %v1872, %v1904
  %v1921 = vsel %vm1889, %v1873, %v1905
  %v1922 = vsel %vm1890, %v1874, %v1906
  %v1923 = vsel %vm1891, %v1875, %v1907
  %v1924 = vsel %vm1892, %v1876, %v1908
  %v1925 = vsel %vm1893, %v1877, %v1909
  %v1926 = vsel %vm1894, %v1878, %v1910
  %v1927 = vsel %vm1895, %v1879, %v1911
  %v1928 = vsel %vm1896, %v1880, %v1912
  %v1929 = vsel %vm1897, %v1881, %v1913
  %v1930 = vsel %vm1898, %v1882, %v1914
  %v1931 = vsel %vm1899, %v1883, %v1915
  %v1932 = vsel %vm1900, %v1884, %v1916
  %v1933 = vsel %vm1901, %v1885, %v1917
  %v1934 = vpack.c.bf16 %v1922, %v1918
  %v1935 = vpack.c.bf16 %v1923, %v1919
  %v1936 = vpack.c.bf16 %v1924, %v1920
  %v1937 = vpack.c.bf16 %v1925, %v1921
  %v1938 = vpack.c.bf16 %v1930, %v1926
  %v1939 = vpack.c.bf16 %v1931, %v1927
  %v1940 = vpack.c.bf16 %v1932, %v1928
  %v1941 = vpack.c.bf16 %v1933, %v1929
  %v1942 = vld [vmem:[%s4] sm:$0xf]
  %v1943 = vld [vmem:[%s4 + $0x4] sm:$0xf]
  %v1946 = vunpack.c.l.b16 %v1942
  %v1947 = vunpack.c.l.b16 %v1943
  %v1948 = vpack.c.b16 %v1947, %v1946
  %v1950 = vsel %vm59, %v1948, 0
  %1952 = vmatpush.bf16.msra.mxu0 0
  %1953 = vmatpush.bf16.msra.mxu0 0
  %1954 = vmatpush.bf16.msra.mxu0 0
  %1955 = vmatpush.bf16.msra.mxu0 0
  %1956 = vmatpush.bf16.msra.mxu0 0
  %1957 = vmatpush.bf16.msra.mxu0 0
  %1958 = vmatpush.bf16.msra.mxu0 %v1938
  %1959 = vmatpush.bf16.msra.mxu0 %v1934
  %1960 = vmatmul.bf16.gmra.mxu0 %v1950
  %v1961 = vpop.f32.mrf.mxu0
  %v1962 = vadd.f32 0.0, %v1961
  %v1963 = vpop.f32.mrf.mxu0
  %v1964 = vadd.f32 0.0, %v1963
  %1965 = vdwg.mxu0
  %1966 = vmatpush.bf16.msra.mxu0 0
  %1967 = vmatpush.bf16.msra.mxu0 0
  %1968 = vmatpush.bf16.msra.mxu0 0
  %1969 = vmatpush.bf16.msra.mxu0 0
  %1970 = vmatpush.bf16.msra.mxu0 0
  %1971 = vmatpush.bf16.msra.mxu0 0
  %1972 = vmatpush.bf16.msra.mxu0 %v1939
  %1973 = vmatpush.bf16.msra.mxu0 %v1935
  %1974 = vmatmul.bf16.gmra.mxu0 %v1950
  %v1975 = vpop.f32.mrf.mxu0
  %v1976 = vadd.f32 0.0, %v1975
  %v1977 = vpop.f32.mrf.mxu0
  %v1978 = vadd.f32 0.0, %v1977
  %1979 = vdwg.mxu0
  %1980 = vmatpush.bf16.msra.mxu0 0
  %1981 = vmatpush.bf16.msra.mxu0 0
  %1982 = vmatpush.bf16.msra.mxu0 0
  %1983 = vmatpush.bf16.msra.mxu0 0
  %1984 = vmatpush.bf16.msra.mxu0 0
  %1985 = vmatpush.bf16.msra.mxu0 0
  %1986 = vmatpush.bf16.msra.mxu0 %v1940
  %1987 = vmatpush.bf16.msra.mxu0 %v1936
  %1988 = vmatmul.bf16.gmra.mxu0 %v1950
  %v1989 = vpop.f32.mrf.mxu0
  %v1990 = vadd.f32 0.0, %v1989
  %v1991 = vpop.f32.mrf.mxu0
  %v1992 = vadd.f32 0.0, %v1991
  %1993 = vdwg.mxu0
  %1994 = vmatpush.bf16.msra.mxu0 0
  %1995 = vmatpush.bf16.msra.mxu0 0
  %1996 = vmatpush.bf16.msra.mxu0 0
  %1997 = vmatpush.bf16.msra.mxu0 0
  %1998 = vmatpush.bf16.msra.mxu0 0
  %1999 = vmatpush.bf16.msra.mxu0 0
  %2000 = vmatpush.bf16.msra.mxu0 %v1941
  %2001 = vmatpush.bf16.msra.mxu0 %v1937
  %2002 = vmatmul.bf16.gmra.mxu0 %v1950
  %v2003 = vpop.f32.mrf.mxu0
  %v2004 = vadd.f32 0.0, %v2003
  %v2005 = vpop.f32.mrf.mxu0
  %v2006 = vadd.f32 0.0, %v2005
  %2007 = vdwg.mxu0
  %v2008 = vpack.c.bf16 %v1964, %v1962
  %v2009 = vpack.c.bf16 %v1978, %v1976
  %v2010 = vpack.c.bf16 %v1992, %v1990
  %v2011 = vpack.c.bf16 %v2006, %v2004
  %v2012 = vld [vmem:[%s5] sm:$0xff]
  %v2013 = vld [vmem:[%s5 + $0x8] sm:$0xff]
  %v2014 = vld [vmem:[%s5 + $0x10] sm:$0xff]
  %v2015 = vld [vmem:[%s5 + $0x18] sm:$0xff]
  %v2016 = vld [vmem:[%s5 + $0x20] sm:$0xff]
  %v2017 = vld [vmem:[%s5 + $0x28] sm:$0xff]
  %v2018 = vld [vmem:[%s5 + $0x30] sm:$0xff]
  %v2019 = vld [vmem:[%s5 + $0x38] sm:$0xff]
  %v2020 = vld [vmem:[%s5 + $0x40] sm:$0xff]
  %v2021 = vld [vmem:[%s5 + $0x48] sm:$0xff]
  %v2022 = vld [vmem:[%s5 + $0x50] sm:$0xff]
  %v2023 = vld [vmem:[%s5 + $0x58] sm:$0xff]
  %v2024 = vld [vmem:[%s5 + $0x60] sm:$0xff]
  %v2025 = vld [vmem:[%s5 + $0x68] sm:$0xff]
  %v2026 = vld [vmem:[%s5 + $0x70] sm:$0xff]
  %v2027 = vld [vmem:[%s5 + $0x78] sm:$0xff]
  %v2028 = vld [vmem:[%s5 + $0x80] sm:$0xff]
  %v2029 = vld [vmem:[%s5 + $0x88] sm:$0xff]
  %v2030 = vld [vmem:[%s5 + $0x90] sm:$0xff]
  %v2031 = vld [vmem:[%s5 + $0x98] sm:$0xff]
  %v2032 = vld [vmem:[%s5 + $0xa0] sm:$0xff]
  %v2033 = vld [vmem:[%s5 + $0xa8] sm:$0xff]
  %v2034 = vld [vmem:[%s5 + $0xb0] sm:$0xff]
  %v2035 = vld [vmem:[%s5 + $0xb8] sm:$0xff]
  %v2036 = vld [vmem:[%s5 + $0xc0] sm:$0xff]
  %v2037 = vld [vmem:[%s5 + $0xc8] sm:$0xff]
  %v2038 = vld [vmem:[%s5 + $0xd0] sm:$0xff]
  %v2039 = vld [vmem:[%s5 + $0xd8] sm:$0xff]
  %v2040 = vld [vmem:[%s5 + $0xe0] sm:$0xff]
  %v2041 = vld [vmem:[%s5 + $0xe8] sm:$0xff]
  %v2042 = vld [vmem:[%s5 + $0xf0] sm:$0xff]
  %v2043 = vld [vmem:[%s5 + $0xf8] sm:$0xff]
  %v2044 = vld [vmem:[%s5 + $0x100] sm:$0xff]
  %v2045 = vld [vmem:[%s5 + $0x108] sm:$0xff]
  %v2046 = vld [vmem:[%s5 + $0x110] sm:$0xff]
  %v2047 = vld [vmem:[%s5 + $0x118] sm:$0xff]
  %v2048 = vld [vmem:[%s5 + $0x120] sm:$0xff]
  %v2049 = vld [vmem:[%s5 + $0x128] sm:$0xff]
  %v2050 = vld [vmem:[%s5 + $0x130] sm:$0xff]
  %v2051 = vld [vmem:[%s5 + $0x138] sm:$0xff]
  %v2052 = vld [vmem:[%s5 + $0x140] sm:$0xff]
  %v2053 = vld [vmem:[%s5 + $0x148] sm:$0xff]
  %v2054 = vld [vmem:[%s5 + $0x150] sm:$0xff]
  %v2055 = vld [vmem:[%s5 + $0x158] sm:$0xff]
  %v2056 = vld [vmem:[%s5 + $0x160] sm:$0xff]
  %v2057 = vld [vmem:[%s5 + $0x168] sm:$0xff]
  %v2058 = vld [vmem:[%s5 + $0x170] sm:$0xff]
  %v2059 = vld [vmem:[%s5 + $0x178] sm:$0xff]
  %v2060 = vld [vmem:[%s5 + $0x180] sm:$0xff]
  %v2061 = vld [vmem:[%s5 + $0x188] sm:$0xff]
  %v2062 = vld [vmem:[%s5 + $0x190] sm:$0xff]
  %v2063 = vld [vmem:[%s5 + $0x198] sm:$0xff]
  %v2064 = vld [vmem:[%s5 + $0x1a0] sm:$0xff]
  %v2065 = vld [vmem:[%s5 + $0x1a8] sm:$0xff]
  %v2066 = vld [vmem:[%s5 + $0x1b0] sm:$0xff]
  %v2067 = vld [vmem:[%s5 + $0x1b8] sm:$0xff]
  %v2068 = vld [vmem:[%s5 + $0x1c0] sm:$0xff]
  %v2069 = vld [vmem:[%s5 + $0x1c8] sm:$0xff]
  %v2070 = vld [vmem:[%s5 + $0x1d0] sm:$0xff]
  %v2071 = vld [vmem:[%s5 + $0x1d8] sm:$0xff]
  %v2072 = vld [vmem:[%s5 + $0x1e0] sm:$0xff]
  %v2073 = vld [vmem:[%s5 + $0x1e8] sm:$0xff]
  %v2074 = vld [vmem:[%s5 + $0x1f0] sm:$0xff]
  %v2075 = vld [vmem:[%s5 + $0x1f8] sm:$0xff]
  %s2076 = scalar_lea.vmem %s4, 8
  %v2077 = vld [vmem:[%s2076] sm:$0xf]
  %v2078 = vld [vmem:[%s2076 + $0x4] sm:$0xf]
  %v2081 = vunpack.c.l.b16 %v2077
  %v2082 = vunpack.c.l.b16 %v2078
  %v2083 = vpack.c.b16 %v2082, %v2081
  %v2085 = vsel %vm59, %v2083, 0
  %2087 = vmatpush.bf16.msra.mxu0 0
  %2088 = vmatpush.bf16.msra.mxu0 0
  %2089 = vmatpush.bf16.msra.mxu0 0
  %2090 = vmatpush.bf16.msra.mxu0 0
  %2091 = vmatpush.bf16.msra.mxu0 0
  %2092 = vmatpush.bf16.msra.mxu0 0
  %2093 = vmatpush.bf16.msra.mxu0 %v1938
  %2094 = vmatpush.bf16.msra.mxu0 %v1934
  %2095 = vmatmul.bf16.gmra.mxu0 %v2085
  %v2096 = vpop.f32.mrf.mxu0
  %v2097 = vadd.f32 0.0, %v2096
  %v2098 = vpop.f32.mrf.mxu0
  %v2099 = vadd.f32 0.0, %v2098
  %2100 = vdwg.mxu0
  %2101 = vmatpush.bf16.msra.mxu0 0
  %2102 = vmatpush.bf16.msra.mxu0 0
  %2103 = vmatpush.bf16.msra.mxu0 0
  %2104 = vmatpush.bf16.msra.mxu0 0
  %2105 = vmatpush.bf16.msra.mxu0 0
  %2106 = vmatpush.bf16.msra.mxu0 0
  %2107 = vmatpush.bf16.msra.mxu0 %v1939
  %2108 = vmatpush.bf16.msra.mxu0 %v1935
  %2109 = vmatmul.bf16.gmra.mxu0 %v2085
  %v2110 = vpop.f32.mrf.mxu0
  %v2111 = vadd.f32 0.0, %v2110
  %v2112 = vpop.f32.mrf.mxu0
  %v2113 = vadd.f32 0.0, %v2112
  %2114 = vdwg.mxu0
  %2115 = vmatpush.bf16.msra.mxu0 0
  %2116 = vmatpush.bf16.msra.mxu0 0
  %2117 = vmatpush.bf16.msra.mxu0 0
  %2118 = vmatpush.bf16.msra.mxu0 0
  %2119 = vmatpush.bf16.msra.mxu0 0
  %2120 = vmatpush.bf16.msra.mxu0 0
  %2121 = vmatpush.bf16.msra.mxu0 %v1940
  %2122 = vmatpush.bf16.msra.mxu0 %v1936
  %2123 = vmatmul.bf16.gmra.mxu0 %v2085
  %v2124 = vpop.f32.mrf.mxu0
  %v2125 = vadd.f32 0.0, %v2124
  %v2126 = vpop.f32.mrf.mxu0
  %v2127 = vadd.f32 0.0, %v2126
  %2128 = vdwg.mxu0
  %2129 = vmatpush.bf16.msra.mxu0 0
  %2130 = vmatpush.bf16.msra.mxu0 0
  %2131 = vmatpush.bf16.msra.mxu0 0
  %2132 = vmatpush.bf16.msra.mxu0 0
  %2133 = vmatpush.bf16.msra.mxu0 0
  %2134 = vmatpush.bf16.msra.mxu0 0
  %2135 = vmatpush.bf16.msra.mxu0 %v1941
  %2136 = vmatpush.bf16.msra.mxu0 %v1937
  %2137 = vmatmul.bf16.gmra.mxu0 %v2085
  %v2138 = vpop.f32.mrf.mxu0
  %v2139 = vadd.f32 0.0, %v2138
  %v2140 = vpop.f32.mrf.mxu0
  %v2141 = vadd.f32 0.0, %v2140
  %2142 = vdwg.mxu0
  %v2143 = vpack.c.bf16 %v2099, %v2097
  %v2144 = vpack.c.bf16 %v2113, %v2111
  %v2145 = vpack.c.bf16 %v2127, %v2125
  %v2146 = vpack.c.bf16 %v2141, %v2139
  %s2147 = scalar_lea.vmem %s5, 512
  %v2148 = vld [vmem:[%s2147] sm:$0xff]
  %v2149 = vld [vmem:[%s2147 + $0x8] sm:$0xff]
  %v2150 = vld [vmem:[%s2147 + $0x10] sm:$0xff]
  %v2151 = vld [vmem:[%s2147 + $0x18] sm:$0xff]
  %v2152 = vld [vmem:[%s2147 + $0x20] sm:$0xff]
  %v2153 = vld [vmem:[%s2147 + $0x28] sm:$0xff]
  %v2154 = vld [vmem:[%s2147 + $0x30] sm:$0xff]
  %v2155 = vld [vmem:[%s2147 + $0x38] sm:$0xff]
  %v2156 = vld [vmem:[%s2147 + $0x40] sm:$0xff]
  %v2157 = vld [vmem:[%s2147 + $0x48] sm:$0xff]
  %v2158 = vld [vmem:[%s2147 + $0x50] sm:$0xff]
  %v2159 = vld [vmem:[%s2147 + $0x58] sm:$0xff]
  %v2160 = vld [vmem:[%s2147 + $0x60] sm:$0xff]
  %v2161 = vld [vmem:[%s2147 + $0x68] sm:$0xff]
  %v2162 = vld [vmem:[%s2147 + $0x70] sm:$0xff]
  %v2163 = vld [vmem:[%s2147 + $0x78] sm:$0xff]
  %v2164 = vld [vmem:[%s2147 + $0x80] sm:$0xff]
  %v2165 = vld [vmem:[%s2147 + $0x88] sm:$0xff]
  %v2166 = vld [vmem:[%s2147 + $0x90] sm:$0xff]
  %v2167 = vld [vmem:[%s2147 + $0x98] sm:$0xff]
  %v2168 = vld [vmem:[%s2147 + $0xa0] sm:$0xff]
  %v2169 = vld [vmem:[%s2147 + $0xa8] sm:$0xff]
  %v2170 = vld [vmem:[%s2147 + $0xb0] sm:$0xff]
  %v2171 = vld [vmem:[%s2147 + $0xb8] sm:$0xff]
  %v2172 = vld [vmem:[%s2147 + $0xc0] sm:$0xff]
  %v2173 = vld [vmem:[%s2147 + $0xc8] sm:$0xff]
  %v2174 = vld [vmem:[%s2147 + $0xd0] sm:$0xff]
  %v2175 = vld [vmem:[%s2147 + $0xd8] sm:$0xff]
  %v2176 = vld [vmem:[%s2147 + $0xe0] sm:$0xff]
  %v2177 = vld [vmem:[%s2147 + $0xe8] sm:$0xff]
  %v2178 = vld [vmem:[%s2147 + $0xf0] sm:$0xff]
  %v2179 = vld [vmem:[%s2147 + $0xf8] sm:$0xff]
  %v2180 = vld [vmem:[%s2147 + $0x100] sm:$0xff]
  %v2181 = vld [vmem:[%s2147 + $0x108] sm:$0xff]
  %v2182 = vld [vmem:[%s2147 + $0x110] sm:$0xff]
  %v2183 = vld [vmem:[%s2147 + $0x118] sm:$0xff]
  %v2184 = vld [vmem:[%s2147 + $0x120] sm:$0xff]
  %v2185 = vld [vmem:[%s2147 + $0x128] sm:$0xff]
  %v2186 = vld [vmem:[%s2147 + $0x130] sm:$0xff]
  %v2187 = vld [vmem:[%s2147 + $0x138] sm:$0xff]
  %v2188 = vld [vmem:[%s2147 + $0x140] sm:$0xff]
  %v2189 = vld [vmem:[%s2147 + $0x148] sm:$0xff]
  %v2190 = vld [vmem:[%s2147 + $0x150] sm:$0xff]
  %v2191 = vld [vmem:[%s2147 + $0x158] sm:$0xff]
  %v2192 = vld [vmem:[%s2147 + $0x160] sm:$0xff]
  %v2193 = vld [vmem:[%s2147 + $0x168] sm:$0xff]
  %v2194 = vld [vmem:[%s2147 + $0x170] sm:$0xff]
  %v2195 = vld [vmem:[%s2147 + $0x178] sm:$0xff]
  %v2196 = vld [vmem:[%s2147 + $0x180] sm:$0xff]
  %v2197 = vld [vmem:[%s2147 + $0x188] sm:$0xff]
  %v2198 = vld [vmem:[%s2147 + $0x190] sm:$0xff]
  %v2199 = vld [vmem:[%s2147 + $0x198] sm:$0xff]
  %v2200 = vld [vmem:[%s2147 + $0x1a0] sm:$0xff]
  %v2201 = vld [vmem:[%s2147 + $0x1a8] sm:$0xff]
  %v2202 = vld [vmem:[%s2147 + $0x1b0] sm:$0xff]
  %v2203 = vld [vmem:[%s2147 + $0x1b8] sm:$0xff]
  %v2204 = vld [vmem:[%s2147 + $0x1c0] sm:$0xff]
  %v2205 = vld [vmem:[%s2147 + $0x1c8] sm:$0xff]
  %v2206 = vld [vmem:[%s2147 + $0x1d0] sm:$0xff]
  %v2207 = vld [vmem:[%s2147 + $0x1d8] sm:$0xff]
  %v2208 = vld [vmem:[%s2147 + $0x1e0] sm:$0xff]
  %v2209 = vld [vmem:[%s2147 + $0x1e8] sm:$0xff]
  %v2210 = vld [vmem:[%s2147 + $0x1f0] sm:$0xff]
  %v2211 = vld [vmem:[%s2147 + $0x1f8] sm:$0xff]
  %v2276 = vunpack.c.l.b16 %v2148
  %v2277 = vunpack.c.h.b16 %v2148
  %v2278 = vunpack.c.l.b16 %v2149
  %v2279 = vunpack.c.h.b16 %v2149
  %v2280 = vunpack.c.l.b16 %v2150
  %v2281 = vunpack.c.h.b16 %v2150
  %v2282 = vunpack.c.l.b16 %v2151
  %v2283 = vunpack.c.h.b16 %v2151
  %v2284 = vunpack.c.l.b16 %v2152
  %v2285 = vunpack.c.h.b16 %v2152
  %v2286 = vunpack.c.l.b16 %v2153
  %v2287 = vunpack.c.h.b16 %v2153
  %v2288 = vunpack.c.l.b16 %v2154
  %v2289 = vunpack.c.h.b16 %v2154
  %v2290 = vunpack.c.l.b16 %v2155
  %v2291 = vunpack.c.h.b16 %v2155
  %v2292 = vunpack.c.l.b16 %v2156
  %v2293 = vunpack.c.h.b16 %v2156
  %v2294 = vunpack.c.l.b16 %v2157
  %v2295 = vunpack.c.h.b16 %v2157
  %v2296 = vunpack.c.l.b16 %v2158
  %v2297 = vunpack.c.h.b16 %v2158
  %v2298 = vunpack.c.l.b16 %v2159
  %v2299 = vunpack.c.h.b16 %v2159
  %v2300 = vunpack.c.l.b16 %v2160
  %v2301 = vunpack.c.h.b16 %v2160
  %v2302 = vunpack.c.l.b16 %v2161
  %v2303 = vunpack.c.h.b16 %v2161
  %v2304 = vunpack.c.l.b16 %v2162
  %v2305 = vunpack.c.h.b16 %v2162
  %v2306 = vunpack.c.l.b16 %v2163
  %v2307 = vunpack.c.h.b16 %v2163
  %v2308 = vunpack.c.l.b16 %v2164
  %v2309 = vunpack.c.h.b16 %v2164
  %v2310 = vunpack.c.l.b16 %v2165
  %v2311 = vunpack.c.h.b16 %v2165
  %v2312 = vunpack.c.l.b16 %v2166
  %v2313 = vunpack.c.h.b16 %v2166
  %v2314 = vunpack.c.l.b16 %v2167
  %v2315 = vunpack.c.h.b16 %v2167
  %v2316 = vunpack.c.l.b16 %v2168
  %v2317 = vunpack.c.h.b16 %v2168
  %v2318 = vunpack.c.l.b16 %v2169
  %v2319 = vunpack.c.h.b16 %v2169
  %v2320 = vunpack.c.l.b16 %v2170
  %v2321 = vunpack.c.h.b16 %v2170
  %v2322 = vunpack.c.l.b16 %v2171
  %v2323 = vunpack.c.h.b16 %v2171
  %v2324 = vunpack.c.l.b16 %v2172
  %v2325 = vunpack.c.h.b16 %v2172
  %v2326 = vunpack.c.l.b16 %v2173
  %v2327 = vunpack.c.h.b16 %v2173
  %v2328 = vunpack.c.l.b16 %v2174
  %v2329 = vunpack.c.h.b16 %v2174
  %v2330 = vunpack.c.l.b16 %v2175
  %v2331 = vunpack.c.h.b16 %v2175
  %v2332 = vunpack.c.l.b16 %v2176
  %v2333 = vunpack.c.h.b16 %v2176
  %v2334 = vunpack.c.l.b16 %v2177
  %v2335 = vunpack.c.h.b16 %v2177
  %v2336 = vunpack.c.l.b16 %v2178
  %v2337 = vunpack.c.h.b16 %v2178
  %v2338 = vunpack.c.l.b16 %v2179
  %v2339 = vunpack.c.h.b16 %v2179
  %v2340 = vunpack.c.l.b16 %v2180
  %v2341 = vunpack.c.h.b16 %v2180
  %v2342 = vunpack.c.l.b16 %v2181
  %v2343 = vunpack.c.h.b16 %v2181
  %v2344 = vunpack.c.l.b16 %v2182
  %v2345 = vunpack.c.h.b16 %v2182
  %v2346 = vunpack.c.l.b16 %v2183
  %v2347 = vunpack.c.h.b16 %v2183
  %v2348 = vunpack.c.l.b16 %v2184
  %v2349 = vunpack.c.h.b16 %v2184
  %v2350 = vunpack.c.l.b16 %v2185
  %v2351 = vunpack.c.h.b16 %v2185
  %v2352 = vunpack.c.l.b16 %v2186
  %v2353 = vunpack.c.h.b16 %v2186
  %v2354 = vunpack.c.l.b16 %v2187
  %v2355 = vunpack.c.h.b16 %v2187
  %v2356 = vunpack.c.l.b16 %v2188
  %v2357 = vunpack.c.h.b16 %v2188
  %v2358 = vunpack.c.l.b16 %v2189
  %v2359 = vunpack.c.h.b16 %v2189
  %v2360 = vunpack.c.l.b16 %v2190
  %v2361 = vunpack.c.h.b16 %v2190
  %v2362 = vunpack.c.l.b16 %v2191
  %v2363 = vunpack.c.h.b16 %v2191
  %v2364 = vunpack.c.l.b16 %v2192
  %v2365 = vunpack.c.h.b16 %v2192
  %v2366 = vunpack.c.l.b16 %v2193
  %v2367 = vunpack.c.h.b16 %v2193
  %v2368 = vunpack.c.l.b16 %v2194
  %v2369 = vunpack.c.h.b16 %v2194
  %v2370 = vunpack.c.l.b16 %v2195
  %v2371 = vunpack.c.h.b16 %v2195
  %v2372 = vunpack.c.l.b16 %v2196
  %v2373 = vunpack.c.h.b16 %v2196
  %v2374 = vunpack.c.l.b16 %v2197
  %v2375 = vunpack.c.h.b16 %v2197
  %v2376 = vunpack.c.l.b16 %v2198
  %v2377 = vunpack.c.h.b16 %v2198
  %v2378 = vunpack.c.l.b16 %v2199
  %v2379 = vunpack.c.h.b16 %v2199
  %v2380 = vunpack.c.l.b16 %v2200
  %v2381 = vunpack.c.h.b16 %v2200
  %v2382 = vunpack.c.l.b16 %v2201
  %v2383 = vunpack.c.h.b16 %v2201
  %v2384 = vunpack.c.l.b16 %v2202
  %v2385 = vunpack.c.h.b16 %v2202
  %v2386 = vunpack.c.l.b16 %v2203
  %v2387 = vunpack.c.h.b16 %v2203
  %v2388 = vunpack.c.l.b16 %v2204
  %v2389 = vunpack.c.h.b16 %v2204
  %v2390 = vunpack.c.l.b16 %v2205
  %v2391 = vunpack.c.h.b16 %v2205
  %v2392 = vunpack.c.l.b16 %v2206
  %v2393 = vunpack.c.h.b16 %v2206
  %v2394 = vunpack.c.l.b16 %v2207
  %v2395 = vunpack.c.h.b16 %v2207
  %v2396 = vunpack.c.l.b16 %v2208
  %v2397 = vunpack.c.h.b16 %v2208
  %v2398 = vunpack.c.l.b16 %v2209
  %v2399 = vunpack.c.h.b16 %v2209
  %v2400 = vunpack.c.l.b16 %v2210
  %v2401 = vunpack.c.h.b16 %v2210
  %v2402 = vunpack.c.l.b16 %v2211
  %v2403 = vunpack.c.h.b16 %v2211
  %v2404 = vpack.c.b16 %v2278, %v2276
  %v2405 = vpack.c.b16 %v2279, %v2277
  %v2406 = vpack.c.b16 %v2282, %v2280
  %v2407 = vpack.c.b16 %v2283, %v2281
  %v2408 = vpack.c.b16 %v2286, %v2284
  %v2409 = vpack.c.b16 %v2287, %v2285
  %v2410 = vpack.c.b16 %v2290, %v2288
  %v2411 = vpack.c.b16 %v2291, %v2289
  %v2412 = vpack.c.b16 %v2294, %v2292
  %v2413 = vpack.c.b16 %v2295, %v2293
  %v2414 = vpack.c.b16 %v2298, %v2296
  %v2415 = vpack.c.b16 %v2299, %v2297
  %v2416 = vpack.c.b16 %v2302, %v2300
  %v2417 = vpack.c.b16 %v2303, %v2301
  %v2418 = vpack.c.b16 %v2306, %v2304
  %v2419 = vpack.c.b16 %v2307, %v2305
  %v2420 = vpack.c.b16 %v2310, %v2308
  %v2421 = vpack.c.b16 %v2311, %v2309
  %v2422 = vpack.c.b16 %v2314, %v2312
  %v2423 = vpack.c.b16 %v2315, %v2313
  %v2424 = vpack.c.b16 %v2318, %v2316
  %v2425 = vpack.c.b16 %v2319, %v2317
  %v2426 = vpack.c.b16 %v2322, %v2320
  %v2427 = vpack.c.b16 %v2323, %v2321
  %v2428 = vpack.c.b16 %v2326, %v2324
  %v2429 = vpack.c.b16 %v2327, %v2325
  %v2430 = vpack.c.b16 %v2330, %v2328
  %v2431 = vpack.c.b16 %v2331, %v2329
  %v2432 = vpack.c.b16 %v2334, %v2332
  %v2433 = vpack.c.b16 %v2335, %v2333
  %v2434 = vpack.c.b16 %v2338, %v2336
  %v2435 = vpack.c.b16 %v2339, %v2337
  %v2436 = vpack.c.b16 %v2342, %v2340
  %v2437 = vpack.c.b16 %v2343, %v2341
  %v2438 = vpack.c.b16 %v2346, %v2344
  %v2439 = vpack.c.b16 %v2347, %v2345
  %v2440 = vpack.c.b16 %v2350, %v2348
  %v2441 = vpack.c.b16 %v2351, %v2349
  %v2442 = vpack.c.b16 %v2354, %v2352
  %v2443 = vpack.c.b16 %v2355, %v2353
  %v2444 = vpack.c.b16 %v2358, %v2356
  %v2445 = vpack.c.b16 %v2359, %v2357
  %v2446 = vpack.c.b16 %v2362, %v2360
  %v2447 = vpack.c.b16 %v2363, %v2361
  %v2448 = vpack.c.b16 %v2366, %v2364
  %v2449 = vpack.c.b16 %v2367, %v2365
  %v2450 = vpack.c.b16 %v2370, %v2368
  %v2451 = vpack.c.b16 %v2371, %v2369
  %v2452 = vpack.c.b16 %v2374, %v2372
  %v2453 = vpack.c.b16 %v2375, %v2373
  %v2454 = vpack.c.b16 %v2378, %v2376
  %v2455 = vpack.c.b16 %v2379, %v2377
  %v2456 = vpack.c.b16 %v2382, %v2380
  %v2457 = vpack.c.b16 %v2383, %v2381
  %v2458 = vpack.c.b16 %v2386, %v2384
  %v2459 = vpack.c.b16 %v2387, %v2385
  %v2460 = vpack.c.b16 %v2390, %v2388
  %v2461 = vpack.c.b16 %v2391, %v2389
  %v2462 = vpack.c.b16 %v2394, %v2392
  %v2463 = vpack.c.b16 %v2395, %v2393
  %v2464 = vpack.c.b16 %v2398, %v2396
  %v2465 = vpack.c.b16 %v2399, %v2397
  %v2466 = vpack.c.b16 %v2402, %v2400
  %v2467 = vpack.c.b16 %v2403, %v2401
  %2532 = vmatpush.bf16.msra.mxu0 %v2418
  %2533 = vmatpush.bf16.msra.mxu0 %v2416
  %2534 = vmatpush.bf16.msra.mxu0 %v2414
  %2535 = vmatpush.bf16.msra.mxu0 %v2412
  %2536 = vmatpush.bf16.msra.mxu0 %v2410
  %2537 = vmatpush.bf16.msra.mxu0 %v2408
  %2538 = vmatpush.bf16.msra.mxu0 %v2406
  %2539 = vmatpush.bf16.msra.mxu0 %v2404
  %2540 = vmatmul.bf16.gmra.mxu0 %v2143
  %v2541 = vpop.f32.mrf.mxu0
  %v2542 = vadd.f32 0.0, %v2541
  %v2543 = vpop.f32.mrf.mxu0
  %v2544 = vadd.f32 0.0, %v2543
  %2545 = vdwg.mxu0
  %2546 = vmatpush.bf16.msra.mxu0 %v2434
  %2547 = vmatpush.bf16.msra.mxu0 %v2432
  %2548 = vmatpush.bf16.msra.mxu0 %v2430
  %2549 = vmatpush.bf16.msra.mxu0 %v2428
  %2550 = vmatpush.bf16.msra.mxu0 %v2426
  %2551 = vmatpush.bf16.msra.mxu0 %v2424
  %2552 = vmatpush.bf16.msra.mxu0 %v2422
  %2553 = vmatpush.bf16.msra.mxu0 %v2420
  %2554 = vmatmul.bf16.gmra.mxu0 %v2144
  %v2555 = vpop.f32.mrf.mxu0
  %v2556 = vadd.f32 %v2542, %v2555
  %v2557 = vpop.f32.mrf.mxu0
  %v2558 = vadd.f32 %v2544, %v2557
  %2559 = vdwg.mxu0
  %2560 = vmatpush.bf16.msra.mxu0 %v2450
  %2561 = vmatpush.bf16.msra.mxu0 %v2448
  %2562 = vmatpush.bf16.msra.mxu0 %v2446
  %2563 = vmatpush.bf16.msra.mxu0 %v2444
  %2564 = vmatpush.bf16.msra.mxu0 %v2442
  %2565 = vmatpush.bf16.msra.mxu0 %v2440
  %2566 = vmatpush.bf16.msra.mxu0 %v2438
  %2567 = vmatpush.bf16.msra.mxu0 %v2436
  %2568 = vmatmul.bf16.gmra.mxu0 %v2145
  %v2569 = vpop.f32.mrf.mxu0
  %v2570 = vadd.f32 %v2556, %v2569
  %v2571 = vpop.f32.mrf.mxu0
  %v2572 = vadd.f32 %v2558, %v2571
  %2573 = vdwg.mxu0
  %2574 = vmatpush.bf16.msra.mxu0 %v2466
  %2575 = vmatpush.bf16.msra.mxu0 %v2464
  %2576 = vmatpush.bf16.msra.mxu0 %v2462
  %2577 = vmatpush.bf16.msra.mxu0 %v2460
  %2578 = vmatpush.bf16.msra.mxu0 %v2458
  %2579 = vmatpush.bf16.msra.mxu0 %v2456
  %2580 = vmatpush.bf16.msra.mxu0 %v2454
  %2581 = vmatpush.bf16.msra.mxu0 %v2452
  %2582 = vmatmul.bf16.gmra.mxu0 %v2146
  %v2583 = vpop.f32.mrf.mxu0
  %v2584 = vadd.f32 %v2570, %v2583
  %v2585 = vpop.f32.mrf.mxu0
  %v2586 = vadd.f32 %v2572, %v2585
  %2587 = vdwg.mxu0
  %2588 = vmatpush.bf16.msra.mxu0 %v2419
  %2589 = vmatpush.bf16.msra.mxu0 %v2417
  %2590 = vmatpush.bf16.msra.mxu0 %v2415
  %2591 = vmatpush.bf16.msra.mxu0 %v2413
  %2592 = vmatpush.bf16.msra.mxu0 %v2411
  %2593 = vmatpush.bf16.msra.mxu0 %v2409
  %2594 = vmatpush.bf16.msra.mxu0 %v2407
  %2595 = vmatpush.bf16.msra.mxu0 %v2405
  %2596 = vmatmul.bf16.gmra.mxu0 %v2143
  %v2597 = vpop.f32.mrf.mxu0
  %v2598 = vadd.f32 0.0, %v2597
  %v2599 = vpop.f32.mrf.mxu0
  %v2600 = vadd.f32 0.0, %v2599
  %2601 = vdwg.mxu0
  %2602 = vmatpush.bf16.msra.mxu0 %v2435
  %2603 = vmatpush.bf16.msra.mxu0 %v2433
  %2604 = vmatpush.bf16.msra.mxu0 %v2431
  %2605 = vmatpush.bf16.msra.mxu0 %v2429
  %2606 = vmatpush.bf16.msra.mxu0 %v2427
  %2607 = vmatpush.bf16.msra.mxu0 %v2425
  %2608 = vmatpush.bf16.msra.mxu0 %v2423
  %2609 = vmatpush.bf16.msra.mxu0 %v2421
  %2610 = vmatmul.bf16.gmra.mxu0 %v2144
  %v2611 = vpop.f32.mrf.mxu0
  %v2612 = vadd.f32 %v2598, %v2611
  %v2613 = vpop.f32.mrf.mxu0
  %v2614 = vadd.f32 %v2600, %v2613
  %2615 = vdwg.mxu0
  %2616 = vmatpush.bf16.msra.mxu0 %v2451
  %2617 = vmatpush.bf16.msra.mxu0 %v2449
  %2618 = vmatpush.bf16.msra.mxu0 %v2447
  %2619 = vmatpush.bf16.msra.mxu0 %v2445
  %2620 = vmatpush.bf16.msra.mxu0 %v2443
  %2621 = vmatpush.bf16.msra.mxu0 %v2441
  %2622 = vmatpush.bf16.msra.mxu0 %v2439
  %2623 = vmatpush.bf16.msra.mxu0 %v2437
  %2624 = vmatmul.bf16.gmra.mxu0 %v2145
  %v2625 = vpop.f32.mrf.mxu0
  %v2626 = vadd.f32 %v2612, %v2625
  %v2627 = vpop.f32.mrf.mxu0
  %v2628 = vadd.f32 %v2614, %v2627
  %2629 = vdwg.mxu0
  %2630 = vmatpush.bf16.msra.mxu0 %v2467
  %2631 = vmatpush.bf16.msra.mxu0 %v2465
  %2632 = vmatpush.bf16.msra.mxu0 %v2463
  %2633 = vmatpush.bf16.msra.mxu0 %v2461
  %2634 = vmatpush.bf16.msra.mxu0 %v2459
  %2635 = vmatpush.bf16.msra.mxu0 %v2457
  %2636 = vmatpush.bf16.msra.mxu0 %v2455
  %2637 = vmatpush.bf16.msra.mxu0 %v2453
  %2638 = vmatmul.bf16.gmra.mxu0 %v2146
  %v2639 = vpop.f32.mrf.mxu0
  %v2640 = vadd.f32 %v2626, %v2639
  %v2641 = vpop.f32.mrf.mxu0
  %v2642 = vadd.f32 %v2628, %v2641
  %2643 = vdwg.mxu0
  %v2708 = vunpack.c.l.b16 %v2012
  %v2709 = vunpack.c.h.b16 %v2012
  %v2710 = vunpack.c.l.b16 %v2013
  %v2711 = vunpack.c.h.b16 %v2013
  %v2712 = vunpack.c.l.b16 %v2014
  %v2713 = vunpack.c.h.b16 %v2014
  %v2714 = vunpack.c.l.b16 %v2015
  %v2715 = vunpack.c.h.b16 %v2015
  %v2716 = vunpack.c.l.b16 %v2016
  %v2717 = vunpack.c.h.b16 %v2016
  %v2718 = vunpack.c.l.b16 %v2017
  %v2719 = vunpack.c.h.b16 %v2017
  %v2720 = vunpack.c.l.b16 %v2018
  %v2721 = vunpack.c.h.b16 %v2018
  %v2722 = vunpack.c.l.b16 %v2019
  %v2723 = vunpack.c.h.b16 %v2019
  %v2724 = vunpack.c.l.b16 %v2020
  %v2725 = vunpack.c.h.b16 %v2020
  %v2726 = vunpack.c.l.b16 %v2021
  %v2727 = vunpack.c.h.b16 %v2021
  %v2728 = vunpack.c.l.b16 %v2022
  %v2729 = vunpack.c.h.b16 %v2022
  %v2730 = vunpack.c.l.b16 %v2023
  %v2731 = vunpack.c.h.b16 %v2023
  %v2732 = vunpack.c.l.b16 %v2024
  %v2733 = vunpack.c.h.b16 %v2024
  %v2734 = vunpack.c.l.b16 %v2025
  %v2735 = vunpack.c.h.b16 %v2025
  %v2736 = vunpack.c.l.b16 %v2026
  %v2737 = vunpack.c.h.b16 %v2026
  %v2738 = vunpack.c.l.b16 %v2027
  %v2739 = vunpack.c.h.b16 %v2027
  %v2740 = vunpack.c.l.b16 %v2028
  %v2741 = vunpack.c.h.b16 %v2028
  %v2742 = vunpack.c.l.b16 %v2029
  %v2743 = vunpack.c.h.b16 %v2029
  %v2744 = vunpack.c.l.b16 %v2030
  %v2745 = vunpack.c.h.b16 %v2030
  %v2746 = vunpack.c.l.b16 %v2031
  %v2747 = vunpack.c.h.b16 %v2031
  %v2748 = vunpack.c.l.b16 %v2032
  %v2749 = vunpack.c.h.b16 %v2032
  %v2750 = vunpack.c.l.b16 %v2033
  %v2751 = vunpack.c.h.b16 %v2033
  %v2752 = vunpack.c.l.b16 %v2034
  %v2753 = vunpack.c.h.b16 %v2034
  %v2754 = vunpack.c.l.b16 %v2035
  %v2755 = vunpack.c.h.b16 %v2035
  %v2756 = vunpack.c.l.b16 %v2036
  %v2757 = vunpack.c.h.b16 %v2036
  %v2758 = vunpack.c.l.b16 %v2037
  %v2759 = vunpack.c.h.b16 %v2037
  %v2760 = vunpack.c.l.b16 %v2038
  %v2761 = vunpack.c.h.b16 %v2038
  %v2762 = vunpack.c.l.b16 %v2039
  %v2763 = vunpack.c.h.b16 %v2039
  %v2764 = vunpack.c.l.b16 %v2040
  %v2765 = vunpack.c.h.b16 %v2040
  %v2766 = vunpack.c.l.b16 %v2041
  %v2767 = vunpack.c.h.b16 %v2041
  %v2768 = vunpack.c.l.b16 %v2042
  %v2769 = vunpack.c.h.b16 %v2042
  %v2770 = vunpack.c.l.b16 %v2043
  %v2771 = vunpack.c.h.b16 %v2043
  %v2772 = vunpack.c.l.b16 %v2044
  %v2773 = vunpack.c.h.b16 %v2044
  %v2774 = vunpack.c.l.b16 %v2045
  %v2775 = vunpack.c.h.b16 %v2045
  %v2776 = vunpack.c.l.b16 %v2046
  %v2777 = vunpack.c.h.b16 %v2046
  %v2778 = vunpack.c.l.b16 %v2047
  %v2779 = vunpack.c.h.b16 %v2047
  %v2780 = vunpack.c.l.b16 %v2048
  %v2781 = vunpack.c.h.b16 %v2048
  %v2782 = vunpack.c.l.b16 %v2049
  %v2783 = vunpack.c.h.b16 %v2049
  %v2784 = vunpack.c.l.b16 %v2050
  %v2785 = vunpack.c.h.b16 %v2050
  %v2786 = vunpack.c.l.b16 %v2051
  %v2787 = vunpack.c.h.b16 %v2051
  %v2788 = vunpack.c.l.b16 %v2052
  %v2789 = vunpack.c.h.b16 %v2052
  %v2790 = vunpack.c.l.b16 %v2053
  %v2791 = vunpack.c.h.b16 %v2053
  %v2792 = vunpack.c.l.b16 %v2054
  %v2793 = vunpack.c.h.b16 %v2054
  %v2794 = vunpack.c.l.b16 %v2055
  %v2795 = vunpack.c.h.b16 %v2055
  %v2796 = vunpack.c.l.b16 %v2056
  %v2797 = vunpack.c.h.b16 %v2056
  %v2798 = vunpack.c.l.b16 %v2057
  %v2799 = vunpack.c.h.b16 %v2057
  %v2800 = vunpack.c.l.b16 %v2058
  %v2801 = vunpack.c.h.b16 %v2058
  %v2802 = vunpack.c.l.b16 %v2059
  %v2803 = vunpack.c.h.b16 %v2059
  %v2804 = vunpack.c.l.b16 %v2060
  %v2805 = vunpack.c.h.b16 %v2060
  %v2806 = vunpack.c.l.b16 %v2061
  %v2807 = vunpack.c.h.b16 %v2061
  %v2808 = vunpack.c.l.b16 %v2062
  %v2809 = vunpack.c.h.b16 %v2062
  %v2810 = vunpack.c.l.b16 %v2063
  %v2811 = vunpack.c.h.b16 %v2063
  %v2812 = vunpack.c.l.b16 %v2064
  %v2813 = vunpack.c.h.b16 %v2064
  %v2814 = vunpack.c.l.b16 %v2065
  %v2815 = vunpack.c.h.b16 %v2065
  %v2816 = vunpack.c.l.b16 %v2066
  %v2817 = vunpack.c.h.b16 %v2066
  %v2818 = vunpack.c.l.b16 %v2067
  %v2819 = vunpack.c.h.b16 %v2067
  %v2820 = vunpack.c.l.b16 %v2068
  %v2821 = vunpack.c.h.b16 %v2068
  %v2822 = vunpack.c.l.b16 %v2069
  %v2823 = vunpack.c.h.b16 %v2069
  %v2824 = vunpack.c.l.b16 %v2070
  %v2825 = vunpack.c.h.b16 %v2070
  %v2826 = vunpack.c.l.b16 %v2071
  %v2827 = vunpack.c.h.b16 %v2071
  %v2828 = vunpack.c.l.b16 %v2072
  %v2829 = vunpack.c.h.b16 %v2072
  %v2830 = vunpack.c.l.b16 %v2073
  %v2831 = vunpack.c.h.b16 %v2073
  %v2832 = vunpack.c.l.b16 %v2074
  %v2833 = vunpack.c.h.b16 %v2074
  %v2834 = vunpack.c.l.b16 %v2075
  %v2835 = vunpack.c.h.b16 %v2075
  %v2836 = vpack.c.b16 %v2710, %v2708
  %v2837 = vpack.c.b16 %v2711, %v2709
  %v2838 = vpack.c.b16 %v2714, %v2712
  %v2839 = vpack.c.b16 %v2715, %v2713
  %v2840 = vpack.c.b16 %v2718, %v2716
  %v2841 = vpack.c.b16 %v2719, %v2717
  %v2842 = vpack.c.b16 %v2722, %v2720
  %v2843 = vpack.c.b16 %v2723, %v2721
  %v2844 = vpack.c.b16 %v2726, %v2724
  %v2845 = vpack.c.b16 %v2727, %v2725
  %v2846 = vpack.c.b16 %v2730, %v2728
  %v2847 = vpack.c.b16 %v2731, %v2729
  %v2848 = vpack.c.b16 %v2734, %v2732
  %v2849 = vpack.c.b16 %v2735, %v2733
  %v2850 = vpack.c.b16 %v2738, %v2736
  %v2851 = vpack.c.b16 %v2739, %v2737
  %v2852 = vpack.c.b16 %v2742, %v2740
  %v2853 = vpack.c.b16 %v2743, %v2741
  %v2854 = vpack.c.b16 %v2746, %v2744
  %v2855 = vpack.c.b16 %v2747, %v2745
  %v2856 = vpack.c.b16 %v2750, %v2748
  %v2857 = vpack.c.b16 %v2751, %v2749
  %v2858 = vpack.c.b16 %v2754, %v2752
  %v2859 = vpack.c.b16 %v2755, %v2753
  %v2860 = vpack.c.b16 %v2758, %v2756
  %v2861 = vpack.c.b16 %v2759, %v2757
  %v2862 = vpack.c.b16 %v2762, %v2760
  %v2863 = vpack.c.b16 %v2763, %v2761
  %v2864 = vpack.c.b16 %v2766, %v2764
  %v2865 = vpack.c.b16 %v2767, %v2765
  %v2866 = vpack.c.b16 %v2770, %v2768
  %v2867 = vpack.c.b16 %v2771, %v2769
  %v2868 = vpack.c.b16 %v2774, %v2772
  %v2869 = vpack.c.b16 %v2775, %v2773
  %v2870 = vpack.c.b16 %v2778, %v2776
  %v2871 = vpack.c.b16 %v2779, %v2777
  %v2872 = vpack.c.b16 %v2782, %v2780
  %v2873 = vpack.c.b16 %v2783, %v2781
  %v2874 = vpack.c.b16 %v2786, %v2784
  %v2875 = vpack.c.b16 %v2787, %v2785
  %v2876 = vpack.c.b16 %v2790, %v2788
  %v2877 = vpack.c.b16 %v2791, %v2789
  %v2878 = vpack.c.b16 %v2794, %v2792
  %v2879 = vpack.c.b16 %v2795, %v2793
  %v2880 = vpack.c.b16 %v2798, %v2796
  %v2881 = vpack.c.b16 %v2799, %v2797
  %v2882 = vpack.c.b16 %v2802, %v2800
  %v2883 = vpack.c.b16 %v2803, %v2801
  %v2884 = vpack.c.b16 %v2806, %v2804
  %v2885 = vpack.c.b16 %v2807, %v2805
  %v2886 = vpack.c.b16 %v2810, %v2808
  %v2887 = vpack.c.b16 %v2811, %v2809
  %v2888 = vpack.c.b16 %v2814, %v2812
  %v2889 = vpack.c.b16 %v2815, %v2813
  %v2890 = vpack.c.b16 %v2818, %v2816
  %v2891 = vpack.c.b16 %v2819, %v2817
  %v2892 = vpack.c.b16 %v2822, %v2820
  %v2893 = vpack.c.b16 %v2823, %v2821
  %v2894 = vpack.c.b16 %v2826, %v2824
  %v2895 = vpack.c.b16 %v2827, %v2825
  %v2896 = vpack.c.b16 %v2830, %v2828
  %v2897 = vpack.c.b16 %v2831, %v2829
  %v2898 = vpack.c.b16 %v2834, %v2832
  %v2899 = vpack.c.b16 %v2835, %v2833
  %2964 = vmatpush.bf16.msra.mxu0 %v2850
  %2965 = vmatpush.bf16.msra.mxu0 %v2848
  %2966 = vmatpush.bf16.msra.mxu0 %v2846
  %2967 = vmatpush.bf16.msra.mxu0 %v2844
  %2968 = vmatpush.bf16.msra.mxu0 %v2842
  %2969 = vmatpush.bf16.msra.mxu0 %v2840
  %2970 = vmatpush.bf16.msra.mxu0 %v2838
  %2971 = vmatpush.bf16.msra.mxu0 %v2836
  %2972 = vmatmul.bf16.gmra.mxu0 %v2008
  %v2973 = vpop.f32.mrf.mxu0
  %v2974 = vadd.f32 %v2584, %v2973
  %v2975 = vpop.f32.mrf.mxu0
  %v2976 = vadd.f32 %v2586, %v2975
  %2977 = vdwg.mxu0
  %2978 = vmatpush.bf16.msra.mxu0 %v2866
  %2979 = vmatpush.bf16.msra.mxu0 %v2864
  %2980 = vmatpush.bf16.msra.mxu0 %v2862
  %2981 = vmatpush.bf16.msra.mxu0 %v2860
  %2982 = vmatpush.bf16.msra.mxu0 %v2858
  %2983 = vmatpush.bf16.msra.mxu0 %v2856
  %2984 = vmatpush.bf16.msra.mxu0 %v2854
  %2985 = vmatpush.bf16.msra.mxu0 %v2852
  %2986 = vmatmul.bf16.gmra.mxu0 %v2009
  %v2987 = vpop.f32.mrf.mxu0
  %v2988 = vadd.f32 %v2974, %v2987
  %v2989 = vpop.f32.mrf.mxu0
  %v2990 = vadd.f32 %v2976, %v2989
  %2991 = vdwg.mxu0
  %2992 = vmatpush.bf16.msra.mxu0 %v2882
  %2993 = vmatpush.bf16.msra.mxu0 %v2880
  %2994 = vmatpush.bf16.msra.mxu0 %v2878
  %2995 = vmatpush.bf16.msra.mxu0 %v2876
  %2996 = vmatpush.bf16.msra.mxu0 %v2874
  %2997 = vmatpush.bf16.msra.mxu0 %v2872
  %2998 = vmatpush.bf16.msra.mxu0 %v2870
  %2999 = vmatpush.bf16.msra.mxu0 %v2868
  %3000 = vmatmul.bf16.gmra.mxu0 %v2010
  %v3001 = vpop.f32.mrf.mxu0
  %v3002 = vadd.f32 %v2988, %v3001
  %v3003 = vpop.f32.mrf.mxu0
  %v3004 = vadd.f32 %v2990, %v3003
  %3005 = vdwg.mxu0
  %3006 = vmatpush.bf16.msra.mxu0 %v2898
  %3007 = vmatpush.bf16.msra.mxu0 %v2896
  %3008 = vmatpush.bf16.msra.mxu0 %v2894
  %3009 = vmatpush.bf16.msra.mxu0 %v2892
  %3010 = vmatpush.bf16.msra.mxu0 %v2890
  %3011 = vmatpush.bf16.msra.mxu0 %v2888
  %3012 = vmatpush.bf16.msra.mxu0 %v2886
  %3013 = vmatpush.bf16.msra.mxu0 %v2884
  %3014 = vmatmul.bf16.gmra.mxu0 %v2011
  %v3015 = vpop.f32.mrf.mxu0
  %v3016 = vadd.f32 %v3002, %v3015
  %v3017 = vpop.f32.mrf.mxu0
  %v3018 = vadd.f32 %v3004, %v3017
  %3019 = vdwg.mxu0
  %3020 = vmatpush.bf16.msra.mxu0 %v2851
  %3021 = vmatpush.bf16.msra.mxu0 %v2849
  %3022 = vmatpush.bf16.msra.mxu0 %v2847
  %3023 = vmatpush.bf16.msra.mxu0 %v2845
  %3024 = vmatpush.bf16.msra.mxu0 %v2843
  %3025 = vmatpush.bf16.msra.mxu0 %v2841
  %3026 = vmatpush.bf16.msra.mxu0 %v2839
  %3027 = vmatpush.bf16.msra.mxu0 %v2837
  %3028 = vmatmul.bf16.gmra.mxu0 %v2008
  %v3029 = vpop.f32.mrf.mxu0
  %v3030 = vadd.f32 %v2640, %v3029
  %v3031 = vpop.f32.mrf.mxu0
  %v3032 = vadd.f32 %v2642, %v3031
  %3033 = vdwg.mxu0
  %3034 = vmatpush.bf16.msra.mxu0 %v2867
  %3035 = vmatpush.bf16.msra.mxu0 %v2865
  %3036 = vmatpush.bf16.msra.mxu0 %v2863
  %3037 = vmatpush.bf16.msra.mxu0 %v2861
  %3038 = vmatpush.bf16.msra.mxu0 %v2859
  %3039 = vmatpush.bf16.msra.mxu0 %v2857
  %3040 = vmatpush.bf16.msra.mxu0 %v2855
  %3041 = vmatpush.bf16.msra.mxu0 %v2853
  %3042 = vmatmul.bf16.gmra.mxu0 %v2009
  %v3043 = vpop.f32.mrf.mxu0
  %v3044 = vadd.f32 %v3030, %v3043
  %v3045 = vpop.f32.mrf.mxu0
  %v3046 = vadd.f32 %v3032, %v3045
  %3047 = vdwg.mxu0
  %3048 = vmatpush.bf16.msra.mxu0 %v2883
  %3049 = vmatpush.bf16.msra.mxu0 %v2881
  %3050 = vmatpush.bf16.msra.mxu0 %v2879
  %3051 = vmatpush.bf16.msra.mxu0 %v2877
  %3052 = vmatpush.bf16.msra.mxu0 %v2875
  %3053 = vmatpush.bf16.msra.mxu0 %v2873
  %3054 = vmatpush.bf16.msra.mxu0 %v2871
  %3055 = vmatpush.bf16.msra.mxu0 %v2869
  %3056 = vmatmul.bf16.gmra.mxu0 %v2010
  %v3057 = vpop.f32.mrf.mxu0
  %v3058 = vadd.f32 %v3044, %v3057
  %v3059 = vpop.f32.mrf.mxu0
  %v3060 = vadd.f32 %v3046, %v3059
  %3061 = vdwg.mxu0
  %3062 = vmatpush.bf16.msra.mxu0 %v2899
  %3063 = vmatpush.bf16.msra.mxu0 %v2897
  %3064 = vmatpush.bf16.msra.mxu0 %v2895
  %3065 = vmatpush.bf16.msra.mxu0 %v2893
  %3066 = vmatpush.bf16.msra.mxu0 %v2891
  %3067 = vmatpush.bf16.msra.mxu0 %v2889
  %3068 = vmatpush.bf16.msra.mxu0 %v2887
  %3069 = vmatpush.bf16.msra.mxu0 %v2885
  %3070 = vmatmul.bf16.gmra.mxu0 %v2011
  %v3071 = vpop.f32.mrf.mxu0
  %v3072 = vadd.f32 %v3058, %v3071
  %v3073 = vpop.f32.mrf.mxu0
  %v3074 = vadd.f32 %v3060, %v3073
  %3075 = vdwg.mxu0
  %s3076 = scalar_lea.vmem %s4, 16
  %v3077 = vld [vmem:[%s3076] sm:$0xf]
  %v3078 = vld [vmem:[%s3076 + $0x4] sm:$0xf]
  %v3081 = vunpack.c.l.b16 %v3077
  %v3082 = vunpack.c.l.b16 %v3078
  %v3083 = vpack.c.b16 %v3082, %v3081
  %v3085 = vsel %vm59, %v3083, 0
  %3087 = vmatpush.bf16.msra.mxu0 0
  %3088 = vmatpush.bf16.msra.mxu0 0
  %3089 = vmatpush.bf16.msra.mxu0 0
  %3090 = vmatpush.bf16.msra.mxu0 0
  %3091 = vmatpush.bf16.msra.mxu0 0
  %3092 = vmatpush.bf16.msra.mxu0 0
  %3093 = vmatpush.bf16.msra.mxu0 %v1938
  %3094 = vmatpush.bf16.msra.mxu0 %v1934
  %3095 = vmatmul.bf16.gmra.mxu0 %v3085
  %v3096 = vpop.f32.mrf.mxu0
  %v3097 = vadd.f32 0.0, %v3096
  %v3098 = vpop.f32.mrf.mxu0
  %v3099 = vadd.f32 0.0, %v3098
  %3100 = vdwg.mxu0
  %3101 = vmatpush.bf16.msra.mxu0 0
  %3102 = vmatpush.bf16.msra.mxu0 0
  %3103 = vmatpush.bf16.msra.mxu0 0
  %3104 = vmatpush.bf16.msra.mxu0 0
  %3105 = vmatpush.bf16.msra.mxu0 0
  %3106 = vmatpush.bf16.msra.mxu0 0
  %3107 = vmatpush.bf16.msra.mxu0 %v1939
  %3108 = vmatpush.bf16.msra.mxu0 %v1935
  %3109 = vmatmul.bf16.gmra.mxu0 %v3085
  %v3110 = vpop.f32.mrf.mxu0
  %v3111 = vadd.f32 0.0, %v3110
  %v3112 = vpop.f32.mrf.mxu0
  %v3113 = vadd.f32 0.0, %v3112
  %3114 = vdwg.mxu0
  %3115 = vmatpush.bf16.msra.mxu0 0
  %3116 = vmatpush.bf16.msra.mxu0 0
  %3117 = vmatpush.bf16.msra.mxu0 0
  %3118 = vmatpush.bf16.msra.mxu0 0
  %3119 = vmatpush.bf16.msra.mxu0 0
  %3120 = vmatpush.bf16.msra.mxu0 0
  %3121 = vmatpush.bf16.msra.mxu0 %v1940
  %3122 = vmatpush.bf16.msra.mxu0 %v1936
  %3123 = vmatmul.bf16.gmra.mxu0 %v3085
  %v3124 = vpop.f32.mrf.mxu0
  %v3125 = vadd.f32 0.0, %v3124
  %v3126 = vpop.f32.mrf.mxu0
  %v3127 = vadd.f32 0.0, %v3126
  %3128 = vdwg.mxu0
  %3129 = vmatpush.bf16.msra.mxu0 0
  %3130 = vmatpush.bf16.msra.mxu0 0
  %3131 = vmatpush.bf16.msra.mxu0 0
  %3132 = vmatpush.bf16.msra.mxu0 0
  %3133 = vmatpush.bf16.msra.mxu0 0
  %3134 = vmatpush.bf16.msra.mxu0 0
  %3135 = vmatpush.bf16.msra.mxu0 %v1941
  %3136 = vmatpush.bf16.msra.mxu0 %v1937
  %3137 = vmatmul.bf16.gmra.mxu0 %v3085
  %v3138 = vpop.f32.mrf.mxu0
  %v3139 = vadd.f32 0.0, %v3138
  %v3140 = vpop.f32.mrf.mxu0
  %v3141 = vadd.f32 0.0, %v3140
  %3142 = vdwg.mxu0
  %v3143 = vpack.c.bf16 %v3099, %v3097
  %v3144 = vpack.c.bf16 %v3113, %v3111
  %v3145 = vpack.c.bf16 %v3127, %v3125
  %v3146 = vpack.c.bf16 %v3141, %v3139
  %s3147 = scalar_lea.vmem %s5, 1024
  %v3148 = vld [vmem:[%s3147] sm:$0xff]
  %v3149 = vld [vmem:[%s3147 + $0x8] sm:$0xff]
  %v3150 = vld [vmem:[%s3147 + $0x10] sm:$0xff]
  %v3151 = vld [vmem:[%s3147 + $0x18] sm:$0xff]
  %v3152 = vld [vmem:[%s3147 + $0x20] sm:$0xff]
  %v3153 = vld [vmem:[%s3147 + $0x28] sm:$0xff]
  %v3154 = vld [vmem:[%s3147 + $0x30] sm:$0xff]
  %v3155 = vld [vmem:[%s3147 + $0x38] sm:$0xff]
  %v3156 = vld [vmem:[%s3147 + $0x40] sm:$0xff]
  %v3157 = vld [vmem:[%s3147 + $0x48] sm:$0xff]
  %v3158 = vld [vmem:[%s3147 + $0x50] sm:$0xff]
  %v3159 = vld [vmem:[%s3147 + $0x58] sm:$0xff]
  %v3160 = vld [vmem:[%s3147 + $0x60] sm:$0xff]
  %v3161 = vld [vmem:[%s3147 + $0x68] sm:$0xff]
  %v3162 = vld [vmem:[%s3147 + $0x70] sm:$0xff]
  %v3163 = vld [vmem:[%s3147 + $0x78] sm:$0xff]
  %v3164 = vld [vmem:[%s3147 + $0x80] sm:$0xff]
  %v3165 = vld [vmem:[%s3147 + $0x88] sm:$0xff]
  %v3166 = vld [vmem:[%s3147 + $0x90] sm:$0xff]
  %v3167 = vld [vmem:[%s3147 + $0x98] sm:$0xff]
  %v3168 = vld [vmem:[%s3147 + $0xa0] sm:$0xff]
  %v3169 = vld [vmem:[%s3147 + $0xa8] sm:$0xff]
  %v3170 = vld [vmem:[%s3147 + $0xb0] sm:$0xff]
  %v3171 = vld [vmem:[%s3147 + $0xb8] sm:$0xff]
  %v3172 = vld [vmem:[%s3147 + $0xc0] sm:$0xff]
  %v3173 = vld [vmem:[%s3147 + $0xc8] sm:$0xff]
  %v3174 = vld [vmem:[%s3147 + $0xd0] sm:$0xff]
  %v3175 = vld [vmem:[%s3147 + $0xd8] sm:$0xff]
  %v3176 = vld [vmem:[%s3147 + $0xe0] sm:$0xff]
  %v3177 = vld [vmem:[%s3147 + $0xe8] sm:$0xff]
  %v3178 = vld [vmem:[%s3147 + $0xf0] sm:$0xff]
  %v3179 = vld [vmem:[%s3147 + $0xf8] sm:$0xff]
  %v3180 = vld [vmem:[%s3147 + $0x100] sm:$0xff]
  %v3181 = vld [vmem:[%s3147 + $0x108] sm:$0xff]
  %v3182 = vld [vmem:[%s3147 + $0x110] sm:$0xff]
  %v3183 = vld [vmem:[%s3147 + $0x118] sm:$0xff]
  %v3184 = vld [vmem:[%s3147 + $0x120] sm:$0xff]
  %v3185 = vld [vmem:[%s3147 + $0x128] sm:$0xff]
  %v3186 = vld [vmem:[%s3147 + $0x130] sm:$0xff]
  %v3187 = vld [vmem:[%s3147 + $0x138] sm:$0xff]
  %v3188 = vld [vmem:[%s3147 + $0x140] sm:$0xff]
  %v3189 = vld [vmem:[%s3147 + $0x148] sm:$0xff]
  %v3190 = vld [vmem:[%s3147 + $0x150] sm:$0xff]
  %v3191 = vld [vmem:[%s3147 + $0x158] sm:$0xff]
  %v3192 = vld [vmem:[%s3147 + $0x160] sm:$0xff]
  %v3193 = vld [vmem:[%s3147 + $0x168] sm:$0xff]
  %v3194 = vld [vmem:[%s3147 + $0x170] sm:$0xff]
  %v3195 = vld [vmem:[%s3147 + $0x178] sm:$0xff]
  %v3196 = vld [vmem:[%s3147 + $0x180] sm:$0xff]
  %v3197 = vld [vmem:[%s3147 + $0x188] sm:$0xff]
  %v3198 = vld [vmem:[%s3147 + $0x190] sm:$0xff]
  %v3199 = vld [vmem:[%s3147 + $0x198] sm:$0xff]
  %v3200 = vld [vmem:[%s3147 + $0x1a0] sm:$0xff]
  %v3201 = vld [vmem:[%s3147 + $0x1a8] sm:$0xff]
  %v3202 = vld [vmem:[%s3147 + $0x1b0] sm:$0xff]
  %v3203 = vld [vmem:[%s3147 + $0x1b8] sm:$0xff]
  %v3204 = vld [vmem:[%s3147 + $0x1c0] sm:$0xff]
  %v3205 = vld [vmem:[%s3147 + $0x1c8] sm:$0xff]
  %v3206 = vld [vmem:[%s3147 + $0x1d0] sm:$0xff]
  %v3207 = vld [vmem:[%s3147 + $0x1d8] sm:$0xff]
  %v3208 = vld [vmem:[%s3147 + $0x1e0] sm:$0xff]
  %v3209 = vld [vmem:[%s3147 + $0x1e8] sm:$0xff]
  %v3210 = vld [vmem:[%s3147 + $0x1f0] sm:$0xff]
  %v3211 = vld [vmem:[%s3147 + $0x1f8] sm:$0xff]
  %v3276 = vunpack.c.l.b16 %v3148
  %v3277 = vunpack.c.h.b16 %v3148
  %v3278 = vunpack.c.l.b16 %v3149
  %v3279 = vunpack.c.h.b16 %v3149
  %v3280 = vunpack.c.l.b16 %v3150
  %v3281 = vunpack.c.h.b16 %v3150
  %v3282 = vunpack.c.l.b16 %v3151
  %v3283 = vunpack.c.h.b16 %v3151
  %v3284 = vunpack.c.l.b16 %v3152
  %v3285 = vunpack.c.h.b16 %v3152
  %v3286 = vunpack.c.l.b16 %v3153
  %v3287 = vunpack.c.h.b16 %v3153
  %v3288 = vunpack.c.l.b16 %v3154
  %v3289 = vunpack.c.h.b16 %v3154
  %v3290 = vunpack.c.l.b16 %v3155
  %v3291 = vunpack.c.h.b16 %v3155
  %v3292 = vunpack.c.l.b16 %v3156
  %v3293 = vunpack.c.h.b16 %v3156
  %v3294 = vunpack.c.l.b16 %v3157
  %v3295 = vunpack.c.h.b16 %v3157
  %v3296 = vunpack.c.l.b16 %v3158
  %v3297 = vunpack.c.h.b16 %v3158
  %v3298 = vunpack.c.l.b16 %v3159
  %v3299 = vunpack.c.h.b16 %v3159
  %v3300 = vunpack.c.l.b16 %v3160
  %v3301 = vunpack.c.h.b16 %v3160
  %v3302 = vunpack.c.l.b16 %v3161
  %v3303 = vunpack.c.h.b16 %v3161
  %v3304 = vunpack.c.l.b16 %v3162
  %v3305 = vunpack.c.h.b16 %v3162
  %v3306 = vunpack.c.l.b16 %v3163
  %v3307 = vunpack.c.h.b16 %v3163
  %v3308 = vunpack.c.l.b16 %v3164
  %v3309 = vunpack.c.h.b16 %v3164
  %v3310 = vunpack.c.l.b16 %v3165
  %v3311 = vunpack.c.h.b16 %v3165
  %v3312 = vunpack.c.l.b16 %v3166
  %v3313 = vunpack.c.h.b16 %v3166
  %v3314 = vunpack.c.l.b16 %v3167
  %v3315 = vunpack.c.h.b16 %v3167
  %v3316 = vunpack.c.l.b16 %v3168
  %v3317 = vunpack.c.h.b16 %v3168
  %v3318 = vunpack.c.l.b16 %v3169
  %v3319 = vunpack.c.h.b16 %v3169
  %v3320 = vunpack.c.l.b16 %v3170
  %v3321 = vunpack.c.h.b16 %v3170
  %v3322 = vunpack.c.l.b16 %v3171
  %v3323 = vunpack.c.h.b16 %v3171
  %v3324 = vunpack.c.l.b16 %v3172
  %v3325 = vunpack.c.h.b16 %v3172
  %v3326 = vunpack.c.l.b16 %v3173
  %v3327 = vunpack.c.h.b16 %v3173
  %v3328 = vunpack.c.l.b16 %v3174
  %v3329 = vunpack.c.h.b16 %v3174
  %v3330 = vunpack.c.l.b16 %v3175
  %v3331 = vunpack.c.h.b16 %v3175
  %v3332 = vunpack.c.l.b16 %v3176
  %v3333 = vunpack.c.h.b16 %v3176
  %v3334 = vunpack.c.l.b16 %v3177
  %v3335 = vunpack.c.h.b16 %v3177
  %v3336 = vunpack.c.l.b16 %v3178
  %v3337 = vunpack.c.h.b16 %v3178
  %v3338 = vunpack.c.l.b16 %v3179
  %v3339 = vunpack.c.h.b16 %v3179
  %v3340 = vunpack.c.l.b16 %v3180
  %v3341 = vunpack.c.h.b16 %v3180
  %v3342 = vunpack.c.l.b16 %v3181
  %v3343 = vunpack.c.h.b16 %v3181
  %v3344 = vunpack.c.l.b16 %v3182
  %v3345 = vunpack.c.h.b16 %v3182
  %v3346 = vunpack.c.l.b16 %v3183
  %v3347 = vunpack.c.h.b16 %v3183
  %v3348 = vunpack.c.l.b16 %v3184
  %v3349 = vunpack.c.h.b16 %v3184
  %v3350 = vunpack.c.l.b16 %v3185
  %v3351 = vunpack.c.h.b16 %v3185
  %v3352 = vunpack.c.l.b16 %v3186
  %v3353 = vunpack.c.h.b16 %v3186
  %v3354 = vunpack.c.l.b16 %v3187
  %v3355 = vunpack.c.h.b16 %v3187
  %v3356 = vunpack.c.l.b16 %v3188
  %v3357 = vunpack.c.h.b16 %v3188
  %v3358 = vunpack.c.l.b16 %v3189
  %v3359 = vunpack.c.h.b16 %v3189
  %v3360 = vunpack.c.l.b16 %v3190
  %v3361 = vunpack.c.h.b16 %v3190
  %v3362 = vunpack.c.l.b16 %v3191
  %v3363 = vunpack.c.h.b16 %v3191
  %v3364 = vunpack.c.l.b16 %v3192
  %v3365 = vunpack.c.h.b16 %v3192
  %v3366 = vunpack.c.l.b16 %v3193
  %v3367 = vunpack.c.h.b16 %v3193
  %v3368 = vunpack.c.l.b16 %v3194
  %v3369 = vunpack.c.h.b16 %v3194
  %v3370 = vunpack.c.l.b16 %v3195
  %v3371 = vunpack.c.h.b16 %v3195
  %v3372 = vunpack.c.l.b16 %v3196
  %v3373 = vunpack.c.h.b16 %v3196
  %v3374 = vunpack.c.l.b16 %v3197
  %v3375 = vunpack.c.h.b16 %v3197
  %v3376 = vunpack.c.l.b16 %v3198
  %v3377 = vunpack.c.h.b16 %v3198
  %v3378 = vunpack.c.l.b16 %v3199
  %v3379 = vunpack.c.h.b16 %v3199
  %v3380 = vunpack.c.l.b16 %v3200
  %v3381 = vunpack.c.h.b16 %v3200
  %v3382 = vunpack.c.l.b16 %v3201
  %v3383 = vunpack.c.h.b16 %v3201
  %v3384 = vunpack.c.l.b16 %v3202
  %v3385 = vunpack.c.h.b16 %v3202
  %v3386 = vunpack.c.l.b16 %v3203
  %v3387 = vunpack.c.h.b16 %v3203
  %v3388 = vunpack.c.l.b16 %v3204
  %v3389 = vunpack.c.h.b16 %v3204
  %v3390 = vunpack.c.l.b16 %v3205
  %v3391 = vunpack.c.h.b16 %v3205
  %v3392 = vunpack.c.l.b16 %v3206
  %v3393 = vunpack.c.h.b16 %v3206
  %v3394 = vunpack.c.l.b16 %v3207
  %v3395 = vunpack.c.h.b16 %v3207
  %v3396 = vunpack.c.l.b16 %v3208
  %v3397 = vunpack.c.h.b16 %v3208
  %v3398 = vunpack.c.l.b16 %v3209
  %v3399 = vunpack.c.h.b16 %v3209
  %v3400 = vunpack.c.l.b16 %v3210
  %v3401 = vunpack.c.h.b16 %v3210
  %v3402 = vunpack.c.l.b16 %v3211
  %v3403 = vunpack.c.h.b16 %v3211
  %v3404 = vpack.c.b16 %v3278, %v3276
  %v3405 = vpack.c.b16 %v3279, %v3277
  %v3406 = vpack.c.b16 %v3282, %v3280
  %v3407 = vpack.c.b16 %v3283, %v3281
  %v3408 = vpack.c.b16 %v3286, %v3284
  %v3409 = vpack.c.b16 %v3287, %v3285
  %v3410 = vpack.c.b16 %v3290, %v3288
  %v3411 = vpack.c.b16 %v3291, %v3289
  %v3412 = vpack.c.b16 %v3294, %v3292
  %v3413 = vpack.c.b16 %v3295, %v3293
  %v3414 = vpack.c.b16 %v3298, %v3296
  %v3415 = vpack.c.b16 %v3299, %v3297
  %v3416 = vpack.c.b16 %v3302, %v3300
  %v3417 = vpack.c.b16 %v3303, %v3301
  %v3418 = vpack.c.b16 %v3306, %v3304
  %v3419 = vpack.c.b16 %v3307, %v3305
  %v3420 = vpack.c.b16 %v3310, %v3308
  %v3421 = vpack.c.b16 %v3311, %v3309
  %v3422 = vpack.c.b16 %v3314, %v3312
  %v3423 = vpack.c.b16 %v3315, %v3313
  %v3424 = vpack.c.b16 %v3318, %v3316
  %v3425 = vpack.c.b16 %v3319, %v3317
  %v3426 = vpack.c.b16 %v3322, %v3320
  %v3427 = vpack.c.b16 %v3323, %v3321
  %v3428 = vpack.c.b16 %v3326, %v3324
  %v3429 = vpack.c.b16 %v3327, %v3325
  %v3430 = vpack.c.b16 %v3330, %v3328
  %v3431 = vpack.c.b16 %v3331, %v3329
  %v3432 = vpack.c.b16 %v3334, %v3332
  %v3433 = vpack.c.b16 %v3335, %v3333
  %v3434 = vpack.c.b16 %v3338, %v3336
  %v3435 = vpack.c.b16 %v3339, %v3337
  %v3436 = vpack.c.b16 %v3342, %v3340
  %v3437 = vpack.c.b16 %v3343, %v3341
  %v3438 = vpack.c.b16 %v3346, %v3344
  %v3439 = vpack.c.b16 %v3347, %v3345
  %v3440 = vpack.c.b16 %v3350, %v3348
  %v3441 = vpack.c.b16 %v3351, %v3349
  %v3442 = vpack.c.b16 %v3354, %v3352
  %v3443 = vpack.c.b16 %v3355, %v3353
  %v3444 = vpack.c.b16 %v3358, %v3356
  %v3445 = vpack.c.b16 %v3359, %v3357
  %v3446 = vpack.c.b16 %v3362, %v3360
  %v3447 = vpack.c.b16 %v3363, %v3361
  %v3448 = vpack.c.b16 %v3366, %v3364
  %v3449 = vpack.c.b16 %v3367, %v3365
  %v3450 = vpack.c.b16 %v3370, %v3368
  %v3451 = vpack.c.b16 %v3371, %v3369
  %v3452 = vpack.c.b16 %v3374, %v3372
  %v3453 = vpack.c.b16 %v3375, %v3373
  %v3454 = vpack.c.b16 %v3378, %v3376
  %v3455 = vpack.c.b16 %v3379, %v3377
  %v3456 = vpack.c.b16 %v3382, %v3380
  %v3457 = vpack.c.b16 %v3383, %v3381
  %v3458 = vpack.c.b16 %v3386, %v3384
  %v3459 = vpack.c.b16 %v3387, %v3385
  %v3460 = vpack.c.b16 %v3390, %v3388
  %v3461 = vpack.c.b16 %v3391, %v3389
  %v3462 = vpack.c.b16 %v3394, %v3392
  %v3463 = vpack.c.b16 %v3395, %v3393
  %v3464 = vpack.c.b16 %v3398, %v3396
  %v3465 = vpack.c.b16 %v3399, %v3397
  %v3466 = vpack.c.b16 %v3402, %v3400
  %v3467 = vpack.c.b16 %v3403, %v3401
  %3532 = vmatpush.bf16.msra.mxu0 %v3418
  %3533 = vmatpush.bf16.msra.mxu0 %v3416
  %3534 = vmatpush.bf16.msra.mxu0 %v3414
  %3535 = vmatpush.bf16.msra.mxu0 %v3412
  %3536 = vmatpush.bf16.msra.mxu0 %v3410
  %3537 = vmatpush.bf16.msra.mxu0 %v3408
  %3538 = vmatpush.bf16.msra.mxu0 %v3406
  %3539 = vmatpush.bf16.msra.mxu0 %v3404
  %3540 = vmatmul.bf16.gmra.mxu0 %v3143
  %v3541 = vpop.f32.mrf.mxu0
  %v3542 = vadd.f32 0.0, %v3541
  %v3543 = vpop.f32.mrf.mxu0
  %v3544 = vadd.f32 0.0, %v3543
  %3545 = vdwg.mxu0
  %3546 = vmatpush.bf16.msra.mxu0 %v3434
  %3547 = vmatpush.bf16.msra.mxu0 %v3432
  %3548 = vmatpush.bf16.msra.mxu0 %v3430
  %3549 = vmatpush.bf16.msra.mxu0 %v3428
  %3550 = vmatpush.bf16.msra.mxu0 %v3426
  %3551 = vmatpush.bf16.msra.mxu0 %v3424
  %3552 = vmatpush.bf16.msra.mxu0 %v3422
  %3553 = vmatpush.bf16.msra.mxu0 %v3420
  %3554 = vmatmul.bf16.gmra.mxu0 %v3144
  %v3555 = vpop.f32.mrf.mxu0
  %v3556 = vadd.f32 %v3542, %v3555
  %v3557 = vpop.f32.mrf.mxu0
  %v3558 = vadd.f32 %v3544, %v3557
  %3559 = vdwg.mxu0
  %3560 = vmatpush.bf16.msra.mxu0 %v3450
  %3561 = vmatpush.bf16.msra.mxu0 %v3448
  %3562 = vmatpush.bf16.msra.mxu0 %v3446
  %3563 = vmatpush.bf16.msra.mxu0 %v3444
  %3564 = vmatpush.bf16.msra.mxu0 %v3442
  %3565 = vmatpush.bf16.msra.mxu0 %v3440
  %3566 = vmatpush.bf16.msra.mxu0 %v3438
  %3567 = vmatpush.bf16.msra.mxu0 %v3436
  %3568 = vmatmul.bf16.gmra.mxu0 %v3145
  %v3569 = vpop.f32.mrf.mxu0
  %v3570 = vadd.f32 %v3556, %v3569
  %v3571 = vpop.f32.mrf.mxu0
  %v3572 = vadd.f32 %v3558, %v3571
  %3573 = vdwg.mxu0
  %3574 = vmatpush.bf16.msra.mxu0 %v3466
  %3575 = vmatpush.bf16.msra.mxu0 %v3464
  %3576 = vmatpush.bf16.msra.mxu0 %v3462
  %3577 = vmatpush.bf16.msra.mxu0 %v3460
  %3578 = vmatpush.bf16.msra.mxu0 %v3458
  %3579 = vmatpush.bf16.msra.mxu0 %v3456
  %3580 = vmatpush.bf16.msra.mxu0 %v3454
  %3581 = vmatpush.bf16.msra.mxu0 %v3452
  %3582 = vmatmul.bf16.gmra.mxu0 %v3146
  %v3583 = vpop.f32.mrf.mxu0
  %v3584 = vadd.f32 %v3570, %v3583
  %v3585 = vpop.f32.mrf.mxu0
  %v3586 = vadd.f32 %v3572, %v3585
  %3587 = vdwg.mxu0
  %3588 = vmatpush.bf16.msra.mxu0 %v3419
  %3589 = vmatpush.bf16.msra.mxu0 %v3417
  %3590 = vmatpush.bf16.msra.mxu0 %v3415
  %3591 = vmatpush.bf16.msra.mxu0 %v3413
  %3592 = vmatpush.bf16.msra.mxu0 %v3411
  %3593 = vmatpush.bf16.msra.mxu0 %v3409
  %3594 = vmatpush.bf16.msra.mxu0 %v3407
  %3595 = vmatpush.bf16.msra.mxu0 %v3405
  %3596 = vmatmul.bf16.gmra.mxu0 %v3143
  %v3597 = vpop.f32.mrf.mxu0
  %v3598 = vadd.f32 0.0, %v3597
  %v3599 = vpop.f32.mrf.mxu0
  %v3600 = vadd.f32 0.0, %v3599
  %3601 = vdwg.mxu0
  %3602 = vmatpush.bf16.msra.mxu0 %v3435
  %3603 = vmatpush.bf16.msra.mxu0 %v3433
  %3604 = vmatpush.bf16.msra.mxu0 %v3431
  %3605 = vmatpush.bf16.msra.mxu0 %v3429
  %3606 = vmatpush.bf16.msra.mxu0 %v3427
  %3607 = vmatpush.bf16.msra.mxu0 %v3425
  %3608 = vmatpush.bf16.msra.mxu0 %v3423
  %3609 = vmatpush.bf16.msra.mxu0 %v3421
  %3610 = vmatmul.bf16.gmra.mxu0 %v3144
  %v3611 = vpop.f32.mrf.mxu0
  %v3612 = vadd.f32 %v3598, %v3611
  %v3613 = vpop.f32.mrf.mxu0
  %v3614 = vadd.f32 %v3600, %v3613
  %3615 = vdwg.mxu0
  %3616 = vmatpush.bf16.msra.mxu0 %v3451
  %3617 = vmatpush.bf16.msra.mxu0 %v3449
  %3618 = vmatpush.bf16.msra.mxu0 %v3447
  %3619 = vmatpush.bf16.msra.mxu0 %v3445
  %3620 = vmatpush.bf16.msra.mxu0 %v3443
  %3621 = vmatpush.bf16.msra.mxu0 %v3441
  %3622 = vmatpush.bf16.msra.mxu0 %v3439
  %3623 = vmatpush.bf16.msra.mxu0 %v3437
  %3624 = vmatmul.bf16.gmra.mxu0 %v3145
  %v3625 = vpop.f32.mrf.mxu0
  %v3626 = vadd.f32 %v3612, %v3625
  %v3627 = vpop.f32.mrf.mxu0
  %v3628 = vadd.f32 %v3614, %v3627
  %3629 = vdwg.mxu0
  %3630 = vmatpush.bf16.msra.mxu0 %v3467
  %3631 = vmatpush.bf16.msra.mxu0 %v3465
  %3632 = vmatpush.bf16.msra.mxu0 %v3463
  %3633 = vmatpush.bf16.msra.mxu0 %v3461
  %3634 = vmatpush.bf16.msra.mxu0 %v3459
  %3635 = vmatpush.bf16.msra.mxu0 %v3457
  %3636 = vmatpush.bf16.msra.mxu0 %v3455
  %3637 = vmatpush.bf16.msra.mxu0 %v3453
  %3638 = vmatmul.bf16.gmra.mxu0 %v3146
  %v3639 = vpop.f32.mrf.mxu0
  %v3640 = vadd.f32 %v3626, %v3639
  %v3641 = vpop.f32.mrf.mxu0
  %v3642 = vadd.f32 %v3628, %v3641
  %3643 = vdwg.mxu0
  %v3644 = vadd.f32 %v3016, %v3584
  %v3645 = vadd.f32 %v3072, %v3640
  %v3646 = vadd.f32 %v3018, %v3586
  %v3647 = vadd.f32 %v3074, %v3642
  %v3648 = vld [vmem:[%s6] sm:$0xf]
  %v3649 = vld [vmem:[%s6 + $0x4] sm:$0xf]
  %v3652 = vunpack.c.l.b16 %v3648
  %v3653 = vunpack.c.l.b16 %v3649
  %v3654 = vpack.c.b16 %v3653, %v3652
  %v3656 = vsel %vm59, %v3654, 0
  %3658 = vmatpush.bf16.msra.mxu0 0
  %3659 = vmatpush.bf16.msra.mxu0 0
  %3660 = vmatpush.bf16.msra.mxu0 0
  %3661 = vmatpush.bf16.msra.mxu0 0
  %3662 = vmatpush.bf16.msra.mxu0 0
  %3663 = vmatpush.bf16.msra.mxu0 0
  %3664 = vmatpush.bf16.msra.mxu0 %v43
  %3665 = vmatpush.bf16.msra.mxu0 %v41
  %3666 = vmatmul.bf16.gmra.mxu0 %v3656
  %v3667 = vpop.f32.mrf.mxu0
  %v3668 = vadd.f32 0.0, %v3667
  %v3669 = vpop.f32.mrf.mxu0
  %v3670 = vadd.f32 0.0, %v3669
  %3671 = vdwg.mxu0
  %3672 = vmatpush.bf16.msra.mxu0 0
  %3673 = vmatpush.bf16.msra.mxu0 0
  %3674 = vmatpush.bf16.msra.mxu0 0
  %3675 = vmatpush.bf16.msra.mxu0 0
  %3676 = vmatpush.bf16.msra.mxu0 0
  %3677 = vmatpush.bf16.msra.mxu0 0
  %3678 = vmatpush.bf16.msra.mxu0 %v44
  %3679 = vmatpush.bf16.msra.mxu0 %v42
  %3680 = vmatmul.bf16.gmra.mxu0 %v3656
  %v3681 = vpop.f32.mrf.mxu0
  %v3682 = vadd.f32 0.0, %v3681
  %v3683 = vpop.f32.mrf.mxu0
  %v3684 = vadd.f32 0.0, %v3683
  %3685 = vdwg.mxu0
  %v3686 = vpack.c.bf16 %v3670, %v3668
  %v3687 = vpack.c.bf16 %v3684, %v3682
  %v3688 = vld [vmem:[%s7] sm:$0xff]
  %v3689 = vld [vmem:[%s7 + $0x8] sm:$0xff]
  %v3690 = vld [vmem:[%s7 + $0x10] sm:$0xff]
  %v3691 = vld [vmem:[%s7 + $0x18] sm:$0xff]
  %v3692 = vld [vmem:[%s7 + $0x20] sm:$0xff]
  %v3693 = vld [vmem:[%s7 + $0x28] sm:$0xff]
  %v3694 = vld [vmem:[%s7 + $0x30] sm:$0xff]
  %v3695 = vld [vmem:[%s7 + $0x38] sm:$0xff]
  %v3696 = vld [vmem:[%s7 + $0x40] sm:$0xff]
  %v3697 = vld [vmem:[%s7 + $0x48] sm:$0xff]
  %v3698 = vld [vmem:[%s7 + $0x50] sm:$0xff]
  %v3699 = vld [vmem:[%s7 + $0x58] sm:$0xff]
  %v3700 = vld [vmem:[%s7 + $0x60] sm:$0xff]
  %v3701 = vld [vmem:[%s7 + $0x68] sm:$0xff]
  %v3702 = vld [vmem:[%s7 + $0x70] sm:$0xff]
  %v3703 = vld [vmem:[%s7 + $0x78] sm:$0xff]
  %v3704 = vld [vmem:[%s7 + $0x80] sm:$0xff]
  %v3705 = vld [vmem:[%s7 + $0x88] sm:$0xff]
  %v3706 = vld [vmem:[%s7 + $0x90] sm:$0xff]
  %v3707 = vld [vmem:[%s7 + $0x98] sm:$0xff]
  %v3708 = vld [vmem:[%s7 + $0xa0] sm:$0xff]
  %v3709 = vld [vmem:[%s7 + $0xa8] sm:$0xff]
  %v3710 = vld [vmem:[%s7 + $0xb0] sm:$0xff]
  %v3711 = vld [vmem:[%s7 + $0xb8] sm:$0xff]
  %v3712 = vld [vmem:[%s7 + $0xc0] sm:$0xff]
  %v3713 = vld [vmem:[%s7 + $0xc8] sm:$0xff]
  %v3714 = vld [vmem:[%s7 + $0xd0] sm:$0xff]
  %v3715 = vld [vmem:[%s7 + $0xd8] sm:$0xff]
  %v3716 = vld [vmem:[%s7 + $0xe0] sm:$0xff]
  %v3717 = vld [vmem:[%s7 + $0xe8] sm:$0xff]
  %v3718 = vld [vmem:[%s7 + $0xf0] sm:$0xff]
  %v3719 = vld [vmem:[%s7 + $0xf8] sm:$0xff]
  %v3752 = vunpack.c.l.b16 %v3688
  %v3753 = vunpack.c.h.b16 %v3688
  %v3754 = vunpack.c.l.b16 %v3689
  %v3755 = vunpack.c.h.b16 %v3689
  %v3756 = vunpack.c.l.b16 %v3690
  %v3757 = vunpack.c.h.b16 %v3690
  %v3758 = vunpack.c.l.b16 %v3691
  %v3759 = vunpack.c.h.b16 %v3691
  %v3760 = vunpack.c.l.b16 %v3692
  %v3761 = vunpack.c.h.b16 %v3692
  %v3762 = vunpack.c.l.b16 %v3693
  %v3763 = vunpack.c.h.b16 %v3693
  %v3764 = vunpack.c.l.b16 %v3694
  %v3765 = vunpack.c.h.b16 %v3694
  %v3766 = vunpack.c.l.b16 %v3695
  %v3767 = vunpack.c.h.b16 %v3695
  %v3768 = vunpack.c.l.b16 %v3696
  %v3769 = vunpack.c.h.b16 %v3696
  %v3770 = vunpack.c.l.b16 %v3697
  %v3771 = vunpack.c.h.b16 %v3697
  %v3772 = vunpack.c.l.b16 %v3698
  %v3773 = vunpack.c.h.b16 %v3698
  %v3774 = vunpack.c.l.b16 %v3699
  %v3775 = vunpack.c.h.b16 %v3699
  %v3776 = vunpack.c.l.b16 %v3700
  %v3777 = vunpack.c.h.b16 %v3700
  %v3778 = vunpack.c.l.b16 %v3701
  %v3779 = vunpack.c.h.b16 %v3701
  %v3780 = vunpack.c.l.b16 %v3702
  %v3781 = vunpack.c.h.b16 %v3702
  %v3782 = vunpack.c.l.b16 %v3703
  %v3783 = vunpack.c.h.b16 %v3703
  %v3784 = vunpack.c.l.b16 %v3704
  %v3785 = vunpack.c.h.b16 %v3704
  %v3786 = vunpack.c.l.b16 %v3705
  %v3787 = vunpack.c.h.b16 %v3705
  %v3788 = vunpack.c.l.b16 %v3706
  %v3789 = vunpack.c.h.b16 %v3706
  %v3790 = vunpack.c.l.b16 %v3707
  %v3791 = vunpack.c.h.b16 %v3707
  %v3792 = vunpack.c.l.b16 %v3708
  %v3793 = vunpack.c.h.b16 %v3708
  %v3794 = vunpack.c.l.b16 %v3709
  %v3795 = vunpack.c.h.b16 %v3709
  %v3796 = vunpack.c.l.b16 %v3710
  %v3797 = vunpack.c.h.b16 %v3710
  %v3798 = vunpack.c.l.b16 %v3711
  %v3799 = vunpack.c.h.b16 %v3711
  %v3800 = vunpack.c.l.b16 %v3712
  %v3801 = vunpack.c.h.b16 %v3712
  %v3802 = vunpack.c.l.b16 %v3713
  %v3803 = vunpack.c.h.b16 %v3713
  %v3804 = vunpack.c.l.b16 %v3714
  %v3805 = vunpack.c.h.b16 %v3714
  %v3806 = vunpack.c.l.b16 %v3715
  %v3807 = vunpack.c.h.b16 %v3715
  %v3808 = vunpack.c.l.b16 %v3716
  %v3809 = vunpack.c.h.b16 %v3716
  %v3810 = vunpack.c.l.b16 %v3717
  %v3811 = vunpack.c.h.b16 %v3717
  %v3812 = vunpack.c.l.b16 %v3718
  %v3813 = vunpack.c.h.b16 %v3718
  %v3814 = vunpack.c.l.b16 %v3719
  %v3815 = vunpack.c.h.b16 %v3719
  %v3816 = vpack.c.b16 %v3754, %v3752
  %v3817 = vpack.c.b16 %v3755, %v3753
  %v3818 = vpack.c.b16 %v3758, %v3756
  %v3819 = vpack.c.b16 %v3759, %v3757
  %v3820 = vpack.c.b16 %v3762, %v3760
  %v3821 = vpack.c.b16 %v3763, %v3761
  %v3822 = vpack.c.b16 %v3766, %v3764
  %v3823 = vpack.c.b16 %v3767, %v3765
  %v3824 = vpack.c.b16 %v3770, %v3768
  %v3825 = vpack.c.b16 %v3771, %v3769
  %v3826 = vpack.c.b16 %v3774, %v3772
  %v3827 = vpack.c.b16 %v3775, %v3773
  %v3828 = vpack.c.b16 %v3778, %v3776
  %v3829 = vpack.c.b16 %v3779, %v3777
  %v3830 = vpack.c.b16 %v3782, %v3780
  %v3831 = vpack.c.b16 %v3783, %v3781
  %v3832 = vpack.c.b16 %v3786, %v3784
  %v3833 = vpack.c.b16 %v3787, %v3785
  %v3834 = vpack.c.b16 %v3790, %v3788
  %v3835 = vpack.c.b16 %v3791, %v3789
  %v3836 = vpack.c.b16 %v3794, %v3792
  %v3837 = vpack.c.b16 %v3795, %v3793
  %v3838 = vpack.c.b16 %v3798, %v3796
  %v3839 = vpack.c.b16 %v3799, %v3797
  %v3840 = vpack.c.b16 %v3802, %v3800
  %v3841 = vpack.c.b16 %v3803, %v3801
  %v3842 = vpack.c.b16 %v3806, %v3804
  %v3843 = vpack.c.b16 %v3807, %v3805
  %v3844 = vpack.c.b16 %v3810, %v3808
  %v3845 = vpack.c.b16 %v3811, %v3809
  %v3846 = vpack.c.b16 %v3814, %v3812
  %v3847 = vpack.c.b16 %v3815, %v3813
  %3880 = vmatpush.bf16.msra.mxu0 %v3830
  %3881 = vmatpush.bf16.msra.mxu0 %v3828
  %3882 = vmatpush.bf16.msra.mxu0 %v3826
  %3883 = vmatpush.bf16.msra.mxu0 %v3824
  %3884 = vmatpush.bf16.msra.mxu0 %v3822
  %3885 = vmatpush.bf16.msra.mxu0 %v3820
  %3886 = vmatpush.bf16.msra.mxu0 %v3818
  %3887 = vmatpush.bf16.msra.mxu0 %v3816
  %3888 = vmatmul.bf16.gmra.mxu0 %v3686
  %v3889 = vpop.f32.mrf.mxu0
  %v3890 = vadd.f32 0.0, %v3889
  %v3891 = vpop.f32.mrf.mxu0
  %v3892 = vadd.f32 0.0, %v3891
  %3893 = vdwg.mxu0
  %3894 = vmatpush.bf16.msra.mxu0 %v3846
  %3895 = vmatpush.bf16.msra.mxu0 %v3844
  %3896 = vmatpush.bf16.msra.mxu0 %v3842
  %3897 = vmatpush.bf16.msra.mxu0 %v3840
  %3898 = vmatpush.bf16.msra.mxu0 %v3838
  %3899 = vmatpush.bf16.msra.mxu0 %v3836
  %3900 = vmatpush.bf16.msra.mxu0 %v3834
  %3901 = vmatpush.bf16.msra.mxu0 %v3832
  %3902 = vmatmul.bf16.gmra.mxu0 %v3687
  %v3903 = vpop.f32.mrf.mxu0
  %v3904 = vadd.f32 %v3890, %v3903
  %v3905 = vpop.f32.mrf.mxu0
  %v3906 = vadd.f32 %v3892, %v3905
  %3907 = vdwg.mxu0
  %3908 = vmatpush.bf16.msra.mxu0 %v3831
  %3909 = vmatpush.bf16.msra.mxu0 %v3829
  %3910 = vmatpush.bf16.msra.mxu0 %v3827
  %3911 = vmatpush.bf16.msra.mxu0 %v3825
  %3912 = vmatpush.bf16.msra.mxu0 %v3823
  %3913 = vmatpush.bf16.msra.mxu0 %v3821
  %3914 = vmatpush.bf16.msra.mxu0 %v3819
  %3915 = vmatpush.bf16.msra.mxu0 %v3817
  %3916 = vmatmul.bf16.gmra.mxu0 %v3686
  %v3917 = vpop.f32.mrf.mxu0
  %v3918 = vadd.f32 0.0, %v3917
  %v3919 = vpop.f32.mrf.mxu0
  %v3920 = vadd.f32 0.0, %v3919
  %3921 = vdwg.mxu0
  %3922 = vmatpush.bf16.msra.mxu0 %v3847
  %3923 = vmatpush.bf16.msra.mxu0 %v3845
  %3924 = vmatpush.bf16.msra.mxu0 %v3843
  %3925 = vmatpush.bf16.msra.mxu0 %v3841
  %3926 = vmatpush.bf16.msra.mxu0 %v3839
  %3927 = vmatpush.bf16.msra.mxu0 %v3837
  %3928 = vmatpush.bf16.msra.mxu0 %v3835
  %3929 = vmatpush.bf16.msra.mxu0 %v3833
  %3930 = vmatmul.bf16.gmra.mxu0 %v3687
  %v3931 = vpop.f32.mrf.mxu0
  %v3932 = vadd.f32 %v3918, %v3931
  %v3933 = vpop.f32.mrf.mxu0
  %v3934 = vadd.f32 %v3920, %v3933
  %3935 = vdwg.mxu0
  %v3936 = vadd.f32 %v3644, %v3904
  %v3937 = vadd.f32 %v3645, %v3932
  %v3938 = vadd.f32 %v3646, %v3906
  %v3939 = vadd.f32 %v3647, %v3934
  %v3940 = vld [vmem:[%s8] sm:$0x3]
  %v3942 = vperm.slane %v3940, 0
  %v3943 = vperm.slane %v3940, 1
  %v3946 = vadd.f32 %v3936, %v3942
  %v3947 = vadd.f32 %v3937, %v3943
  %v3948 = vadd.f32 %v3938, %v3942
  %v3949 = vadd.f32 %v3939, %v3943
  %3950 = vst [vmem:[%s9] sm:$0xff] %v3946
  %3951 = vst [vmem:[%s9 + $0x8] sm:$0xff] %v3947
  %3952 = vst [vmem:[%s9 + $0x10] sm:$0xff] %v3948
  %3953 = vst [vmem:[%s9 + $0x18] sm:$0xff] %v3949
  // Predicated region
  $region38: #{optimized_block_forward.1} parent=0 // pred_check
    _
  $region39: #{optimized_block_forward.1} parent=0 // pred_check_branch
    %3955 = sbr.rel (0) target = $region41
  $region40: #{optimized_block_forward.1} parent=0 // pred_region
    _
  $region41: #{optimized_block_forward.1} parent=0 // pred_fallthru
    _
  // Predicated region
  $region42: #{optimized_block_forward.1} parent=0 // pred_check
    _
  $region43: #{optimized_block_forward.1} parent=0 // pred_check_branch
    %3957 = sbr.rel (0) target = $region45
  $region44: #{optimized_block_forward.1} parent=0 // pred_region
    _
  $region45: #{optimized_block_forward.1} parent=0 // pred_fallthru
    _

</llo_original>
